<compile_context>
chip_gen: v5e
topology: v5e:2x2
jax: 0.10.0
libtpu: 0.0.40
codegen_flags: <defaults>
</compile_context>

<pallas_src>
import jax
import jax.numpy as jnp
from jax import lax
from jax.experimental import pallas as pl
from jax.experimental.pallas import tpu as pltpu

C = 64               # channels (fixed by the module)
PACK = 2             # batch samples packed along the lane axis
C2 = C * PACK        # 128 lanes -> dense vregs / unmasked stores
GROUPS = 4           # GroupNorm groups
GSIZE = C // GROUPS  # 16 channels per group (holds for packed channels too)
K1, P1 = 15, 7       # conv1: kernel, padding (stride 1)
K2, P2 = 16, 7       # conv2: kernel, padding (stride 2)
KP, PP = 16, 7       # maxpool: kernel, padding (stride 2)
EPS = 1e-5
PAD_F = 7            # front pad rows (identical for pool / conv1 / conv2)
PAD_B = 9            # back pad rows: 7 true pad + 2 safety rows so the
                     # stride-2 deinterleave reads of (Lh+8) rows stay in-bounds


def _gn_relu(v, gamma, beta, gmat, inv_n):
    """GroupNorm(4,64) + affine + ReLU on (L, C2); f32 stats, folded affine."""
    s1 = jnp.sum(v, axis=0, keepdims=True)                 # (1, C2) sum
    s2 = jnp.sum(v * v, axis=0, keepdims=True)             # (1, C2) sumsq
    stats = jnp.concatenate([s1, s2], axis=0)              # (2, C2)
    red = jnp.dot(stats, gmat, preferred_element_type=jnp.float32) * inv_n
    mean = red[0:1, :]
    var = red[1:2, :] - mean * mean
    a = lax.rsqrt(var + EPS) * gamma                       # (1, C2)
    b = beta - mean * a                                    # (1, C2)
    return jnp.maximum(v * a + b, 0.0)                     # 2 VPU ops/elem + max


def block_kernel(x_ref, gmat_ref, g1_ref, b1_ref, w1p_ref, w1l_ref, cb1_ref,
                 g2_ref, b2_ref, w2p_ref, cb2_ref,
                 out_ref,
                 pad_ref, wide_ref, eob_ref, m_ref):
    L = x_ref.shape[1]
    Lh = L // 2                          # stride-2 output length
    Lpp = pad_ref.shape[0]               # L + 16 padded rows
    f32 = jnp.float32
    bf16 = jnp.bfloat16
    gmat = gmat_ref[...]                  # (C2, C2) same-group indicator (f32)
    inv_n = f32(1.0 / (GSIZE * L))
    x = x_ref[0]                          # (L, C2) f32

    # -------- x0 = MaxPool1d(k=16, s=2, p=7)(x): deinterleave-once pool -------
    neg = f32(-jnp.inf)
    pad_ref[0:PAD_F, :] = jnp.full((PAD_F, C2), neg, f32)
    pad_ref[PAD_F:PAD_F + L, :] = x
    pad_ref[PAD_F + L:Lpp, :] = jnp.full((PAD_B, C2), neg, f32)
    # m[j] = max(xpad[2j], xpad[2j+1]); window max is then 8 contiguous slices.
    m_ref[...] = jnp.maximum(pad_ref[pl.ds(0, Lh + 8, stride=2), :],
                             pad_ref[pl.ds(1, Lh + 8, stride=2), :])
    x0 = m_ref[0:Lh, :]
    for a in range(1, KP // 2):
        x0 = jnp.maximum(x0, m_ref[a:a + Lh, :])
    out_ref[0] = x0                       # park pool result; y2 added at the end

    # -------- x1 = conv1(relu(gn1(x))), stride 1, k=15, p=7 --------------------
    # GN stats/apply in f32; MXU operands staged in bf16.  Taps are paired on
    # the contraction dim: wide[:,0:128]=h1pad[i], wide[:,128:256]=h1pad[i+1],
    # so each pair is one (L,256)@(256,128) bf16 dot (full-width MXU on v6e/v7x).
    h1 = _gn_relu(x, g1_ref[...], b1_ref[...], gmat, inv_n)
    pad_ref[0:PAD_F, :] = jnp.zeros((PAD_F, C2), f32)
    pad_ref[PAD_F:PAD_F + L, :] = h1
    pad_ref[PAD_F + L:Lpp, :] = jnp.zeros((PAD_B, C2), f32)
    wide_ref[0:Lpp, 0:C2] = pad_ref[...].astype(bf16)
    wide_ref[0:Lpp - 1, C2:2 * C2] = pad_ref[1:Lpp, :].astype(bf16)
    acc_a = jnp.dot(wide_ref[0:L, :], w1p_ref[0], preferred_element_type=f32)
    acc_b = jnp.dot(wide_ref[2:2 + L, :], w1p_ref[1], preferred_element_type=f32)
    for p in range(2, K1 // 2):           # pairs 2..6 (even sublane offsets only)
        d = jnp.dot(wide_ref[2 * p:2 * p + L, :], w1p_ref[p],
                    preferred_element_type=f32)
        if p % 2 == 0:
            acc_a = acc_a + d
        else:
            acc_b = acc_b + d
    acc_b = acc_b + jnp.dot(wide_ref[K1 - 1:K1 - 1 + L, 0:C2], w1l_ref[...],
                            preferred_element_type=f32)   # odd last tap (k=14)
    y1 = acc_a + acc_b + cb1_ref[...]                      # (L, C2) f32

    # -------- x2 = conv2(relu(gn2(x1))), stride 2, k=16, p=7 -------------------
    # Padded h2 is written once, then deinterleaved once into even/odd
    # lane-packed bf16 buffers:
    #   eoA[m] = (h2pad[2m]   | h2pad[2m+1])  -> tap pairs a = 0,2,4,6
    #   eoB[m] = (h2pad[2m+2] | h2pad[2m+3])  -> tap pairs a = 1,3,5,7
    # so every bf16 read is contiguous with an even sublane offset, and each
    # tap pair is one (Lh,256)@(256,128) bf16 dot.
    h2 = _gn_relu(y1, g2_ref[...], b2_ref[...], gmat, inv_n)
    pad_ref[0:PAD_F, :] = jnp.zeros((PAD_F, C2), f32)
    pad_ref[PAD_F:PAD_F + L, :] = h2
    pad_ref[PAD_F + L:Lpp, :] = jnp.zeros((PAD_B, C2), f32)
    wide_ref[0:Lh + 8, 0:C2] = pad_ref[pl.ds(0, Lh + 8, stride=2), :].astype(bf16)
    wide_ref[0:Lh + 8, C2:2 * C2] = pad_ref[pl.ds(1, Lh + 8, stride=2), :].astype(bf16)
    eob_ref[0:Lh + 6, 0:C2] = pad_ref[pl.ds(2, Lh + 6, stride=2), :].astype(bf16)
    eob_ref[0:Lh + 6, C2:2 * C2] = pad_ref[pl.ds(3, Lh + 6, stride=2), :].astype(bf16)
    acc_a = jnp.dot(wide_ref[0:Lh, :], w2p_ref[0], preferred_element_type=f32)
    acc_b = jnp.dot(eob_ref[0:Lh, :], w2p_ref[1], preferred_element_type=f32)
    for a in range(2, K2 // 2):
        if a % 2 == 0:
            acc_a = acc_a + jnp.dot(wide_ref[a:a + Lh, :], w2p_ref[a],
                                    preferred_element_type=f32)
        else:
            acc_b = acc_b + jnp.dot(eob_ref[a - 1:a - 1 + Lh, :], w2p_ref[a],
                                    preferred_element_type=f32)
    y2 = acc_a + acc_b + cb2_ref[...]                      # (Lh, C2) f32

    # -------- out = x2 + x0 ----------------------------------------------------
    out_ref[0] = out_ref[0] + y2


def _vmem_limit_bytes():
    """64 MiB on v5e/v6e; on v7x (64 MiB physical) leave headroom."""
    limit = 64 * 1024 * 1024
    try:
        cap = int(pltpu.get_tpu_info().vmem_capacity_bytes)
        limit = min(limit, (cap * 3) // 4)
    except Exception:
        pass
    return int(limit)


def block_forward(x_ncl, params):
    """x_ncl: (N, 64, L) float32 (PyTorch NCL). Returns (N, 64, L//2)."""
    N, Cin, L = x_ncl.shape
    assert Cin == C and L % 2 == 0
    Lh = L // 2
    Lpp = L + PAD_F + PAD_B

    # Pad batch to a multiple of PACK and pack PACK samples along channels.
    Npad = ((N + PACK - 1) // PACK) * PACK
    if Npad != N:
        x_ncl = jnp.concatenate(
            [x_ncl, jnp.zeros((Npad - N, C, L), x_ncl.dtype)], axis=0)
    NP = Npad // PACK
    x_nlc = jnp.transpose(x_ncl, (0, 2, 1)).astype(jnp.float32)       # (Npad, L, C)
    x_pack = (x_nlc.reshape(NP, PACK, L, C)
                   .transpose(0, 2, 1, 3)
                   .reshape(NP, L, C2))                                # (NP, L, 128)

    # Host-side constants: group-membership matrix (f32), lane-packed affine
    # params (f32), block-diagonal lane-packed conv weights paired on the
    # contraction axis and cast to bf16 for the MXU.
    gid = jnp.arange(C2, dtype=jnp.int32) // GSIZE
    gmat = (gid[:, None] == gid[None, :]).astype(jnp.float32)          # (128, 128)

    def pack_vec(v):                        # (1, C) -> (1, C2)
        return jnp.concatenate([v] * PACK, axis=1)

    def blockdiag(w):                       # (K, C, C) -> (K, C2, C2)
        wp = jnp.zeros((w.shape[0], C2, C2), jnp.float32)
        for p in range(PACK):
            wp = wp.at[:, p * C:(p + 1) * C, p * C:(p + 1) * C].set(w)
        return wp

    w1bd = blockdiag(params["w1"])          # (15, 128, 128)
    w2bd = blockdiag(params["w2"])          # (16, 128, 128)
    # Pair taps on the contraction dim: [W_{2p}; W_{2p+1}] -> (pairs, 256, 128).
    w1p = jnp.concatenate([w1bd[0:K1 - 1:2], w1bd[1:K1:2]], axis=1).astype(jnp.bfloat16)
    w1l = w1bd[K1 - 1].astype(jnp.bfloat16)                             # last odd tap
    w2p = jnp.concatenate([w2bd[0:K2:2], w2bd[1:K2:2]], axis=1).astype(jnp.bfloat16)

    const2d = lambda n: (0, 0)
    const3d = lambda n: (0, 0, 0)

    out = pl.pallas_call(
        block_kernel,
        out_shape=jax.ShapeDtypeStruct((NP, Lh, C2), jnp.float32),
        grid_spec=pltpu.PrefetchScalarGridSpec(
            num_scalar_prefetch=0,
            grid=(NP,),
            in_specs=[
                pl.BlockSpec((1, L, C2), lambda n: (n, 0, 0)),       # packed x
                pl.BlockSpec((C2, C2), const2d),                     # group matrix (f32)
                pl.BlockSpec((1, C2), const2d),                      # gn1 gamma
                pl.BlockSpec((1, C2), const2d),                      # gn1 beta
                pl.BlockSpec((K1 // 2, 2 * C2, C2), const3d),        # conv1 W pairs (bf16)
                pl.BlockSpec((C2, C2), const2d),                     # conv1 last tap (bf16)
                pl.BlockSpec((1, C2), const2d),                      # conv1 bias
                pl.BlockSpec((1, C2), const2d),                      # gn2 gamma
                pl.BlockSpec((1, C2), const2d),                      # gn2 beta
                pl.BlockSpec((K2 // 2, 2 * C2, C2), const3d),        # conv2 W pairs (bf16)
                pl.BlockSpec((1, C2), const2d),                      # conv2 bias
            ],
            out_specs=pl.BlockSpec((1, Lh, C2), lambda n: (n, 0, 0)),
            scratch_shapes=[
                pltpu.VMEM((Lpp, C2), jnp.float32),        # shared f32 pad buffer
                pltpu.VMEM((Lpp, 2 * C2), jnp.bfloat16),   # bf16 wide taps / conv2 eoA
                pltpu.VMEM((Lh + 8, 2 * C2), jnp.bfloat16),# bf16 conv2 eoB buffer
                pltpu.VMEM((Lh + 8, C2), jnp.float32),     # pool even/odd max buffer
            ]),
        compiler_params=pltpu.CompilerParams(
            dimension_semantics=("parallel",),
            vmem_limit_bytes=_vmem_limit_bytes()),
    )(x_pack, gmat,
      pack_vec(params["gn1_w"]), pack_vec(params["gn1_b"]),
      w1p, w1l, pack_vec(params["b1"]),
      pack_vec(params["gn2_w"]), pack_vec(params["gn2_b"]),
      w2p, pack_vec(params["b2"]))

    # Unpack the lane-packed pairs back to (N, C, Lh).
    out = (out.reshape(NP, Lh, PACK, C)
              .transpose(0, 2, 1, 3)
              .reshape(Npad, Lh, C))[:N]
    return jnp.transpose(out, (0, 2, 1))


def block_reference(x_ncl, params):
    """Pure-JAX reference of the PyTorch module (eval mode)."""
    def gn(v, w, b):
        Nb, Cc, Ll = v.shape
        vg = v.reshape(Nb, GROUPS, Cc // GROUPS, Ll)
        mean = jnp.mean(vg, axis=(2, 3), keepdims=True)
        var = jnp.mean((vg - mean) ** 2, axis=(2, 3), keepdims=True)
        vn = ((vg - mean) * lax.rsqrt(var + EPS)).reshape(Nb, Cc, Ll)
        return vn * w.reshape(1, Cc, 1) + b.reshape(1, Cc, 1)

    def conv(v, w_kio, bias, stride):
        wt = jnp.transpose(w_kio, (2, 1, 0))     # (Cout, Cin, K) torch layout
        out = lax.conv_general_dilated(
            v, wt, window_strides=(stride,), padding=[(7, 7)],
            dimension_numbers=("NCH", "OIH", "NCH"),
            precision=lax.Precision.HIGHEST)
        return out + bias.reshape(1, -1, 1)

    x0 = lax.reduce_window(x_ncl, -jnp.inf, lax.max,
                           window_dimensions=(1, 1, KP),
                           window_strides=(1, 1, 2),
                           padding=[(0, 0), (0, 0), (PP, PP)])
    x1 = conv(jax.nn.relu(gn(x_ncl, params["gn1_w"][0], params["gn1_b"][0])),
              params["w1"], params["b1"][0], 1)
    x2 = conv(jax.nn.relu(gn(x1, params["gn2_w"][0], params["gn2_b"][0])),
              params["w2"], params["b2"][0], 2)
    return x2 + x0


def init_params(key):
    ks = jax.random.split(key, 8)
    f32 = jnp.float32
    return {
        "gn1_w": 1.0 + 0.1 * jax.random.normal(ks[0], (1, C), f32),
        "gn1_b": 0.1 * jax.random.normal(ks[1], (1, C), f32),
        "gn2_w": 1.0 + 0.1 * jax.random.normal(ks[2], (1, C), f32),
        "gn2_b": 0.1 * jax.random.normal(ks[3], (1, C), f32),
        # Conv weights stored as (K, Cin, Cout) == torch weight.transpose(2,1,0)
        "w1": jax.random.normal(ks[4], (K1, C, C), f32) / jnp.sqrt(C * K1),
        "b1": 0.01 * jax.random.normal(ks[5], (1, C), f32),
        "w2": jax.random.normal(ks[6], (K2, C, C), f32) / jnp.sqrt(C * K2),
        "b2": 0.01 * jax.random.normal(ks[7], (1, C), f32),
    }


if __name__ == "__main__":
    key = jax.random.PRNGKey(0)
    kx, kp = jax.random.split(key)
    N, L = 2, 32                              # channels fixed at 64 by the module
    x = jax.random.normal(kx, (N, C, L), jnp.float32)
    params = init_params(kp)

    out = jax.block_until_ready(block_forward(x, params))
    assert out.shape == (N, C, L // 2)
    assert bool(jnp.all(jnp.isfinite(out)))

    ref = jax.block_until_ready(block_reference(x, params))
    err = float(jnp.max(jnp.abs(out - ref)) / (jnp.max(jnp.abs(ref)) + 1e-6))
    assert err < 2e-2, f"mismatch vs reference: normalized max err {err}"

    print("KERNEL_OK")
</pallas_src>

<mosaic_0001>
module attributes {stable_mosaic.version = 11 : i64} {
  func.func @block_kernel(%arg0: i32, %arg1: memref<1x32x128xf32, #tpu.memory_space<vmem>>, %arg2: memref<128x128xf32, #tpu.memory_space<vmem>>, %arg3: memref<1x128xf32, #tpu.memory_space<vmem>>, %arg4: memref<1x128xf32, #tpu.memory_space<vmem>>, %arg5: memref<7x256x128xbf16, #tpu.memory_space<vmem>>, %arg6: memref<128x128xbf16, #tpu.memory_space<vmem>>, %arg7: memref<1x128xf32, #tpu.memory_space<vmem>>, %arg8: memref<1x128xf32, #tpu.memory_space<vmem>>, %arg9: memref<1x128xf32, #tpu.memory_space<vmem>>, %arg10: memref<8x256x128xbf16, #tpu.memory_space<vmem>>, %arg11: memref<1x128xf32, #tpu.memory_space<vmem>>, %arg12: memref<1x16x128xf32, #tpu.memory_space<vmem>>, %arg13: memref<48x128xf32, #tpu.memory_space<vmem>>, %arg14: memref<48x256xbf16, #tpu.memory_space<vmem>>, %arg15: memref<24x256xbf16, #tpu.memory_space<vmem>>, %arg16: memref<24x128xf32, #tpu.memory_space<vmem>>) attributes {dimension_semantics = [#tpu.dimension_semantics<parallel>], iteration_bounds = array<i64: 1>, scalar_prefetch = 0 : i64, scratch_operands = 4 : i64, tpu.core_type = #tpu.core_type<tc>, window_params = [{transform_indices = @transform_0, window_bounds = array<i64: 1, 32, 128>}, {pipeline_mode = #tpu.pipeline_mode<synchronous>, transform_indices = @transform_1, window_bounds = array<i64: 128, 128>}, {pipeline_mode = #tpu.pipeline_mode<synchronous>, transform_indices = @transform_2, window_bounds = array<i64: 1, 128>}, {pipeline_mode = #tpu.pipeline_mode<synchronous>, transform_indices = @transform_3, window_bounds = array<i64: 1, 128>}, {pipeline_mode = #tpu.pipeline_mode<synchronous>, transform_indices = @transform_4, window_bounds = array<i64: 7, 256, 128>}, {pipeline_mode = #tpu.pipeline_mode<synchronous>, transform_indices = @transform_5, window_bounds = array<i64: 128, 128>}, {pipeline_mode = #tpu.pipeline_mode<synchronous>, transform_indices = @transform_6, window_bounds = array<i64: 1, 128>}, {pipeline_mode = #tpu.pipeline_mode<synchronous>, transform_indices = @transform_7, window_bounds = array<i64: 1, 128>}, {pipeline_mode = #tpu.pipeline_mode<synchronous>, transform_indices = @transform_8, window_bounds = array<i64: 1, 128>}, {pipeline_mode = #tpu.pipeline_mode<synchronous>, transform_indices = @transform_9, window_bounds = array<i64: 8, 256, 128>}, {pipeline_mode = #tpu.pipeline_mode<synchronous>, transform_indices = @transform_10, window_bounds = array<i64: 1, 128>}, {transform_indices = @transform_11, window_bounds = array<i64: 1, 16, 128>}]} {
    %c0 = arith.constant 0 : index
    %c0_0 = arith.constant 0 : index
    %0 = vector.load %arg2[%c0, %c0_0] : memref<128x128xf32, #tpu.memory_space<vmem>>, vector<128x128xf32>
    %c0_1 = arith.constant 0 : index
    %c0_2 = arith.constant 0 : index
    %c0_3 = arith.constant 0 : index
    %1 = vector.load %arg1[%c0_1, %c0_2, %c0_3] : memref<1x32x128xf32, #tpu.memory_space<vmem>>, vector<1x32x128xf32>
    %2 = vector.shape_cast %1 : vector<1x32x128xf32> to vector<32x128xf32>
    %cst = arith.constant 0xFF800000 : f32
    %3 = vector.broadcast %cst : f32 to vector<7x128xf32>
    %c0_4 = arith.constant 0 : index
    %c0_5 = arith.constant 0 : index
    %4 = vector.load %arg13[%c0_4, %c0_5] : memref<48x128xf32, #tpu.memory_space<vmem>>, vector<7x128xf32>
    tpu.vector_store %arg13[%c0_4, %c0_5], %3 {strides = array<i32>} : memref<48x128xf32, #tpu.memory_space<vmem>>, vector<7x128xf32>,
    %c7 = arith.constant 7 : index
    %c0_6 = arith.constant 0 : index
    %5 = vector.load %arg13[%c7, %c0_6] : memref<48x128xf32, #tpu.memory_space<vmem>>, vector<32x128xf32>
    tpu.vector_store %arg13[%c7, %c0_6], %2 {strides = array<i32>} : memref<48x128xf32, #tpu.memory_space<vmem>>, vector<32x128xf32>,
    %cst_7 = arith.constant 0xFF800000 : f32
    %6 = vector.broadcast %cst_7 : f32 to vector<9x128xf32>
    %c39 = arith.constant 39 : index
    %c0_8 = arith.constant 0 : index
    %7 = vector.load %arg13[%c39, %c0_8] : memref<48x128xf32, #tpu.memory_space<vmem>>, vector<9x128xf32>
    tpu.vector_store %arg13[%c39, %c0_8], %6 {strides = array<i32>} : memref<48x128xf32, #tpu.memory_space<vmem>>, vector<9x128xf32>,
    %c0_9 = arith.constant 0 : index
    %c0_10 = arith.constant 0 : index
    %8 = tpu.strided_load %arg13[%c0_9, %c0_10] {strides = array<i32: 2, 1>} : memref<48x128xf32, #tpu.memory_space<vmem>>, vector<24x128xf32>
    %c1 = arith.constant 1 : index
    %c0_11 = arith.constant 0 : index
    %9 = tpu.strided_load %arg13[%c1, %c0_11] {strides = array<i32: 2, 1>} : memref<48x128xf32, #tpu.memory_space<vmem>>, vector<24x128xf32>
    %10 = arith.maximumf %8, %9 : vector<24x128xf32>
    %c0_12 = arith.constant 0 : index
    %c0_13 = arith.constant 0 : index
    %11 = vector.load %arg16[%c0_12, %c0_13] : memref<24x128xf32, #tpu.memory_space<vmem>>, vector<24x128xf32>
    tpu.vector_store %arg16[%c0_12, %c0_13], %10 {strides = array<i32>} : memref<24x128xf32, #tpu.memory_space<vmem>>, vector<24x128xf32>,
    %c0_14 = arith.constant 0 : index
    %c0_15 = arith.constant 0 : index
    %12 = vector.load %arg16[%c0_14, %c0_15] : memref<24x128xf32, #tpu.memory_space<vmem>>, vector<16x128xf32>
    %c1_16 = arith.constant 1 : index
    %c0_17 = arith.constant 0 : index
    %13 = vector.load %arg16[%c1_16, %c0_17] : memref<24x128xf32, #tpu.memory_space<vmem>>, vector<16x128xf32>
    %14 = arith.maximumf %12, %13 : vector<16x128xf32>
    %c2 = arith.constant 2 : index
    %c0_18 = arith.constant 0 : index
    %15 = vector.load %arg16[%c2, %c0_18] : memref<24x128xf32, #tpu.memory_space<vmem>>, vector<16x128xf32>
    %16 = arith.maximumf %14, %15 : vector<16x128xf32>
    %c3 = arith.constant 3 : index
    %c0_19 = arith.constant 0 : index
    %17 = vector.load %arg16[%c3, %c0_19] : memref<24x128xf32, #tpu.memory_space<vmem>>, vector<16x128xf32>
    %18 = arith.maximumf %16, %17 : vector<16x128xf32>
    %c4 = arith.constant 4 : index
    %c0_20 = arith.constant 0 : index
    %19 = vector.load %arg16[%c4, %c0_20] : memref<24x128xf32, #tpu.memory_space<vmem>>, vector<16x128xf32>
    %20 = arith.maximumf %18, %19 : vector<16x128xf32>
    %c5 = arith.constant 5 : index
    %c0_21 = arith.constant 0 : index
    %21 = vector.load %arg16[%c5, %c0_21] : memref<24x128xf32, #tpu.memory_space<vmem>>, vector<16x128xf32>
    %22 = arith.maximumf %20, %21 : vector<16x128xf32>
    %c6 = arith.constant 6 : index
    %c0_22 = arith.constant 0 : index
    %23 = vector.load %arg16[%c6, %c0_22] : memref<24x128xf32, #tpu.memory_space<vmem>>, vector<16x128xf32>
    %24 = arith.maximumf %22, %23 : vector<16x128xf32>
    %c7_23 = arith.constant 7 : index
    %c0_24 = arith.constant 0 : index
    %25 = vector.load %arg16[%c7_23, %c0_24] : memref<24x128xf32, #tpu.memory_space<vmem>>, vector<16x128xf32>
    %26 = arith.maximumf %24, %25 : vector<16x128xf32>
    %c0_25 = arith.constant 0 : index
    %c0_26 = arith.constant 0 : index
    %c0_27 = arith.constant 0 : index
    %27 = vector.load %arg12[%c0_25, %c0_26, %c0_27] : memref<1x16x128xf32, #tpu.memory_space<vmem>>, vector<1x16x128xf32>
    %28 = vector.shape_cast %27 : vector<1x16x128xf32> to vector<16x128xf32>
    %29 = vector.shape_cast %26 : vector<16x128xf32> to vector<1x16x128xf32>
    tpu.vector_store %arg12[%c0_25, %c0_26, %c0_27], %29 {strides = array<i32>} : memref<1x16x128xf32, #tpu.memory_space<vmem>>, vector<1x16x128xf32>,
    %c0_28 = arith.constant 0 : index
    %c0_29 = arith.constant 0 : index
    %30 = vector.load %arg3[%c0_28, %c0_29] : memref<1x128xf32, #tpu.memory_space<vmem>>, vector<1x128xf32>
    %c0_30 = arith.constant 0 : index
    %c0_31 = arith.constant 0 : index
    %31 = vector.load %arg4[%c0_30, %c0_31] : memref<1x128xf32, #tpu.memory_space<vmem>>, vector<1x128xf32>
    %cst_32 = arith.constant dense<0.000000e+00> : vector<128xf32>
    %32 = vector.multi_reduction <add>, %2, %cst_32 [0] : vector<32x128xf32> to vector<128xf32>
    %33 = vector.shape_cast %32 : vector<128xf32> to vector<1x128xf32>
    %34 = arith.mulf %2, %2 : vector<32x128xf32>
    %cst_33 = arith.constant dense<0.000000e+00> : vector<128xf32>
    %35 = vector.multi_reduction <add>, %34, %cst_33 [0] : vector<32x128xf32> to vector<128xf32>
    %36 = vector.shape_cast %35 : vector<128xf32> to vector<1x128xf32>
    %37 = tpu.concatenate %33, %36 in 0 : vector<1x128xf32>, vector<1x128xf32> -> vector<2x128xf32>
    %cst_34 = arith.constant dense<0.000000e+00> : vector<2x128xf32>
    %38 = tpu.matmul %37, %0, %cst_34 {dimension_numbers = #tpu.dot_dimension_numbers<[1], [0], [0], [1], [0, 0, 1, 1], [], []>} : vector<2x128xf32>, vector<128x128xf32>, vector<2x128xf32> -> vector<2x128xf32>
    %cst_35 = arith.constant 0.001953125 : f32
    %39 = vector.broadcast %cst_35 : f32 to vector<2x128xf32>
    %40 = arith.mulf %38, %39 : vector<2x128xf32>
    %41 = vector.extract_strided_slice %40 {offsets = [0, 0], sizes = [1, 128], strides = [1, 1]} : vector<2x128xf32> to vector<1x128xf32>
    %42 = vector.extract_strided_slice %40 {offsets = [1, 0], sizes = [1, 128], strides = [1, 1]} : vector<2x128xf32> to vector<1x128xf32>
    %43 = arith.mulf %41, %41 : vector<1x128xf32>
    %44 = arith.subf %42, %43 : vector<1x128xf32>
    %cst_36 = arith.constant 9.99999974E-6 : f32
    %45 = vector.broadcast %cst_36 : f32 to vector<1x128xf32>
    %46 = arith.addf %44, %45 : vector<1x128xf32>
    %47 = math.rsqrt %46 : vector<1x128xf32>
    %48 = arith.mulf %47, %30 : vector<1x128xf32>
    %49 = arith.mulf %41, %48 : vector<1x128xf32>
    %50 = arith.subf %31, %49 : vector<1x128xf32>
    %51 = vector.broadcast %48 : vector<1x128xf32> to vector<32x128xf32>
    %52 = arith.mulf %2, %51 : vector<32x128xf32>
    %53 = vector.broadcast %50 : vector<1x128xf32> to vector<32x128xf32>
    %54 = arith.addf %52, %53 : vector<32x128xf32>
    %cst_37 = arith.constant 0.000000e+00 : f32
    %55 = vector.broadcast %cst_37 : f32 to vector<32x128xf32>
    %56 = arith.maximumf %54, %55 : vector<32x128xf32>
    %cst_38 = arith.constant 0.000000e+00 : f32
    %57 = vector.broadcast %cst_38 : f32 to vector<7x128xf32>
    %c0_39 = arith.constant 0 : index
    %c0_40 = arith.constant 0 : index
    %58 = vector.load %arg13[%c0_39, %c0_40] : memref<48x128xf32, #tpu.memory_space<vmem>>, vector<7x128xf32>
    tpu.vector_store %arg13[%c0_39, %c0_40], %57 {strides = array<i32>} : memref<48x128xf32, #tpu.memory_space<vmem>>, vector<7x128xf32>,
    %c7_41 = arith.constant 7 : index
    %c0_42 = arith.constant 0 : index
    %59 = vector.load %arg13[%c7_41, %c0_42] : memref<48x128xf32, #tpu.memory_space<vmem>>, vector<32x128xf32>
    tpu.vector_store %arg13[%c7_41, %c0_42], %56 {strides = array<i32>} : memref<48x128xf32, #tpu.memory_space<vmem>>, vector<32x128xf32>,
    %cst_43 = arith.constant 0.000000e+00 : f32
    %60 = vector.broadcast %cst_43 : f32 to vector<9x128xf32>
    %c39_44 = arith.constant 39 : index
    %c0_45 = arith.constant 0 : index
    %61 = vector.load %arg13[%c39_44, %c0_45] : memref<48x128xf32, #tpu.memory_space<vmem>>, vector<9x128xf32>
    tpu.vector_store %arg13[%c39_44, %c0_45], %60 {strides = array<i32>} : memref<48x128xf32, #tpu.memory_space<vmem>>, vector<9x128xf32>,
    %c0_46 = arith.constant 0 : index
    %c0_47 = arith.constant 0 : index
    %62 = vector.load %arg13[%c0_46, %c0_47] : memref<48x128xf32, #tpu.memory_space<vmem>>, vector<48x128xf32>
    %63 = arith.truncf %62 : vector<48x128xf32> to vector<48x128xbf16>
    %c0_48 = arith.constant 0 : index
    %c0_49 = arith.constant 0 : index
    %64 = vector.load %arg14[%c0_48, %c0_49] : memref<48x256xbf16, #tpu.memory_space<vmem>>, vector<48x128xbf16>
    tpu.vector_store %arg14[%c0_48, %c0_49], %63 {strides = array<i32>} : memref<48x256xbf16, #tpu.memory_space<vmem>>, vector<48x128xbf16>,
    %c1_50 = arith.constant 1 : index
    %c0_51 = arith.constant 0 : index
    %65 = vector.load %arg13[%c1_50, %c0_51] : memref<48x128xf32, #tpu.memory_space<vmem>>, vector<47x128xf32>
    %66 = arith.truncf %65 : vector<47x128xf32> to vector<47x128xbf16>
    %c0_52 = arith.constant 0 : index
    %c128 = arith.constant 128 : index
    %67 = vector.load %arg14[%c0_52, %c128] : memref<48x256xbf16, #tpu.memory_space<vmem>>, vector<47x128xbf16>
    tpu.vector_store %arg14[%c0_52, %c128], %66 {strides = array<i32>} : memref<48x256xbf16, #tpu.memory_space<vmem>>, vector<47x128xbf16>,
    %c0_53 = arith.constant 0 : index
    %c0_54 = arith.constant 0 : index
    %68 = vector.load %arg14[%c0_53, %c0_54] : memref<48x256xbf16, #tpu.memory_space<vmem>>, vector<32x256xbf16>
    %c0_55 = arith.constant 0 : index
    %c0_56 = arith.constant 0 : index
    %c0_57 = arith.constant 0 : index
    %69 = vector.load %arg5[%c0_55, %c0_56, %c0_57] : memref<7x256x128xbf16, #tpu.memory_space<vmem>>, vector<1x256x128xbf16>
    %70 = vector.shape_cast %69 : vector<1x256x128xbf16> to vector<256x128xbf16>
    %cst_58 = arith.constant dense<0.000000e+00> : vector<32x128xf32>
    %71 = tpu.matmul %68, %70, %cst_58 {dimension_numbers = #tpu.dot_dimension_numbers<[1], [0], [0], [1], [0, 0, 1, 1], [], []>} : vector<32x256xbf16>, vector<256x128xbf16>, vector<32x128xf32> -> vector<32x128xf32>
    %c2_59 = arith.constant 2 : index
    %c0_60 = arith.constant 0 : index
    %72 = vector.load %arg14[%c2_59, %c0_60] : memref<48x256xbf16, #tpu.memory_space<vmem>>, vector<32x256xbf16>
    %c1_61 = arith.constant 1 : index
    %c0_62 = arith.constant 0 : index
    %c0_63 = arith.constant 0 : index
    %73 = vector.load %arg5[%c1_61, %c0_62, %c0_63] : memref<7x256x128xbf16, #tpu.memory_space<vmem>>, vector<1x256x128xbf16>
    %74 = vector.shape_cast %73 : vector<1x256x128xbf16> to vector<256x128xbf16>
    %cst_64 = arith.constant dense<0.000000e+00> : vector<32x128xf32>
    %75 = tpu.matmul %72, %74, %cst_64 {dimension_numbers = #tpu.dot_dimension_numbers<[1], [0], [0], [1], [0, 0, 1, 1], [], []>} : vector<32x256xbf16>, vector<256x128xbf16>, vector<32x128xf32> -> vector<32x128xf32>
    %c4_65 = arith.constant 4 : index
    %c0_66 = arith.constant 0 : index
    %76 = vector.load %arg14[%c4_65, %c0_66] : memref<48x256xbf16, #tpu.memory_space<vmem>>, vector<32x256xbf16>
    %c2_67 = arith.constant 2 : index
    %c0_68 = arith.constant 0 : index
    %c0_69 = arith.constant 0 : index
    %77 = vector.load %arg5[%c2_67, %c0_68, %c0_69] : memref<7x256x128xbf16, #tpu.memory_space<vmem>>, vector<1x256x128xbf16>
    %78 = vector.shape_cast %77 : vector<1x256x128xbf16> to vector<256x128xbf16>
    %cst_70 = arith.constant dense<0.000000e+00> : vector<32x128xf32>
    %79 = tpu.matmul %76, %78, %cst_70 {dimension_numbers = #tpu.dot_dimension_numbers<[1], [0], [0], [1], [0, 0, 1, 1], [], []>} : vector<32x256xbf16>, vector<256x128xbf16>, vector<32x128xf32> -> vector<32x128xf32>
    %80 = arith.addf %71, %79 : vector<32x128xf32>
    %c6_71 = arith.constant 6 : index
    %c0_72 = arith.constant 0 : index
    %81 = vector.load %arg14[%c6_71, %c0_72] : memref<48x256xbf16, #tpu.memory_space<vmem>>, vector<32x256xbf16>
    %c3_73 = arith.constant 3 : index
    %c0_74 = arith.constant 0 : index
    %c0_75 = arith.constant 0 : index
    %82 = vector.load %arg5[%c3_73, %c0_74, %c0_75] : memref<7x256x128xbf16, #tpu.memory_space<vmem>>, vector<1x256x128xbf16>
    %83 = vector.shape_cast %82 : vector<1x256x128xbf16> to vector<256x128xbf16>
    %cst_76 = arith.constant dense<0.000000e+00> : vector<32x128xf32>
    %84 = tpu.matmul %81, %83, %cst_76 {dimension_numbers = #tpu.dot_dimension_numbers<[1], [0], [0], [1], [0, 0, 1, 1], [], []>} : vector<32x256xbf16>, vector<256x128xbf16>, vector<32x128xf32> -> vector<32x128xf32>
    %85 = arith.addf %75, %84 : vector<32x128xf32>
    %c8 = arith.constant 8 : index
    %c0_77 = arith.constant 0 : index
    %86 = vector.load %arg14[%c8, %c0_77] : memref<48x256xbf16, #tpu.memory_space<vmem>>, vector<32x256xbf16>
    %c4_78 = arith.constant 4 : index
    %c0_79 = arith.constant 0 : index
    %c0_80 = arith.constant 0 : index
    %87 = vector.load %arg5[%c4_78, %c0_79, %c0_80] : memref<7x256x128xbf16, #tpu.memory_space<vmem>>, vector<1x256x128xbf16>
    %88 = vector.shape_cast %87 : vector<1x256x128xbf16> to vector<256x128xbf16>
    %cst_81 = arith.constant dense<0.000000e+00> : vector<32x128xf32>
    %89 = tpu.matmul %86, %88, %cst_81 {dimension_numbers = #tpu.dot_dimension_numbers<[1], [0], [0], [1], [0, 0, 1, 1], [], []>} : vector<32x256xbf16>, vector<256x128xbf16>, vector<32x128xf32> -> vector<32x128xf32>
    %90 = arith.addf %80, %89 : vector<32x128xf32>
    %c10 = arith.constant 10 : index
    %c0_82 = arith.constant 0 : index
    %91 = vector.load %arg14[%c10, %c0_82] : memref<48x256xbf16, #tpu.memory_space<vmem>>, vector<32x256xbf16>
    %c5_83 = arith.constant 5 : index
    %c0_84 = arith.constant 0 : index
    %c0_85 = arith.constant 0 : index
    %92 = vector.load %arg5[%c5_83, %c0_84, %c0_85] : memref<7x256x128xbf16, #tpu.memory_space<vmem>>, vector<1x256x128xbf16>
    %93 = vector.shape_cast %92 : vector<1x256x128xbf16> to vector<256x128xbf16>
    %cst_86 = arith.constant dense<0.000000e+00> : vector<32x128xf32>
    %94 = tpu.matmul %91, %93, %cst_86 {dimension_numbers = #tpu.dot_dimension_numbers<[1], [0], [0], [1], [0, 0, 1, 1], [], []>} : vector<32x256xbf16>, vector<256x128xbf16>, vector<32x128xf32> -> vector<32x128xf32>
    %95 = arith.addf %85, %94 : vector<32x128xf32>
    %c12 = arith.constant 12 : index
    %c0_87 = arith.constant 0 : index
    %96 = vector.load %arg14[%c12, %c0_87] : memref<48x256xbf16, #tpu.memory_space<vmem>>, vector<32x256xbf16>
    %c6_88 = arith.constant 6 : index
    %c0_89 = arith.constant 0 : index
    %c0_90 = arith.constant 0 : index
    %97 = vector.load %arg5[%c6_88, %c0_89, %c0_90] : memref<7x256x128xbf16, #tpu.memory_space<vmem>>, vector<1x256x128xbf16>
    %98 = vector.shape_cast %97 : vector<1x256x128xbf16> to vector<256x128xbf16>
    %cst_91 = arith.constant dense<0.000000e+00> : vector<32x128xf32>
    %99 = tpu.matmul %96, %98, %cst_91 {dimension_numbers = #tpu.dot_dimension_numbers<[1], [0], [0], [1], [0, 0, 1, 1], [], []>} : vector<32x256xbf16>, vector<256x128xbf16>, vector<32x128xf32> -> vector<32x128xf32>
    %100 = arith.addf %90, %99 : vector<32x128xf32>
    %c14 = arith.constant 14 : index
    %c0_92 = arith.constant 0 : index
    %101 = vector.load %arg14[%c14, %c0_92] : memref<48x256xbf16, #tpu.memory_space<vmem>>, vector<32x128xbf16>
    %c0_93 = arith.constant 0 : index
    %c0_94 = arith.constant 0 : index
    %102 = vector.load %arg6[%c0_93, %c0_94] : memref<128x128xbf16, #tpu.memory_space<vmem>>, vector<128x128xbf16>
    %cst_95 = arith.constant dense<0.000000e+00> : vector<32x128xf32>
    %103 = tpu.matmul %101, %102, %cst_95 {dimension_numbers = #tpu.dot_dimension_numbers<[1], [0], [0], [1], [0, 0, 1, 1], [], []>} : vector<32x128xbf16>, vector<128x128xbf16>, vector<32x128xf32> -> vector<32x128xf32>
    %104 = arith.addf %95, %103 : vector<32x128xf32>
    %105 = arith.addf %100, %104 : vector<32x128xf32>
    %c0_96 = arith.constant 0 : index
    %c0_97 = arith.constant 0 : index
    %106 = vector.load %arg7[%c0_96, %c0_97] : memref<1x128xf32, #tpu.memory_space<vmem>>, vector<1x128xf32>
    %107 = vector.broadcast %106 : vector<1x128xf32> to vector<32x128xf32>
    %108 = arith.addf %105, %107 : vector<32x128xf32>
    %c0_98 = arith.constant 0 : index
    %c0_99 = arith.constant 0 : index
    %109 = vector.load %arg8[%c0_98, %c0_99] : memref<1x128xf32, #tpu.memory_space<vmem>>, vector<1x128xf32>
    %c0_100 = arith.constant 0 : index
    %c0_101 = arith.constant 0 : index
    %110 = vector.load %arg9[%c0_100, %c0_101] : memref<1x128xf32, #tpu.memory_space<vmem>>, vector<1x128xf32>
    %cst_102 = arith.constant dense<0.000000e+00> : vector<128xf32>
    %111 = vector.multi_reduction <add>, %108, %cst_102 [0] : vector<32x128xf32> to vector<128xf32>
    %112 = vector.shape_cast %111 : vector<128xf32> to vector<1x128xf32>
    %113 = arith.mulf %108, %108 : vector<32x128xf32>
    %cst_103 = arith.constant dense<0.000000e+00> : vector<128xf32>
    %114 = vector.multi_reduction <add>, %113, %cst_103 [0] : vector<32x128xf32> to vector<128xf32>
    %115 = vector.shape_cast %114 : vector<128xf32> to vector<1x128xf32>
    %116 = tpu.concatenate %112, %115 in 0 : vector<1x128xf32>, vector<1x128xf32> -> vector<2x128xf32>
    %cst_104 = arith.constant dense<0.000000e+00> : vector<2x128xf32>
    %117 = tpu.matmul %116, %0, %cst_104 {dimension_numbers = #tpu.dot_dimension_numbers<[1], [0], [0], [1], [0, 0, 1, 1], [], []>} : vector<2x128xf32>, vector<128x128xf32>, vector<2x128xf32> -> vector<2x128xf32>
    %cst_105 = arith.constant 0.001953125 : f32
    %118 = vector.broadcast %cst_105 : f32 to vector<2x128xf32>
    %119 = arith.mulf %117, %118 : vector<2x128xf32>
    %120 = vector.extract_strided_slice %119 {offsets = [0, 0], sizes = [1, 128], strides = [1, 1]} : vector<2x128xf32> to vector<1x128xf32>
    %121 = vector.extract_strided_slice %119 {offsets = [1, 0], sizes = [1, 128], strides = [1, 1]} : vector<2x128xf32> to vector<1x128xf32>
    %122 = arith.mulf %120, %120 : vector<1x128xf32>
    %123 = arith.subf %121, %122 : vector<1x128xf32>
    %cst_106 = arith.constant 9.99999974E-6 : f32
    %124 = vector.broadcast %cst_106 : f32 to vector<1x128xf32>
    %125 = arith.addf %123, %124 : vector<1x128xf32>
    %126 = math.rsqrt %125 : vector<1x128xf32>
    %127 = arith.mulf %126, %109 : vector<1x128xf32>
    %128 = arith.mulf %120, %127 : vector<1x128xf32>
    %129 = arith.subf %110, %128 : vector<1x128xf32>
    %130 = vector.broadcast %127 : vector<1x128xf32> to vector<32x128xf32>
    %131 = arith.mulf %108, %130 : vector<32x128xf32>
    %132 = vector.broadcast %129 : vector<1x128xf32> to vector<32x128xf32>
    %133 = arith.addf %131, %132 : vector<32x128xf32>
    %cst_107 = arith.constant 0.000000e+00 : f32
    %134 = vector.broadcast %cst_107 : f32 to vector<32x128xf32>
    %135 = arith.maximumf %133, %134 : vector<32x128xf32>
    %cst_108 = arith.constant 0.000000e+00 : f32
    %136 = vector.broadcast %cst_108 : f32 to vector<7x128xf32>
    %c0_109 = arith.constant 0 : index
    %c0_110 = arith.constant 0 : index
    %137 = vector.load %arg13[%c0_109, %c0_110] : memref<48x128xf32, #tpu.memory_space<vmem>>, vector<7x128xf32>
    tpu.vector_store %arg13[%c0_109, %c0_110], %136 {strides = array<i32>} : memref<48x128xf32, #tpu.memory_space<vmem>>, vector<7x128xf32>,
    %c7_111 = arith.constant 7 : index
    %c0_112 = arith.constant 0 : index
    %138 = vector.load %arg13[%c7_111, %c0_112] : memref<48x128xf32, #tpu.memory_space<vmem>>, vector<32x128xf32>
    tpu.vector_store %arg13[%c7_111, %c0_112], %135 {strides = array<i32>} : memref<48x128xf32, #tpu.memory_space<vmem>>, vector<32x128xf32>,
    %cst_113 = arith.constant 0.000000e+00 : f32
    %139 = vector.broadcast %cst_113 : f32 to vector<9x128xf32>
    %c39_114 = arith.constant 39 : index
    %c0_115 = arith.constant 0 : index
    %140 = vector.load %arg13[%c39_114, %c0_115] : memref<48x128xf32, #tpu.memory_space<vmem>>, vector<9x128xf32>
    tpu.vector_store %arg13[%c39_114, %c0_115], %139 {strides = array<i32>} : memref<48x128xf32, #tpu.memory_space<vmem>>, vector<9x128xf32>,
    %c0_116 = arith.constant 0 : index
    %c0_117 = arith.constant 0 : index
    %141 = tpu.strided_load %arg13[%c0_116, %c0_117] {strides = array<i32: 2, 1>} : memref<48x128xf32, #tpu.memory_space<vmem>>, vector<24x128xf32>
    %142 = arith.truncf %141 : vector<24x128xf32> to vector<24x128xbf16>
    %c0_118 = arith.constant 0 : index
    %c0_119 = arith.constant 0 : index
    %143 = vector.load %arg14[%c0_118, %c0_119] : memref<48x256xbf16, #tpu.memory_space<vmem>>, vector<24x128xbf16>
    tpu.vector_store %arg14[%c0_118, %c0_119], %142 {strides = array<i32>} : memref<48x256xbf16, #tpu.memory_space<vmem>>, vector<24x128xbf16>,
    %c1_120 = arith.constant 1 : index
    %c0_121 = arith.constant 0 : index
    %144 = tpu.strided_load %arg13[%c1_120, %c0_121] {strides = array<i32: 2, 1>} : memref<48x128xf32, #tpu.memory_space<vmem>>, vector<24x128xf32>
    %145 = arith.truncf %144 : vector<24x128xf32> to vector<24x128xbf16>
    %c0_122 = arith.constant 0 : index
    %c128_123 = arith.constant 128 : index
    %146 = vector.load %arg14[%c0_122, %c128_123] : memref<48x256xbf16, #tpu.memory_space<vmem>>, vector<24x128xbf16>
    tpu.vector_store %arg14[%c0_122, %c128_123], %145 {strides = array<i32>} : memref<48x256xbf16, #tpu.memory_space<vmem>>, vector<24x128xbf16>,
    %c2_124 = arith.constant 2 : index
    %c0_125 = arith.constant 0 : index
    %147 = tpu.strided_load %arg13[%c2_124, %c0_125] {strides = array<i32: 2, 1>} : memref<48x128xf32, #tpu.memory_space<vmem>>, vector<22x128xf32>
    %148 = arith.truncf %147 : vector<22x128xf32> to vector<22x128xbf16>
    %c0_126 = arith.constant 0 : index
    %c0_127 = arith.constant 0 : index
    %149 = vector.load %arg15[%c0_126, %c0_127] : memref<24x256xbf16, #tpu.memory_space<vmem>>, vector<22x128xbf16>
    tpu.vector_store %arg15[%c0_126, %c0_127], %148 {strides = array<i32>} : memref<24x256xbf16, #tpu.memory_space<vmem>>, vector<22x128xbf16>,
    %c3_128 = arith.constant 3 : index
    %c0_129 = arith.constant 0 : index
    %150 = tpu.strided_load %arg13[%c3_128, %c0_129] {strides = array<i32: 2, 1>} : memref<48x128xf32, #tpu.memory_space<vmem>>, vector<22x128xf32>
    %151 = arith.truncf %150 : vector<22x128xf32> to vector<22x128xbf16>
    %c0_130 = arith.constant 0 : index
    %c128_131 = arith.constant 128 : index
    %152 = vector.load %arg15[%c0_130, %c128_131] : memref<24x256xbf16, #tpu.memory_space<vmem>>, vector<22x128xbf16>
    tpu.vector_store %arg15[%c0_130, %c128_131], %151 {strides = array<i32>} : memref<24x256xbf16, #tpu.memory_space<vmem>>, vector<22x128xbf16>,
    %c0_132 = arith.constant 0 : index
    %c0_133 = arith.constant 0 : index
    %153 = vector.load %arg14[%c0_132, %c0_133] : memref<48x256xbf16, #tpu.memory_space<vmem>>, vector<16x256xbf16>
    %c0_134 = arith.constant 0 : index
    %c0_135 = arith.constant 0 : index
    %c0_136 = arith.constant 0 : index
    %154 = vector.load %arg10[%c0_134, %c0_135, %c0_136] : memref<8x256x128xbf16, #tpu.memory_space<vmem>>, vector<1x256x128xbf16>
    %155 = vector.shape_cast %154 : vector<1x256x128xbf16> to vector<256x128xbf16>
    %cst_137 = arith.constant dense<0.000000e+00> : vector<16x128xf32>
    %156 = tpu.matmul %153, %155, %cst_137 {dimension_numbers = #tpu.dot_dimension_numbers<[1], [0], [0], [1], [0, 0, 1, 1], [], []>} : vector<16x256xbf16>, vector<256x128xbf16>, vector<16x128xf32> -> vector<16x128xf32>
    %c0_138 = arith.constant 0 : index
    %c0_139 = arith.constant 0 : index
    %157 = vector.load %arg15[%c0_138, %c0_139] : memref<24x256xbf16, #tpu.memory_space<vmem>>, vector<16x256xbf16>
    %c1_140 = arith.constant 1 : index
    %c0_141 = arith.constant 0 : index
    %c0_142 = arith.constant 0 : index
    %158 = vector.load %arg10[%c1_140, %c0_141, %c0_142] : memref<8x256x128xbf16, #tpu.memory_space<vmem>>, vector<1x256x128xbf16>
    %159 = vector.shape_cast %158 : vector<1x256x128xbf16> to vector<256x128xbf16>
    %cst_143 = arith.constant dense<0.000000e+00> : vector<16x128xf32>
    %160 = tpu.matmul %157, %159, %cst_143 {dimension_numbers = #tpu.dot_dimension_numbers<[1], [0], [0], [1], [0, 0, 1, 1], [], []>} : vector<16x256xbf16>, vector<256x128xbf16>, vector<16x128xf32> -> vector<16x128xf32>
    %c2_144 = arith.constant 2 : index
    %c0_145 = arith.constant 0 : index
    %161 = vector.load %arg14[%c2_144, %c0_145] : memref<48x256xbf16, #tpu.memory_space<vmem>>, vector<16x256xbf16>
    %c2_146 = arith.constant 2 : index
    %c0_147 = arith.constant 0 : index
    %c0_148 = arith.constant 0 : index
    %162 = vector.load %arg10[%c2_146, %c0_147, %c0_148] : memref<8x256x128xbf16, #tpu.memory_space<vmem>>, vector<1x256x128xbf16>
    %163 = vector.shape_cast %162 : vector<1x256x128xbf16> to vector<256x128xbf16>
    %cst_149 = arith.constant dense<0.000000e+00> : vector<16x128xf32>
    %164 = tpu.matmul %161, %163, %cst_149 {dimension_numbers = #tpu.dot_dimension_numbers<[1], [0], [0], [1], [0, 0, 1, 1], [], []>} : vector<16x256xbf16>, vector<256x128xbf16>, vector<16x128xf32> -> vector<16x128xf32>
    %165 = arith.addf %156, %164 : vector<16x128xf32>
    %c2_150 = arith.constant 2 : index
    %c0_151 = arith.constant 0 : index
    %166 = vector.load %arg15[%c2_150, %c0_151] : memref<24x256xbf16, #tpu.memory_space<vmem>>, vector<16x256xbf16>
    %c3_152 = arith.constant 3 : index
    %c0_153 = arith.constant 0 : index
    %c0_154 = arith.constant 0 : index
    %167 = vector.load %arg10[%c3_152, %c0_153, %c0_154] : memref<8x256x128xbf16, #tpu.memory_space<vmem>>, vector<1x256x128xbf16>
    %168 = vector.shape_cast %167 : vector<1x256x128xbf16> to vector<256x128xbf16>
    %cst_155 = arith.constant dense<0.000000e+00> : vector<16x128xf32>
    %169 = tpu.matmul %166, %168, %cst_155 {dimension_numbers = #tpu.dot_dimension_numbers<[1], [0], [0], [1], [0, 0, 1, 1], [], []>} : vector<16x256xbf16>, vector<256x128xbf16>, vector<16x128xf32> -> vector<16x128xf32>
    %170 = arith.addf %160, %169 : vector<16x128xf32>
    %c4_156 = arith.constant 4 : index
    %c0_157 = arith.constant 0 : index
    %171 = vector.load %arg14[%c4_156, %c0_157] : memref<48x256xbf16, #tpu.memory_space<vmem>>, vector<16x256xbf16>
    %c4_158 = arith.constant 4 : index
    %c0_159 = arith.constant 0 : index
    %c0_160 = arith.constant 0 : index
    %172 = vector.load %arg10[%c4_158, %c0_159, %c0_160] : memref<8x256x128xbf16, #tpu.memory_space<vmem>>, vector<1x256x128xbf16>
    %173 = vector.shape_cast %172 : vector<1x256x128xbf16> to vector<256x128xbf16>
    %cst_161 = arith.constant dense<0.000000e+00> : vector<16x128xf32>
    %174 = tpu.matmul %171, %173, %cst_161 {dimension_numbers = #tpu.dot_dimension_numbers<[1], [0], [0], [1], [0, 0, 1, 1], [], []>} : vector<16x256xbf16>, vector<256x128xbf16>, vector<16x128xf32> -> vector<16x128xf32>
    %175 = arith.addf %165, %174 : vector<16x128xf32>
    %c4_162 = arith.constant 4 : index
    %c0_163 = arith.constant 0 : index
    %176 = vector.load %arg15[%c4_162, %c0_163] : memref<24x256xbf16, #tpu.memory_space<vmem>>, vector<16x256xbf16>
    %c5_164 = arith.constant 5 : index
    %c0_165 = arith.constant 0 : index
    %c0_166 = arith.constant 0 : index
    %177 = vector.load %arg10[%c5_164, %c0_165, %c0_166] : memref<8x256x128xbf16, #tpu.memory_space<vmem>>, vector<1x256x128xbf16>
    %178 = vector.shape_cast %177 : vector<1x256x128xbf16> to vector<256x128xbf16>
    %cst_167 = arith.constant dense<0.000000e+00> : vector<16x128xf32>
    %179 = tpu.matmul %176, %178, %cst_167 {dimension_numbers = #tpu.dot_dimension_numbers<[1], [0], [0], [1], [0, 0, 1, 1], [], []>} : vector<16x256xbf16>, vector<256x128xbf16>, vector<16x128xf32> -> vector<16x128xf32>
    %180 = arith.addf %170, %179 : vector<16x128xf32>
    %c6_168 = arith.constant 6 : index
    %c0_169 = arith.constant 0 : index
    %181 = vector.load %arg14[%c6_168, %c0_169] : memref<48x256xbf16, #tpu.memory_space<vmem>>, vector<16x256xbf16>
    %c6_170 = arith.constant 6 : index
    %c0_171 = arith.constant 0 : index
    %c0_172 = arith.constant 0 : index
    %182 = vector.load %arg10[%c6_170, %c0_171, %c0_172] : memref<8x256x128xbf16, #tpu.memory_space<vmem>>, vector<1x256x128xbf16>
    %183 = vector.shape_cast %182 : vector<1x256x128xbf16> to vector<256x128xbf16>
    %cst_173 = arith.constant dense<0.000000e+00> : vector<16x128xf32>
    %184 = tpu.matmul %181, %183, %cst_173 {dimension_numbers = #tpu.dot_dimension_numbers<[1], [0], [0], [1], [0, 0, 1, 1], [], []>} : vector<16x256xbf16>, vector<256x128xbf16>, vector<16x128xf32> -> vector<16x128xf32>
    %185 = arith.addf %175, %184 : vector<16x128xf32>
    %c6_174 = arith.constant 6 : index
    %c0_175 = arith.constant 0 : index
    %186 = vector.load %arg15[%c6_174, %c0_175] : memref<24x256xbf16, #tpu.memory_space<vmem>>, vector<16x256xbf16>
    %c7_176 = arith.constant 7 : index
    %c0_177 = arith.constant 0 : index
    %c0_178 = arith.constant 0 : index
    %187 = vector.load %arg10[%c7_176, %c0_177, %c0_178] : memref<8x256x128xbf16, #tpu.memory_space<vmem>>, vector<1x256x128xbf16>
    %188 = vector.shape_cast %187 : vector<1x256x128xbf16> to vector<256x128xbf16>
    %cst_179 = arith.constant dense<0.000000e+00> : vector<16x128xf32>
    %189 = tpu.matmul %186, %188, %cst_179 {dimension_numbers = #tpu.dot_dimension_numbers<[1], [0], [0], [1], [0, 0, 1, 1], [], []>} : vector<16x256xbf16>, vector<256x128xbf16>, vector<16x128xf32> -> vector<16x128xf32>
    %190 = arith.addf %180, %189 : vector<16x128xf32>
    %191 = arith.addf %185, %190 : vector<16x128xf32>
    %c0_180 = arith.constant 0 : index
    %c0_181 = arith.constant 0 : index
    %192 = vector.load %arg11[%c0_180, %c0_181] : memref<1x128xf32, #tpu.memory_space<vmem>>, vector<1x128xf32>
    %193 = vector.broadcast %192 : vector<1x128xf32> to vector<16x128xf32>
    %194 = arith.addf %191, %193 : vector<16x128xf32>
    %c0_182 = arith.constant 0 : index
    %c0_183 = arith.constant 0 : index
    %c0_184 = arith.constant 0 : index
    %195 = vector.load %arg12[%c0_182, %c0_183, %c0_184] : memref<1x16x128xf32, #tpu.memory_space<vmem>>, vector<1x16x128xf32>
    %196 = vector.shape_cast %195 : vector<1x16x128xf32> to vector<16x128xf32>
    %197 = arith.addf %196, %194 : vector<16x128xf32>
    %c0_185 = arith.constant 0 : index
    %c0_186 = arith.constant 0 : index
    %c0_187 = arith.constant 0 : index
    %198 = vector.load %arg12[%c0_185, %c0_186, %c0_187] : memref<1x16x128xf32, #tpu.memory_space<vmem>>, vector<1x16x128xf32>
    %199 = vector.shape_cast %198 : vector<1x16x128xf32> to vector<16x128xf32>
    %200 = vector.shape_cast %197 : vector<16x128xf32> to vector<1x16x128xf32>
    tpu.vector_store %arg12[%c0_185, %c0_186, %c0_187], %200 {strides = array<i32>} : memref<1x16x128xf32, #tpu.memory_space<vmem>>, vector<1x16x128xf32>,
    return
  }
  func.func @transform_0(%arg0: i32) -> (i32, i32, i32) {
    %c0_i32 = arith.constant 0 : i32
    %c0_i32_0 = arith.constant 0 : i32
    %c0_i32_1 = arith.constant 0 : i32
    return %arg0, %c0_i32, %c0_i32_0 : i32, i32, i32
  }
  func.func @transform_1(%arg0: i32) -> (i32, i32) {
    %c0_i32 = arith.constant 0 : i32
    %c0_i32_0 = arith.constant 0 : i32
    %c0_i32_1 = arith.constant 0 : i32
    return %c0_i32, %c0_i32_0 : i32, i32
  }
  func.func @transform_2(%arg0: i32) -> (i32, i32) {
    %c0_i32 = arith.constant 0 : i32
    %c0_i32_0 = arith.constant 0 : i32
    %c0_i32_1 = arith.constant 0 : i32
    return %c0_i32, %c0_i32_0 : i32, i32
  }
  func.func @transform_3(%arg0: i32) -> (i32, i32) {
    %c0_i32 = arith.constant 0 : i32
    %c0_i32_0 = arith.constant 0 : i32
    %c0_i32_1 = arith.constant 0 : i32
    return %c0_i32, %c0_i32_0 : i32, i32
  }
  func.func @transform_4(%arg0: i32) -> (i32, i32, i32) {
    %c0_i32 = arith.constant 0 : i32
    %c0_i32_0 = arith.constant 0 : i32
    %c0_i32_1 = arith.constant 0 : i32
    %c0_i32_2 = arith.constant 0 : i32
    return %c0_i32, %c0_i32_0, %c0_i32_1 : i32, i32, i32
  }
  func.func @transform_5(%arg0: i32) -> (i32, i32) {
    %c0_i32 = arith.constant 0 : i32
    %c0_i32_0 = arith.constant 0 : i32
    %c0_i32_1 = arith.constant 0 : i32
    return %c0_i32, %c0_i32_0 : i32, i32
  }
  func.func @transform_6(%arg0: i32) -> (i32, i32) {
    %c0_i32 = arith.constant 0 : i32
    %c0_i32_0 = arith.constant 0 : i32
    %c0_i32_1 = arith.constant 0 : i32
    return %c0_i32, %c0_i32_0 : i32, i32
  }
  func.func @transform_7(%arg0: i32) -> (i32, i32) {
    %c0_i32 = arith.constant 0 : i32
    %c0_i32_0 = arith.constant 0 : i32
    %c0_i32_1 = arith.constant 0 : i32
    return %c0_i32, %c0_i32_0 : i32, i32
  }
  func.func @transform_8(%arg0: i32) -> (i32, i32) {
    %c0_i32 = arith.constant 0 : i32
    %c0_i32_0 = arith.constant 0 : i32
    %c0_i32_1 = arith.constant 0 : i32
    return %c0_i32, %c0_i32_0 : i32, i32
  }
  func.func @transform_9(%arg0: i32) -> (i32, i32, i32) {
    %c0_i32 = arith.constant 0 : i32
    %c0_i32_0 = arith.constant 0 : i32
    %c0_i32_1 = arith.constant 0 : i32
    %c0_i32_2 = arith.constant 0 : i32
    return %c0_i32, %c0_i32_0, %c0_i32_1 : i32, i32, i32
  }
  func.func @transform_10(%arg0: i32) -> (i32, i32) {
    %c0_i32 = arith.constant 0 : i32
    %c0_i32_0 = arith.constant 0 : i32
    %c0_i32_1 = arith.constant 0 : i32
    return %c0_i32, %c0_i32_0 : i32, i32
  }
  func.func @transform_11(%arg0: i32) -> (i32, i32, i32) {
    %c0_i32 = arith.constant 0 : i32
    %c0_i32_0 = arith.constant 0 : i32
    %c0_i32_1 = arith.constant 0 : i32
    return %arg0, %c0_i32, %c0_i32_0 : i32, i32, i32
  }
}

</mosaic_0001>

<llo_original>
// kernel: tpu_custom_call.1
$region0: #{tpu_custom_call.1}
  #allocation0 [shape = 'u32[]', space=smem, size = 0x4, offset = 0x4, fixed_abs, tag = 'smem constant byte address 0x4 - core index']
  #allocation1 [shape = 'u32[72,128]{1,0:T(1,128)}', space=vmem, size = 0x9000, scoped, tag = 'internal scratch']
  #allocation2 [shape = 'f32[48,128]{1,0:T(8,128)}', space=vmem, size = 0x6000, scoped, tag = 'scratch operand']
  #allocation3 [shape = 'bf16[48,256]{1,0:T(8,128)(2,1)}', space=vmem, size = 0x6000, scoped, tag = 'scratch operand']
  #allocation4 [shape = 'bf16[24,256]{1,0:T(8,128)(2,1)}', space=vmem, size = 0x3000, scoped, tag = 'scratch operand']
  #allocation5 [shape = 'f32[24,128]{1,0:T(8,128)}', space=vmem, size = 0x3000, scoped, tag = 'scratch operand']
  %s0 = inlined_call_operand.hbm [shape: f32[1,32,128], index: 0, kind: input, shape index: {}]
  %s1 = inlined_call_operand.hbm [shape: f32[128,128], index: 1, kind: input, shape index: {}]
  %s2 = inlined_call_operand.vmem [shape: f32[1,128], index: 2, kind: input, shape index: {}]
  %s3 = inlined_call_operand.vmem [shape: f32[1,128], index: 3, kind: input, shape index: {}]
  %s4 = inlined_call_operand.hbm [shape: bf16[7,256,128], index: 4, kind: input, shape index: {}]
  %s5 = inlined_call_operand.hbm [shape: bf16[128,128], index: 5, kind: input, shape index: {}]
  %s6 = inlined_call_operand.vmem [shape: f32[1,128], index: 6, kind: input, shape index: {}]
  %s7 = inlined_call_operand.vmem [shape: f32[1,128], index: 7, kind: input, shape index: {}]
  %s8 = inlined_call_operand.vmem [shape: f32[1,128], index: 8, kind: input, shape index: {}]
  %s9 = inlined_call_operand.hbm [shape: bf16[8,256,128], index: 9, kind: input, shape index: {}]
  %s10 = inlined_call_operand.vmem [shape: f32[1,128], index: 10, kind: input, shape index: {}]
  %s11 = inlined_call_operand.hbm [shape: f32[1,16,128], index: 11, kind: output, shape index: {}]
  %s12 = sld [smem:[#allocation0]]
  $region74: #{tpu_custom_call.1} parent=0
    _
  %s14 = ssub.s32 1, %s12
  %s15 = scalar_select 0, %s14, %s12
  $region1: #{tpu_custom_call.1} parent=0
    #allocation6 [shape = 'u8[16384]{0}', space=vmem, size = 0x4000, scoped, tag = 'input window, operand 0, single buffered']
    #allocation7 [shape = 's32[1]{0}', space=sflag, size = 0x4, scoped, tag = 'scoped memory for tpu_custom_call.1']
    #allocation8 [shape = 's32[1]{0}', space=sflag, size = 0x4, scoped, tag = 'scoped memory for tpu_custom_call.1']
    #allocation9 [shape = 'u8[65536]{0}', space=vmem, size = 0x10000, scoped, tag = 'input window, operand 1, single buffered']
    #allocation10 [shape = 's32[1]{0}', space=sflag, size = 0x4, scoped, tag = 'scoped memory for tpu_custom_call.1']
    #allocation11 [shape = 'u8[458752]{0}', space=vmem, size = 0x70000, scoped, tag = 'input window, operand 4, single buffered']
    #allocation12 [shape = 'u8[32768]{0}', space=vmem, size = 0x8000, scoped, tag = 'input window, operand 5, single buffered']
    #allocation13 [shape = 's32[1]{0}', space=sflag, size = 0x4, scoped, tag = 'scoped memory for tpu_custom_call.1']
    #allocation14 [shape = 'u8[524288]{0}', space=vmem, size = 0x80000, scoped, tag = 'input window, operand 9, single buffered']
    #allocation15 [shape = 'u8[8192]{0}', space=vmem, size = 0x2000, scoped, tag = 'output window, operand 0, single buffered']
    %16 = vsyncpa [#allocation7], 0
    %17 = vsyncpa [#allocation10], 0
    %18 = vsyncpa [#allocation13], 0
    %19 = vsyncpa [#allocation8], 0
    // Predicated region
    $region2: #{tpu_custom_call.1} parent=1 // pred_check
      _
    $region3: #{tpu_custom_call.1} parent=1 // pred_check_branch
      %21 = sbr.rel (0) target = $region5
    $region4: #{tpu_custom_call.1} parent=1 // pred_region
      %23 = vsyncadd [#allocation7], 0
      %s24 = sshll.u32 %s0, 4
      %s25 = int_to_ptr.hbm [resolvable:$true] %s24
      %s26 = sshll.u32 [#allocation6], 4
      %s27 = int_to_ptr.vmem [resolvable:$true] %s26
      %32 = dma.hbm_to_vmem [thread:$0]  %s25, 512, %s27, [#allocation7], 128, 128, 8
    $region5: #{tpu_custom_call.1} parent=1 // pred_fallthru
      _
    // Predicated region
    $region6: #{tpu_custom_call.1} parent=1 // pred_check
      _
    $region7: #{tpu_custom_call.1} parent=1 // pred_check_branch
      %34 = sbr.rel (0) target = $region9
    $region8: #{tpu_custom_call.1} parent=1 // pred_region
      %36 = vsyncadd [#allocation10], 0
      %s37 = sshll.u32 %s1, 4
      %s38 = int_to_ptr.hbm [resolvable:$true] %s37
      %s39 = sshll.u32 [#allocation9], 4
      %s40 = int_to_ptr.vmem [resolvable:$true] %s39
      %45 = dma.hbm_to_vmem [thread:$0]  %s38, 2048, %s40, [#allocation10], 128, 128, 8
    $region9: #{tpu_custom_call.1} parent=1 // pred_fallthru
      _
    // Predicated region
    $region10: #{tpu_custom_call.1} parent=1 // pred_check
      _
    $region11: #{tpu_custom_call.1} parent=1 // pred_check_branch
      %47 = sbr.rel (0) target = $region13
    $region12: #{tpu_custom_call.1} parent=1 // pred_region
      _
    $region13: #{tpu_custom_call.1} parent=1 // pred_fallthru
      _
    // Predicated region
    $region14: #{tpu_custom_call.1} parent=1 // pred_check
      _
    $region15: #{tpu_custom_call.1} parent=1 // pred_check_branch
      %49 = sbr.rel (0) target = $region17
    $region16: #{tpu_custom_call.1} parent=1 // pred_region
      _
    $region17: #{tpu_custom_call.1} parent=1 // pred_fallthru
      _
    // Predicated region
    $region18: #{tpu_custom_call.1} parent=1 // pred_check
      _
    $region19: #{tpu_custom_call.1} parent=1 // pred_check_branch
      %51 = sbr.rel (0) target = $region21
    $region20: #{tpu_custom_call.1} parent=1 // pred_region
      %53 = vsyncadd [#allocation10], 0
      %s54 = sshll.u32 %s4, 4
      %s55 = int_to_ptr.hbm [resolvable:$true] %s54
      %s56 = sshll.u32 [#allocation11], 4
      %s57 = int_to_ptr.vmem [resolvable:$true] %s56
      %62 = dma.hbm_to_vmem [thread:$0]  %s55, 14336, %s57, [#allocation10], 64, 64, 4
    $region21: #{tpu_custom_call.1} parent=1 // pred_fallthru
      _
    // Predicated region
    $region22: #{tpu_custom_call.1} parent=1 // pred_check
      _
    $region23: #{tpu_custom_call.1} parent=1 // pred_check_branch
      %64 = sbr.rel (0) target = $region25
    $region24: #{tpu_custom_call.1} parent=1 // pred_region
      %66 = vsyncadd [#allocation13], 0
      %s67 = sshll.u32 %s5, 4
      %s68 = int_to_ptr.hbm [resolvable:$true] %s67
      %s69 = sshll.u32 [#allocation12], 4
      %s70 = int_to_ptr.vmem [resolvable:$true] %s69
      %75 = dma.hbm_to_vmem [thread:$0]  %s68, 1024, %s70, [#allocation13], 64, 64, 4
    $region25: #{tpu_custom_call.1} parent=1 // pred_fallthru
      _
    // Predicated region
    $region26: #{tpu_custom_call.1} parent=1 // pred_check
      _
    $region27: #{tpu_custom_call.1} parent=1 // pred_check_branch
      %77 = sbr.rel (0) target = $region29
    $region28: #{tpu_custom_call.1} parent=1 // pred_region
      _
    $region29: #{tpu_custom_call.1} parent=1 // pred_fallthru
      _
    // Predicated region
    $region30: #{tpu_custom_call.1} parent=1 // pred_check
      _
    $region31: #{tpu_custom_call.1} parent=1 // pred_check_branch
      %79 = sbr.rel (0) target = $region33
    $region32: #{tpu_custom_call.1} parent=1 // pred_region
      _
    $region33: #{tpu_custom_call.1} parent=1 // pred_fallthru
      _
    // Predicated region
    $region34: #{tpu_custom_call.1} parent=1 // pred_check
      _
    $region35: #{tpu_custom_call.1} parent=1 // pred_check_branch
      %81 = sbr.rel (0) target = $region37
    $region36: #{tpu_custom_call.1} parent=1 // pred_region
      _
    $region37: #{tpu_custom_call.1} parent=1 // pred_fallthru
      _
    // Predicated region
    $region38: #{tpu_custom_call.1} parent=1 // pred_check
      _
    $region39: #{tpu_custom_call.1} parent=1 // pred_check_branch
      %83 = sbr.rel (0) target = $region41
    $region40: #{tpu_custom_call.1} parent=1 // pred_region
      %85 = vsyncadd [#allocation13], 0
      %s86 = sshll.u32 %s9, 4
      %s87 = int_to_ptr.hbm [resolvable:$true] %s86
      %s88 = sshll.u32 [#allocation14], 4
      %s89 = int_to_ptr.vmem [resolvable:$true] %s88
      %94 = dma.hbm_to_vmem [thread:$0]  %s87, 16384, %s89, [#allocation13], 64, 64, 4
    $region41: #{tpu_custom_call.1} parent=1 // pred_fallthru
      _
    // Predicated region
    $region42: #{tpu_custom_call.1} parent=1 // pred_check
      _
    $region43: #{tpu_custom_call.1} parent=1 // pred_check_branch
      %96 = sbr.rel (0) target = $region45
    $region44: #{tpu_custom_call.1} parent=1 // pred_region
      _
    $region45: #{tpu_custom_call.1} parent=1 // pred_fallthru
      _
    // Predicated region
    $region46: #{tpu_custom_call.1} parent=1 // pred_check
      _
    $region47: #{tpu_custom_call.1} parent=1 // pred_check_branch
      %98 = sbr.rel (0) target = $region49
    $region48: #{tpu_custom_call.1} parent=1 // pred_region
      %100 = dma.done [#allocation7], 512
    $region49: #{tpu_custom_call.1} parent=1 // pred_fallthru
      _
    // Predicated region
    $region50: #{tpu_custom_call.1} parent=1 // pred_check
      _
    $region51: #{tpu_custom_call.1} parent=1 // pred_check_branch
      %102 = sbr.rel (0) target = $region53
    $region52: #{tpu_custom_call.1} parent=1 // pred_region
      %104 = dma.done [#allocation10], 2048
    $region53: #{tpu_custom_call.1} parent=1 // pred_fallthru
      _
    // Predicated region
    $region54: #{tpu_custom_call.1} parent=1 // pred_check
      _
    $region55: #{tpu_custom_call.1} parent=1 // pred_check_branch
      %106 = sbr.rel (0) target = $region57
    $region56: #{tpu_custom_call.1} parent=1 // pred_region
      %108 = dma.done [#allocation10], 14336
    $region57: #{tpu_custom_call.1} parent=1 // pred_fallthru
      _
    // Predicated region
    $region58: #{tpu_custom_call.1} parent=1 // pred_check
      _
    $region59: #{tpu_custom_call.1} parent=1 // pred_check_branch
      %110 = sbr.rel (0) target = $region61
    $region60: #{tpu_custom_call.1} parent=1 // pred_region
      %112 = dma.done [#allocation13], 1024
    $region61: #{tpu_custom_call.1} parent=1 // pred_fallthru
      _
    // Predicated region
    $region62: #{tpu_custom_call.1} parent=1 // pred_check
      _
    $region63: #{tpu_custom_call.1} parent=1 // pred_check_branch
      %114 = sbr.rel (0) target = $region65
    $region64: #{tpu_custom_call.1} parent=1 // pred_region
      %116 = dma.done [#allocation13], 16384
    $region65: #{tpu_custom_call.1} parent=1 // pred_fallthru
      _
    %v117 = vld [vmem:[#allocation9] sm:$0xff]
    %v118 = vld [vmem:[#allocation9 + $0x8] sm:$0xff]
    %v119 = vld [vmem:[#allocation9 + $0x10] sm:$0xff]
    %v120 = vld [vmem:[#allocation9 + $0x18] sm:$0xff]
    %v121 = vld [vmem:[#allocation9 + $0x20] sm:$0xff]
    %v122 = vld [vmem:[#allocation9 + $0x28] sm:$0xff]
    %v123 = vld [vmem:[#allocation9 + $0x30] sm:$0xff]
    %v124 = vld [vmem:[#allocation9 + $0x38] sm:$0xff]
    %v125 = vld [vmem:[#allocation9 + $0x40] sm:$0xff]
    %v126 = vld [vmem:[#allocation9 + $0x48] sm:$0xff]
    %v127 = vld [vmem:[#allocation9 + $0x50] sm:$0xff]
    %v128 = vld [vmem:[#allocation9 + $0x58] sm:$0xff]
    %v129 = vld [vmem:[#allocation9 + $0x60] sm:$0xff]
    %v130 = vld [vmem:[#allocation9 + $0x68] sm:$0xff]
    %v131 = vld [vmem:[#allocation9 + $0x70] sm:$0xff]
    %v132 = vld [vmem:[#allocation9 + $0x78] sm:$0xff]
    %v133 = vld [vmem:[#allocation6] sm:$0xff]
    %v134 = vld [vmem:[#allocation6 + $0x8] sm:$0xff]
    %v135 = vld [vmem:[#allocation6 + $0x10] sm:$0xff]
    %v136 = vld [vmem:[#allocation6 + $0x18] sm:$0xff]
    %137 = vst [vmem:[#allocation2] sm:$0x7f] -inf
    %138 = vst [vmem:[#allocation2 + $0x7] sm:$0xff] %v133
    %139 = vst [vmem:[#allocation2 + $0xf] sm:$0xff] %v134
    %140 = vst [vmem:[#allocation2 + $0x17] sm:$0xff] %v135
    %141 = vst [vmem:[#allocation2 + $0x1f] sm:$0xff] %v136
    %142 = vst [vmem:[#allocation2 + $0x27] sm:$0xff] -inf
    %143 = vst [vmem:[#allocation2 + $0x2f] sm:$0x1] -inf
    %v144 = vld [vmem:[#allocation2] ss:$2 sm:$0xff]
    %s145 = scalar_lea.vmem [#allocation2], 16
    %v146 = vld [vmem:[%s145] ss:$2 sm:$0xff]
    %s147 = scalar_lea.vmem [#allocation2], 32
    %v148 = vld [vmem:[%s147] ss:$2 sm:$0xff]
    %s149 = scalar_lea.vmem [#allocation2], 1
    %v150 = vld [vmem:[%s149] ss:$2 sm:$0xff]
    %s151 = scalar_lea.vmem [#allocation2], 17
    %v152 = vld [vmem:[%s151] ss:$2 sm:$0xff]
    %s153 = scalar_lea.vmem [#allocation2], 33
    %v154 = vld [vmem:[%s153] ss:$2 sm:$0xff]
    %v155 = vmax.f32 %v144, %v150
    %v156 = vmax.f32 %v146, %v152
    %v157 = vmax.f32 %v148, %v154
    %158 = vst [vmem:[#allocation5] sm:$0xff] %v155
    %159 = vst [vmem:[#allocation5 + $0x8] sm:$0xff] %v156
    %160 = vst [vmem:[#allocation5 + $0x10] sm:$0xff] %v157
    %v161 = vld [vmem:[#allocation5] sm:$0xff]
    %v162 = vld [vmem:[#allocation5 + $0x8] sm:$0xff]
    %v163 = vld [vmem:[#allocation5 + $0x1] sm:$0xff]
    %v164 = vld [vmem:[#allocation5 + $0x9] sm:$0xff]
    %v165 = vmax.f32 %v161, %v163
    %v166 = vmax.f32 %v162, %v164
    %v167 = vld [vmem:[#allocation5 + $0x2] sm:$0xff]
    %v168 = vld [vmem:[#allocation5 + $0xa] sm:$0xff]
    %v169 = vmax.f32 %v165, %v167
    %v170 = vmax.f32 %v166, %v168
    %v171 = vld [vmem:[#allocation5 + $0x3] sm:$0xff]
    %v172 = vld [vmem:[#allocation5 + $0xb] sm:$0xff]
    %v173 = vmax.f32 %v169, %v171
    %v174 = vmax.f32 %v170, %v172
    %v175 = vld [vmem:[#allocation5 + $0x4] sm:$0xff]
    %v176 = vld [vmem:[#allocation5 + $0xc] sm:$0xff]
    %v177 = vmax.f32 %v173, %v175
    %v178 = vmax.f32 %v174, %v176
    %v179 = vld [vmem:[#allocation5 + $0x5] sm:$0xff]
    %v180 = vld [vmem:[#allocation5 + $0xd] sm:$0xff]
    %v181 = vmax.f32 %v177, %v179
    %v182 = vmax.f32 %v178, %v180
    %v183 = vld [vmem:[#allocation5 + $0x6] sm:$0xff]
    %v184 = vld [vmem:[#allocation5 + $0xe] sm:$0xff]
    %v185 = vmax.f32 %v181, %v183
    %v186 = vmax.f32 %v182, %v184
    %v187 = vld [vmem:[#allocation5 + $0x7] sm:$0xff]
    %v188 = vld [vmem:[#allocation5 + $0xf] sm:$0xff]
    %v189 = vmax.f32 %v185, %v187
    %v190 = vmax.f32 %v186, %v188
    %191 = vst [vmem:[#allocation15] sm:$0xff] %v189
    %192 = vst [vmem:[#allocation15 + $0x8] sm:$0xff] %v190
    %v193 = vld [vmem:[%s2] sm:$0x1]
    %v194 = vld [vmem:[%s3] sm:$0x1]
    %v195 = vadd.f32 %v133, %v134
    %v196 = vadd.f32 %v195, %v135
    %v197 = vadd.f32 %v196, %v136
    %v198 = vrot.slane %v197, 4
    %v199 = vadd.f32 %v197, %v198
    %v200 = vrot.slane %v199, 2
    %v201 = vadd.f32 %v199, %v200
    %v202 = vrot.slane %v201, 1
    %v203 = vadd.f32 %v201, %v202
    %v204 = vmul.f32 %v133, %v133
    %v205 = vmul.f32 %v134, %v134
    %v206 = vmul.f32 %v135, %v135
    %v207 = vmul.f32 %v136, %v136
    %v208 = vadd.f32 %v204, %v205
    %v209 = vadd.f32 %v208, %v206
    %v210 = vadd.f32 %v209, %v207
    %v211 = vrot.slane %v210, 4
    %v212 = vadd.f32 %v210, %v211
    %v213 = vrot.slane %v212, 2
    %v214 = vadd.f32 %v212, %v213
    %v215 = vrot.slane %v214, 1
    %v216 = vadd.f32 %v214, %v215
    %vm217 = vcmask 1040384
    %v218 = vsel %vm217, %v203, %v216
    %219 = vmatpush.msra.mxu0 %v132
    %220 = vmatpush.msra.mxu0 %v131
    %221 = vmatpush.msra.mxu0 %v130
    %222 = vmatpush.msra.mxu0 %v129
    %223 = vmatpush.msra.mxu0 %v128
    %224 = vmatpush.msra.mxu0 %v127
    %225 = vmatpush.msra.mxu0 %v126
    %226 = vmatpush.msra.mxu0 %v125
    %227 = vmatpush.msra.mxu0 %v124
    %228 = vmatpush.msra.mxu0 %v123
    %229 = vmatpush.msra.mxu0 %v122
    %230 = vmatpush.msra.mxu0 %v121
    %231 = vmatpush.msra.mxu0 %v120
    %232 = vmatpush.msra.mxu0 %v119
    %233 = vmatpush.msra.mxu0 %v118
    %234 = vmatpush.msra.mxu0 %v117
    %235 = vmatmul.f32.gmra.mxu0 %v218
    %v236 = vpop.f32.mrf.mxu0
    %v237 = vadd.f32 0.0, %v236
    %238 = vdwg.mxu0
    %v239 = vmul.f32 %v237, 0.001953125
    %v240 = vmul.f32 %v239, %v239
    %v242 = vrot.slane %v240, 7
    %v244 = vsub.f32 %v239, %v242
    %v245 = vadd.f32 %v244, 1e-05
    %v246 = vrsqrt.pop %v245
    %v247 = vmul.f32 %v246, %v245
    %v248 = vmul.f32 %v247, %v246
    %v249 = vmul.f32 0.5, %v248
    %v250 = vsub.f32 1.5, %v249
    %v251 = vmul.f32 %v246, %v250
    %vm252 = vweird.f32 %v245
    %vm253 = vweird.f32 %v246
    %vm254 = vmor %vm252, %vm253
    %v255 = vsel %vm254, %v246, %v251
    %v257 = vperm.slane %v193, 0
    %v259 = vmul.f32 %v255, %v257
    %v261 = vrot.slane %v259, 1
    %v263 = vmul.f32 %v239, %v261
    %v264 = vsub.f32 %v194, %v263
    %v265 = vperm.slane %v259, 1
    %v266 = vmul.f32 %v133, %v265
    %v267 = vmul.f32 %v134, %v265
    %v268 = vmul.f32 %v135, %v265
    %v269 = vmul.f32 %v136, %v265
    %v271 = vperm.slane %v264, 0
    %v273 = vadd.f32 %v266, %v271
    %v274 = vadd.f32 %v267, %v271
    %v275 = vadd.f32 %v268, %v271
    %v276 = vadd.f32 %v269, %v271
    %v277 = vmax.f32 %v273, 0.0
    %v278 = vmax.f32 %v274, 0.0
    %v279 = vmax.f32 %v275, 0.0
    %v280 = vmax.f32 %v276, 0.0
    %281 = vst [vmem:[#allocation2] sm:$0x7f] 0.0
    %282 = vst [vmem:[#allocation2 + $0x7] sm:$0xff] %v277
    %283 = vst [vmem:[#allocation2 + $0xf] sm:$0xff] %v278
    %284 = vst [vmem:[#allocation2 + $0x17] sm:$0xff] %v279
    %285 = vst [vmem:[#allocation2 + $0x1f] sm:$0xff] %v280
    %286 = vst [vmem:[#allocation2 + $0x27] sm:$0xff] 0.0
    %287 = vst [vmem:[#allocation2 + $0x2f] sm:$0x1] 0.0
    %v288 = vld [vmem:[#allocation2] sm:$0xff]
    %v289 = vld [vmem:[#allocation2 + $0x8] sm:$0xff]
    %v290 = vld [vmem:[#allocation2 + $0x10] sm:$0xff]
    %v291 = vld [vmem:[#allocation2 + $0x18] sm:$0xff]
    %v292 = vld [vmem:[#allocation2 + $0x20] sm:$0xff]
    %v293 = vld [vmem:[#allocation2 + $0x28] sm:$0xff]
    %v294 = vpack.c.bf16 %v288, %v288
    %v295 = vpack.c.bf16 %v289, %v289
    %v296 = vpack.c.bf16 %v290, %v290
    %v297 = vpack.c.bf16 %v291, %v291
    %v298 = vpack.c.bf16 %v292, %v292
    %v299 = vpack.c.bf16 %v293, %v293
    %300 = vst [vmem:[#allocation3] sm:$0xf] %v294
    %301 = vst [vmem:[#allocation3 + $0x8] sm:$0xf] %v295
    %302 = vst [vmem:[#allocation3 + $0x10] sm:$0xf] %v296
    %303 = vst [vmem:[#allocation3 + $0x18] sm:$0xf] %v297
    %304 = vst [vmem:[#allocation3 + $0x20] sm:$0xf] %v298
    %305 = vst [vmem:[#allocation3 + $0x28] sm:$0xf] %v299
    %v306 = vld [vmem:[#allocation2 + $0x1] sm:$0xff]
    %v307 = vld [vmem:[#allocation2 + $0x9] sm:$0xff]
    %v308 = vld [vmem:[#allocation2 + $0x11] sm:$0xff]
    %v309 = vld [vmem:[#allocation2 + $0x19] sm:$0xff]
    %v310 = vld [vmem:[#allocation2 + $0x21] sm:$0xff]
    %v311 = vld [vmem:[#allocation2 + $0x29] sm:$0x7f]
    %v312 = vpack.c.bf16 %v306, %v306
    %v313 = vpack.c.bf16 %v307, %v307
    %v314 = vpack.c.bf16 %v308, %v308
    %v315 = vpack.c.bf16 %v309, %v309
    %v316 = vpack.c.bf16 %v310, %v310
    %v317 = vpack.c.bf16 %v311, %v311
    %318 = vst [vmem:[#allocation3 + $0x4] sm:$0xf] %v312
    %319 = vst [vmem:[#allocation3 + $0xc] sm:$0xf] %v313
    %320 = vst [vmem:[#allocation3 + $0x14] sm:$0xf] %v314
    %321 = vst [vmem:[#allocation3 + $0x1c] sm:$0xf] %v315
    %322 = vst [vmem:[#allocation3 + $0x24] sm:$0xf] %v316
    %vm323 = vcmask 1043456
    %vm324 = vsmask.f32 3328
    %vm325 = vmand %vm323, %vm324
    %v326 = vld [vmem:[#allocation3 + $0x2c] sm:$0xf]
    %v327 = vsel %vm325, %v317, %v326
    %328 = vst [vmem:[#allocation3 + $0x2c] sm:$0xf] %v327
    %v329 = vld [vmem:[#allocation3] sm:$0xff]
    %v330 = vld [vmem:[#allocation3 + $0x8] sm:$0xff]
    %v331 = vld [vmem:[#allocation3 + $0x10] sm:$0xff]
    %v332 = vld [vmem:[#allocation3 + $0x18] sm:$0xff]
    %v333 = vld [vmem:[#allocation11] sm:$0xf]
    %v334 = vld [vmem:[#allocation11 + $0x4] sm:$0xf]
    %v335 = vld [vmem:[#allocation11 + $0x8] sm:$0xf]
    %v336 = vld [vmem:[#allocation11 + $0xc] sm:$0xf]
    %v337 = vld [vmem:[#allocation11 + $0x10] sm:$0xf]
    %v338 = vld [vmem:[#allocation11 + $0x14] sm:$0xf]
    %v339 = vld [vmem:[#allocation11 + $0x18] sm:$0xf]
    %v340 = vld [vmem:[#allocation11 + $0x1c] sm:$0xf]
    %v341 = vld [vmem:[#allocation11 + $0x20] sm:$0xf]
    %v342 = vld [vmem:[#allocation11 + $0x24] sm:$0xf]
    %v343 = vld [vmem:[#allocation11 + $0x28] sm:$0xf]
    %v344 = vld [vmem:[#allocation11 + $0x2c] sm:$0xf]
    %v345 = vld [vmem:[#allocation11 + $0x30] sm:$0xf]
    %v346 = vld [vmem:[#allocation11 + $0x34] sm:$0xf]
    %v347 = vld [vmem:[#allocation11 + $0x38] sm:$0xf]
    %v348 = vld [vmem:[#allocation11 + $0x3c] sm:$0xf]
    %v349 = vld [vmem:[#allocation11 + $0x40] sm:$0xf]
    %v350 = vld [vmem:[#allocation11 + $0x44] sm:$0xf]
    %v351 = vld [vmem:[#allocation11 + $0x48] sm:$0xf]
    %v352 = vld [vmem:[#allocation11 + $0x4c] sm:$0xf]
    %v353 = vld [vmem:[#allocation11 + $0x50] sm:$0xf]
    %v354 = vld [vmem:[#allocation11 + $0x54] sm:$0xf]
    %v355 = vld [vmem:[#allocation11 + $0x58] sm:$0xf]
    %v356 = vld [vmem:[#allocation11 + $0x5c] sm:$0xf]
    %v357 = vld [vmem:[#allocation11 + $0x60] sm:$0xf]
    %v358 = vld [vmem:[#allocation11 + $0x64] sm:$0xf]
    %v359 = vld [vmem:[#allocation11 + $0x68] sm:$0xf]
    %v360 = vld [vmem:[#allocation11 + $0x6c] sm:$0xf]
    %v361 = vld [vmem:[#allocation11 + $0x70] sm:$0xf]
    %v362 = vld [vmem:[#allocation11 + $0x74] sm:$0xf]
    %v363 = vld [vmem:[#allocation11 + $0x78] sm:$0xf]
    %v364 = vld [vmem:[#allocation11 + $0x7c] sm:$0xf]
    %v365 = vld [vmem:[#allocation3] sm:$0xee]
    %v366 = vld [vmem:[#allocation3 + $0x20] sm:$0x11]
    %s367 = scalar_lea.vmem [#allocation11], 128
    %v368 = vld [vmem:[%s367] sm:$0xf]
    %v369 = vld [vmem:[%s367 + $0x4] sm:$0xf]
    %v370 = vld [vmem:[%s367 + $0x8] sm:$0xf]
    %v371 = vld [vmem:[%s367 + $0xc] sm:$0xf]
    %v372 = vld [vmem:[%s367 + $0x10] sm:$0xf]
    %v373 = vld [vmem:[%s367 + $0x14] sm:$0xf]
    %v374 = vld [vmem:[%s367 + $0x18] sm:$0xf]
    %v375 = vld [vmem:[%s367 + $0x1c] sm:$0xf]
    %v376 = vld [vmem:[%s367 + $0x20] sm:$0xf]
    %v377 = vld [vmem:[%s367 + $0x24] sm:$0xf]
    %v378 = vld [vmem:[%s367 + $0x28] sm:$0xf]
    %v379 = vld [vmem:[%s367 + $0x2c] sm:$0xf]
    %v380 = vld [vmem:[%s367 + $0x30] sm:$0xf]
    %v381 = vld [vmem:[%s367 + $0x34] sm:$0xf]
    %v382 = vld [vmem:[%s367 + $0x38] sm:$0xf]
    %v383 = vld [vmem:[%s367 + $0x3c] sm:$0xf]
    %v384 = vld [vmem:[%s367 + $0x40] sm:$0xf]
    %v385 = vld [vmem:[%s367 + $0x44] sm:$0xf]
    %v386 = vld [vmem:[%s367 + $0x48] sm:$0xf]
    %v387 = vld [vmem:[%s367 + $0x4c] sm:$0xf]
    %v388 = vld [vmem:[%s367 + $0x50] sm:$0xf]
    %v389 = vld [vmem:[%s367 + $0x54] sm:$0xf]
    %v390 = vld [vmem:[%s367 + $0x58] sm:$0xf]
    %v391 = vld [vmem:[%s367 + $0x5c] sm:$0xf]
    %v392 = vld [vmem:[%s367 + $0x60] sm:$0xf]
    %v393 = vld [vmem:[%s367 + $0x64] sm:$0xf]
    %v394 = vld [vmem:[%s367 + $0x68] sm:$0xf]
    %v395 = vld [vmem:[%s367 + $0x6c] sm:$0xf]
    %v396 = vld [vmem:[%s367 + $0x70] sm:$0xf]
    %v397 = vld [vmem:[%s367 + $0x74] sm:$0xf]
    %v398 = vld [vmem:[%s367 + $0x78] sm:$0xf]
    %v399 = vld [vmem:[%s367 + $0x7c] sm:$0xf]
    %v400 = vld [vmem:[#allocation3] sm:$0xcc]
    %v401 = vld [vmem:[#allocation3 + $0x20] sm:$0x33]
    %s402 = scalar_lea.vmem [#allocation11], 256
    %v403 = vld [vmem:[%s402] sm:$0xf]
    %v404 = vld [vmem:[%s402 + $0x4] sm:$0xf]
    %v405 = vld [vmem:[%s402 + $0x8] sm:$0xf]
    %v406 = vld [vmem:[%s402 + $0xc] sm:$0xf]
    %v407 = vld [vmem:[%s402 + $0x10] sm:$0xf]
    %v408 = vld [vmem:[%s402 + $0x14] sm:$0xf]
    %v409 = vld [vmem:[%s402 + $0x18] sm:$0xf]
    %v410 = vld [vmem:[%s402 + $0x1c] sm:$0xf]
    %v411 = vld [vmem:[%s402 + $0x20] sm:$0xf]
    %v412 = vld [vmem:[%s402 + $0x24] sm:$0xf]
    %v413 = vld [vmem:[%s402 + $0x28] sm:$0xf]
    %v414 = vld [vmem:[%s402 + $0x2c] sm:$0xf]
    %v415 = vld [vmem:[%s402 + $0x30] sm:$0xf]
    %v416 = vld [vmem:[%s402 + $0x34] sm:$0xf]
    %v417 = vld [vmem:[%s402 + $0x38] sm:$0xf]
    %v418 = vld [vmem:[%s402 + $0x3c] sm:$0xf]
    %v419 = vld [vmem:[%s402 + $0x40] sm:$0xf]
    %v420 = vld [vmem:[%s402 + $0x44] sm:$0xf]
    %v421 = vld [vmem:[%s402 + $0x48] sm:$0xf]
    %v422 = vld [vmem:[%s402 + $0x4c] sm:$0xf]
    %v423 = vld [vmem:[%s402 + $0x50] sm:$0xf]
    %v424 = vld [vmem:[%s402 + $0x54] sm:$0xf]
    %v425 = vld [vmem:[%s402 + $0x58] sm:$0xf]
    %v426 = vld [vmem:[%s402 + $0x5c] sm:$0xf]
    %v427 = vld [vmem:[%s402 + $0x60] sm:$0xf]
    %v428 = vld [vmem:[%s402 + $0x64] sm:$0xf]
    %v429 = vld [vmem:[%s402 + $0x68] sm:$0xf]
    %v430 = vld [vmem:[%s402 + $0x6c] sm:$0xf]
    %v431 = vld [vmem:[%s402 + $0x70] sm:$0xf]
    %v432 = vld [vmem:[%s402 + $0x74] sm:$0xf]
    %v433 = vld [vmem:[%s402 + $0x78] sm:$0xf]
    %v434 = vld [vmem:[%s402 + $0x7c] sm:$0xf]
    %v440 = vunpack.c.l.b16 %v400
    %v441 = vunpack.c.h.b16 %v400
    %v442 = vunpack.c.l.b16 %v330
    %v443 = vunpack.c.h.b16 %v330
    %v444 = vunpack.c.l.b16 %v331
    %v445 = vunpack.c.h.b16 %v331
    %v446 = vunpack.c.l.b16 %v332
    %v447 = vunpack.c.h.b16 %v332
    %v448 = vunpack.c.l.b16 %v401
    %v449 = vunpack.c.h.b16 %v401
    %v450 = vpack.c.b16 %v442, %v440
    %v451 = vpack.c.b16 %v443, %v441
    %v452 = vpack.c.b16 %v446, %v444
    %v453 = vpack.c.b16 %v447, %v445
    %v454 = vpack.c.b16 %v448, %v448
    %v455 = vpack.c.b16 %v449, %v449
    %vm456 = vcmask 1045504
    %v457 = vrot.slane %v450, 2
    %v458 = vrot.slane %v452, 2
    %v459 = vsel %vm456, %v457, %v458
    %v460 = vrot.slane %v451, 2
    %v461 = vrot.slane %v453, 2
    %v462 = vsel %vm456, %v460, %v461
    %v463 = vrot.slane %v454, 2
    %v464 = vsel %vm456, %v458, %v463
    %v465 = vrot.slane %v455, 2
    %v466 = vsel %vm456, %v461, %v465
    %v503 = vunpack.c.l.b16 %v403
    %v504 = vunpack.c.l.b16 %v404
    %v505 = vunpack.c.l.b16 %v405
    %v506 = vunpack.c.l.b16 %v406
    %v507 = vunpack.c.l.b16 %v407
    %v508 = vunpack.c.l.b16 %v408
    %v509 = vunpack.c.l.b16 %v409
    %v510 = vunpack.c.l.b16 %v410
    %v511 = vunpack.c.l.b16 %v411
    %v512 = vunpack.c.l.b16 %v412
    %v513 = vunpack.c.l.b16 %v413
    %v514 = vunpack.c.l.b16 %v414
    %v515 = vunpack.c.l.b16 %v415
    %v516 = vunpack.c.l.b16 %v416
    %v517 = vunpack.c.l.b16 %v417
    %v518 = vunpack.c.l.b16 %v418
    %v519 = vunpack.c.l.b16 %v419
    %v520 = vunpack.c.l.b16 %v420
    %v521 = vunpack.c.l.b16 %v421
    %v522 = vunpack.c.l.b16 %v422
    %v523 = vunpack.c.l.b16 %v423
    %v524 = vunpack.c.l.b16 %v424
    %v525 = vunpack.c.l.b16 %v425
    %v526 = vunpack.c.l.b16 %v426
    %v527 = vunpack.c.l.b16 %v427
    %v528 = vunpack.c.l.b16 %v428
    %v529 = vunpack.c.l.b16 %v429
    %v530 = vunpack.c.l.b16 %v430
    %v531 = vunpack.c.l.b16 %v431
    %v532 = vunpack.c.l.b16 %v432
    %v533 = vunpack.c.l.b16 %v433
    %v534 = vunpack.c.l.b16 %v434
    %v535 = vpack.c.b16 %v504, %v503
    %v536 = vpack.c.b16 %v506, %v505
    %v537 = vpack.c.b16 %v508, %v507
    %v538 = vpack.c.b16 %v510, %v509
    %v539 = vpack.c.b16 %v512, %v511
    %v540 = vpack.c.b16 %v514, %v513
    %v541 = vpack.c.b16 %v516, %v515
    %v542 = vpack.c.b16 %v518, %v517
    %v543 = vpack.c.b16 %v520, %v519
    %v544 = vpack.c.b16 %v522, %v521
    %v545 = vpack.c.b16 %v524, %v523
    %v546 = vpack.c.b16 %v526, %v525
    %v547 = vpack.c.b16 %v528, %v527
    %v548 = vpack.c.b16 %v530, %v529
    %v549 = vpack.c.b16 %v532, %v531
    %v550 = vpack.c.b16 %v534, %v533
    %567 = vmatpush.bf16.msra.mxu0 %v542
    %568 = vmatpush.bf16.msra.mxu0 %v541
    %569 = vmatpush.bf16.msra.mxu0 %v540
    %570 = vmatpush.bf16.msra.mxu0 %v539
    %571 = vmatpush.bf16.msra.mxu0 %v538
    %572 = vmatpush.bf16.msra.mxu0 %v537
    %573 = vmatpush.bf16.msra.mxu0 %v536
    %574 = vmatpush.bf16.msra.mxu0 %v535
    %575 = vmatmul.bf16.gmra.mxu0 %v459
    %v576 = vpop.f32.mrf.mxu0
    %v577 = vadd.f32 0.0, %v576
    %v578 = vpop.f32.mrf.mxu0
    %v579 = vadd.f32 0.0, %v578
    %580 = vmatmul.bf16.gmra.mxu0 %v464
    %v581 = vpop.f32.mrf.mxu0
    %v582 = vadd.f32 0.0, %v581
    %v583 = vpop.f32.mrf.mxu0
    %v584 = vadd.f32 0.0, %v583
    %585 = vdwg.mxu0
    %586 = vmatpush.bf16.msra.mxu0 %v550
    %587 = vmatpush.bf16.msra.mxu0 %v549
    %588 = vmatpush.bf16.msra.mxu0 %v548
    %589 = vmatpush.bf16.msra.mxu0 %v547
    %590 = vmatpush.bf16.msra.mxu0 %v546
    %591 = vmatpush.bf16.msra.mxu0 %v545
    %592 = vmatpush.bf16.msra.mxu0 %v544
    %593 = vmatpush.bf16.msra.mxu0 %v543
    %594 = vmatmul.bf16.gmra.mxu0 %v462
    %v595 = vpop.f32.mrf.mxu0
    %v596 = vadd.f32 %v577, %v595
    %v597 = vpop.f32.mrf.mxu0
    %v598 = vadd.f32 %v579, %v597
    %599 = vmatmul.bf16.gmra.mxu0 %v466
    %v600 = vpop.f32.mrf.mxu0
    %v601 = vadd.f32 %v582, %v600
    %v602 = vpop.f32.mrf.mxu0
    %v603 = vadd.f32 %v584, %v602
    %604 = vdwg.mxu0
    %v606 = vunpack.c.l.b16 %v329
    %v607 = vunpack.c.h.b16 %v329
    %v608 = vpack.c.b16 %v442, %v606
    %v609 = vpack.c.b16 %v443, %v607
    %v646 = vunpack.c.l.b16 %v333
    %v647 = vunpack.c.l.b16 %v334
    %v648 = vunpack.c.l.b16 %v335
    %v649 = vunpack.c.l.b16 %v336
    %v650 = vunpack.c.l.b16 %v337
    %v651 = vunpack.c.l.b16 %v338
    %v652 = vunpack.c.l.b16 %v339
    %v653 = vunpack.c.l.b16 %v340
    %v654 = vunpack.c.l.b16 %v341
    %v655 = vunpack.c.l.b16 %v342
    %v656 = vunpack.c.l.b16 %v343
    %v657 = vunpack.c.l.b16 %v344
    %v658 = vunpack.c.l.b16 %v345
    %v659 = vunpack.c.l.b16 %v346
    %v660 = vunpack.c.l.b16 %v347
    %v661 = vunpack.c.l.b16 %v348
    %v662 = vunpack.c.l.b16 %v349
    %v663 = vunpack.c.l.b16 %v350
    %v664 = vunpack.c.l.b16 %v351
    %v665 = vunpack.c.l.b16 %v352
    %v666 = vunpack.c.l.b16 %v353
    %v667 = vunpack.c.l.b16 %v354
    %v668 = vunpack.c.l.b16 %v355
    %v669 = vunpack.c.l.b16 %v356
    %v670 = vunpack.c.l.b16 %v357
    %v671 = vunpack.c.l.b16 %v358
    %v672 = vunpack.c.l.b16 %v359
    %v673 = vunpack.c.l.b16 %v360
    %v674 = vunpack.c.l.b16 %v361
    %v675 = vunpack.c.l.b16 %v362
    %v676 = vunpack.c.l.b16 %v363
    %v677 = vunpack.c.l.b16 %v364
    %v678 = vpack.c.b16 %v647, %v646
    %v679 = vpack.c.b16 %v649, %v648
    %v680 = vpack.c.b16 %v651, %v650
    %v681 = vpack.c.b16 %v653, %v652
    %v682 = vpack.c.b16 %v655, %v654
    %v683 = vpack.c.b16 %v657, %v656
    %v684 = vpack.c.b16 %v659, %v658
    %v685 = vpack.c.b16 %v661, %v660
    %v686 = vpack.c.b16 %v663, %v662
    %v687 = vpack.c.b16 %v665, %v664
    %v688 = vpack.c.b16 %v667, %v666
    %v689 = vpack.c.b16 %v669, %v668
    %v690 = vpack.c.b16 %v671, %v670
    %v691 = vpack.c.b16 %v673, %v672
    %v692 = vpack.c.b16 %v675, %v674
    %v693 = vpack.c.b16 %v677, %v676
    %710 = vmatpush.bf16.msra.mxu0 %v685
    %711 = vmatpush.bf16.msra.mxu0 %v684
    %712 = vmatpush.bf16.msra.mxu0 %v683
    %713 = vmatpush.bf16.msra.mxu0 %v682
    %714 = vmatpush.bf16.msra.mxu0 %v681
    %715 = vmatpush.bf16.msra.mxu0 %v680
    %716 = vmatpush.bf16.msra.mxu0 %v679
    %717 = vmatpush.bf16.msra.mxu0 %v678
    %718 = vmatmul.bf16.gmra.mxu0 %v608
    %v719 = vpop.f32.mrf.mxu0
    %v720 = vadd.f32 %v596, %v719
    %v721 = vpop.f32.mrf.mxu0
    %v722 = vadd.f32 %v598, %v721
    %723 = vmatmul.bf16.gmra.mxu0 %v452
    %v724 = vpop.f32.mrf.mxu0
    %v725 = vadd.f32 %v601, %v724
    %v726 = vpop.f32.mrf.mxu0
    %v727 = vadd.f32 %v603, %v726
    %728 = vdwg.mxu0
    %729 = vmatpush.bf16.msra.mxu0 %v693
    %730 = vmatpush.bf16.msra.mxu0 %v692
    %731 = vmatpush.bf16.msra.mxu0 %v691
    %732 = vmatpush.bf16.msra.mxu0 %v690
    %733 = vmatpush.bf16.msra.mxu0 %v689
    %734 = vmatpush.bf16.msra.mxu0 %v688
    %735 = vmatpush.bf16.msra.mxu0 %v687
    %736 = vmatpush.bf16.msra.mxu0 %v686
    %737 = vmatmul.bf16.gmra.mxu0 %v609
    %v738 = vpop.f32.mrf.mxu0
    %v739 = vadd.f32 %v720, %v738
    %v740 = vpop.f32.mrf.mxu0
    %v741 = vadd.f32 %v722, %v740
    %742 = vmatmul.bf16.gmra.mxu0 %v453
    %v743 = vpop.f32.mrf.mxu0
    %v744 = vadd.f32 %v725, %v743
    %v745 = vpop.f32.mrf.mxu0
    %v746 = vadd.f32 %v727, %v745
    %747 = vdwg.mxu0
    %v748 = vld [vmem:[#allocation3] sm:$0x88]
    %v749 = vld [vmem:[#allocation3 + $0x20] sm:$0x77]
    %s750 = scalar_lea.vmem [#allocation11], 384
    %v751 = vld [vmem:[%s750] sm:$0xf]
    %v752 = vld [vmem:[%s750 + $0x4] sm:$0xf]
    %v753 = vld [vmem:[%s750 + $0x8] sm:$0xf]
    %v754 = vld [vmem:[%s750 + $0xc] sm:$0xf]
    %v755 = vld [vmem:[%s750 + $0x10] sm:$0xf]
    %v756 = vld [vmem:[%s750 + $0x14] sm:$0xf]
    %v757 = vld [vmem:[%s750 + $0x18] sm:$0xf]
    %v758 = vld [vmem:[%s750 + $0x1c] sm:$0xf]
    %v759 = vld [vmem:[%s750 + $0x20] sm:$0xf]
    %v760 = vld [vmem:[%s750 + $0x24] sm:$0xf]
    %v761 = vld [vmem:[%s750 + $0x28] sm:$0xf]
    %v762 = vld [vmem:[%s750 + $0x2c] sm:$0xf]
    %v763 = vld [vmem:[%s750 + $0x30] sm:$0xf]
    %v764 = vld [vmem:[%s750 + $0x34] sm:$0xf]
    %v765 = vld [vmem:[%s750 + $0x38] sm:$0xf]
    %v766 = vld [vmem:[%s750 + $0x3c] sm:$0xf]
    %v767 = vld [vmem:[%s750 + $0x40] sm:$0xf]
    %v768 = vld [vmem:[%s750 + $0x44] sm:$0xf]
    %v769 = vld [vmem:[%s750 + $0x48] sm:$0xf]
    %v770 = vld [vmem:[%s750 + $0x4c] sm:$0xf]
    %v771 = vld [vmem:[%s750 + $0x50] sm:$0xf]
    %v772 = vld [vmem:[%s750 + $0x54] sm:$0xf]
    %v773 = vld [vmem:[%s750 + $0x58] sm:$0xf]
    %v774 = vld [vmem:[%s750 + $0x5c] sm:$0xf]
    %v775 = vld [vmem:[%s750 + $0x60] sm:$0xf]
    %v776 = vld [vmem:[%s750 + $0x64] sm:$0xf]
    %v777 = vld [vmem:[%s750 + $0x68] sm:$0xf]
    %v778 = vld [vmem:[%s750 + $0x6c] sm:$0xf]
    %v779 = vld [vmem:[%s750 + $0x70] sm:$0xf]
    %v780 = vld [vmem:[%s750 + $0x74] sm:$0xf]
    %v781 = vld [vmem:[%s750 + $0x78] sm:$0xf]
    %v782 = vld [vmem:[%s750 + $0x7c] sm:$0xf]
    %v785 = vunpack.c.l.b16 %v748
    %v786 = vunpack.c.h.b16 %v748
    %v787 = vunpack.c.l.b16 %v749
    %v788 = vunpack.c.h.b16 %v749
    %v789 = vpack.c.b16 %v442, %v785
    %v790 = vpack.c.b16 %v443, %v786
    %v791 = vpack.c.b16 %v787, %v787
    %v792 = vpack.c.b16 %v788, %v788
    %vm793 = vcmask 1044480
    %v794 = vrot.slane %v789, 3
    %v795 = vrot.slane %v452, 3
    %v796 = vsel %vm793, %v794, %v795
    %v797 = vrot.slane %v790, 3
    %v798 = vrot.slane %v453, 3
    %v799 = vsel %vm793, %v797, %v798
    %v800 = vrot.slane %v791, 3
    %v801 = vsel %vm793, %v795, %v800
    %v802 = vrot.slane %v792, 3
    %v803 = vsel %vm793, %v798, %v802
    %v840 = vunpack.c.l.b16 %v751
    %v841 = vunpack.c.l.b16 %v752
    %v842 = vunpack.c.l.b16 %v753
    %v843 = vunpack.c.l.b16 %v754
    %v844 = vunpack.c.l.b16 %v755
    %v845 = vunpack.c.l.b16 %v756
    %v846 = vunpack.c.l.b16 %v757
    %v847 = vunpack.c.l.b16 %v758
    %v848 = vunpack.c.l.b16 %v759
    %v849 = vunpack.c.l.b16 %v760
    %v850 = vunpack.c.l.b16 %v761
    %v851 = vunpack.c.l.b16 %v762
    %v852 = vunpack.c.l.b16 %v763
    %v853 = vunpack.c.l.b16 %v764
    %v854 = vunpack.c.l.b16 %v765
    %v855 = vunpack.c.l.b16 %v766
    %v856 = vunpack.c.l.b16 %v767
    %v857 = vunpack.c.l.b16 %v768
    %v858 = vunpack.c.l.b16 %v769
    %v859 = vunpack.c.l.b16 %v770
    %v860 = vunpack.c.l.b16 %v771
    %v861 = vunpack.c.l.b16 %v772
    %v862 = vunpack.c.l.b16 %v773
    %v863 = vunpack.c.l.b16 %v774
    %v864 = vunpack.c.l.b16 %v775
    %v865 = vunpack.c.l.b16 %v776
    %v866 = vunpack.c.l.b16 %v777
    %v867 = vunpack.c.l.b16 %v778
    %v868 = vunpack.c.l.b16 %v779
    %v869 = vunpack.c.l.b16 %v780
    %v870 = vunpack.c.l.b16 %v781
    %v871 = vunpack.c.l.b16 %v782
    %v872 = vpack.c.b16 %v841, %v840
    %v873 = vpack.c.b16 %v843, %v842
    %v874 = vpack.c.b16 %v845, %v844
    %v875 = vpack.c.b16 %v847, %v846
    %v876 = vpack.c.b16 %v849, %v848
    %v877 = vpack.c.b16 %v851, %v850
    %v878 = vpack.c.b16 %v853, %v852
    %v879 = vpack.c.b16 %v855, %v854
    %v880 = vpack.c.b16 %v857, %v856
    %v881 = vpack.c.b16 %v859, %v858
    %v882 = vpack.c.b16 %v861, %v860
    %v883 = vpack.c.b16 %v863, %v862
    %v884 = vpack.c.b16 %v865, %v864
    %v885 = vpack.c.b16 %v867, %v866
    %v886 = vpack.c.b16 %v869, %v868
    %v887 = vpack.c.b16 %v871, %v870
    %904 = vmatpush.bf16.msra.mxu0 %v879
    %905 = vmatpush.bf16.msra.mxu0 %v878
    %906 = vmatpush.bf16.msra.mxu0 %v877
    %907 = vmatpush.bf16.msra.mxu0 %v876
    %908 = vmatpush.bf16.msra.mxu0 %v875
    %909 = vmatpush.bf16.msra.mxu0 %v874
    %910 = vmatpush.bf16.msra.mxu0 %v873
    %911 = vmatpush.bf16.msra.mxu0 %v872
    %912 = vmatmul.bf16.gmra.mxu0 %v796
    %v913 = vpop.f32.mrf.mxu0
    %v914 = vadd.f32 0.0, %v913
    %v915 = vpop.f32.mrf.mxu0
    %v916 = vadd.f32 0.0, %v915
    %917 = vmatmul.bf16.gmra.mxu0 %v801
    %v918 = vpop.f32.mrf.mxu0
    %v919 = vadd.f32 0.0, %v918
    %v920 = vpop.f32.mrf.mxu0
    %v921 = vadd.f32 0.0, %v920
    %922 = vdwg.mxu0
    %923 = vmatpush.bf16.msra.mxu0 %v887
    %924 = vmatpush.bf16.msra.mxu0 %v886
    %925 = vmatpush.bf16.msra.mxu0 %v885
    %926 = vmatpush.bf16.msra.mxu0 %v884
    %927 = vmatpush.bf16.msra.mxu0 %v883
    %928 = vmatpush.bf16.msra.mxu0 %v882
    %929 = vmatpush.bf16.msra.mxu0 %v881
    %930 = vmatpush.bf16.msra.mxu0 %v880
    %931 = vmatmul.bf16.gmra.mxu0 %v799
    %v932 = vpop.f32.mrf.mxu0
    %v933 = vadd.f32 %v914, %v932
    %v934 = vpop.f32.mrf.mxu0
    %v935 = vadd.f32 %v916, %v934
    %936 = vmatmul.bf16.gmra.mxu0 %v803
    %v937 = vpop.f32.mrf.mxu0
    %v938 = vadd.f32 %v919, %v937
    %v939 = vpop.f32.mrf.mxu0
    %v940 = vadd.f32 %v921, %v939
    %941 = vdwg.mxu0
    %v944 = vunpack.c.l.b16 %v365
    %v945 = vunpack.c.h.b16 %v365
    %v946 = vunpack.c.l.b16 %v366
    %v947 = vunpack.c.h.b16 %v366
    %v948 = vpack.c.b16 %v442, %v944
    %v949 = vpack.c.b16 %v443, %v945
    %v950 = vpack.c.b16 %v946, %v946
    %v951 = vpack.c.b16 %v947, %v947
    %vm952 = vcmask 1046528
    %v953 = vrot.slane %v948, 1
    %v954 = vrot.slane %v452, 1
    %v955 = vsel %vm952, %v953, %v954
    %v956 = vrot.slane %v949, 1
    %v957 = vrot.slane %v453, 1
    %v958 = vsel %vm952, %v956, %v957
    %v959 = vrot.slane %v950, 1
    %v960 = vsel %vm952, %v954, %v959
    %v961 = vrot.slane %v951, 1
    %v962 = vsel %vm952, %v957, %v961
    %v999 = vunpack.c.l.b16 %v368
    %v1000 = vunpack.c.l.b16 %v369
    %v1001 = vunpack.c.l.b16 %v370
    %v1002 = vunpack.c.l.b16 %v371
    %v1003 = vunpack.c.l.b16 %v372
    %v1004 = vunpack.c.l.b16 %v373
    %v1005 = vunpack.c.l.b16 %v374
    %v1006 = vunpack.c.l.b16 %v375
    %v1007 = vunpack.c.l.b16 %v376
    %v1008 = vunpack.c.l.b16 %v377
    %v1009 = vunpack.c.l.b16 %v378
    %v1010 = vunpack.c.l.b16 %v379
    %v1011 = vunpack.c.l.b16 %v380
    %v1012 = vunpack.c.l.b16 %v381
    %v1013 = vunpack.c.l.b16 %v382
    %v1014 = vunpack.c.l.b16 %v383
    %v1015 = vunpack.c.l.b16 %v384
    %v1016 = vunpack.c.l.b16 %v385
    %v1017 = vunpack.c.l.b16 %v386
    %v1018 = vunpack.c.l.b16 %v387
    %v1019 = vunpack.c.l.b16 %v388
    %v1020 = vunpack.c.l.b16 %v389
    %v1021 = vunpack.c.l.b16 %v390
    %v1022 = vunpack.c.l.b16 %v391
    %v1023 = vunpack.c.l.b16 %v392
    %v1024 = vunpack.c.l.b16 %v393
    %v1025 = vunpack.c.l.b16 %v394
    %v1026 = vunpack.c.l.b16 %v395
    %v1027 = vunpack.c.l.b16 %v396
    %v1028 = vunpack.c.l.b16 %v397
    %v1029 = vunpack.c.l.b16 %v398
    %v1030 = vunpack.c.l.b16 %v399
    %v1031 = vpack.c.b16 %v1000, %v999
    %v1032 = vpack.c.b16 %v1002, %v1001
    %v1033 = vpack.c.b16 %v1004, %v1003
    %v1034 = vpack.c.b16 %v1006, %v1005
    %v1035 = vpack.c.b16 %v1008, %v1007
    %v1036 = vpack.c.b16 %v1010, %v1009
    %v1037 = vpack.c.b16 %v1012, %v1011
    %v1038 = vpack.c.b16 %v1014, %v1013
    %v1039 = vpack.c.b16 %v1016, %v1015
    %v1040 = vpack.c.b16 %v1018, %v1017
    %v1041 = vpack.c.b16 %v1020, %v1019
    %v1042 = vpack.c.b16 %v1022, %v1021
    %v1043 = vpack.c.b16 %v1024, %v1023
    %v1044 = vpack.c.b16 %v1026, %v1025
    %v1045 = vpack.c.b16 %v1028, %v1027
    %v1046 = vpack.c.b16 %v1030, %v1029
    %1063 = vmatpush.bf16.msra.mxu0 %v1038
    %1064 = vmatpush.bf16.msra.mxu0 %v1037
    %1065 = vmatpush.bf16.msra.mxu0 %v1036
    %1066 = vmatpush.bf16.msra.mxu0 %v1035
    %1067 = vmatpush.bf16.msra.mxu0 %v1034
    %1068 = vmatpush.bf16.msra.mxu0 %v1033
    %1069 = vmatpush.bf16.msra.mxu0 %v1032
    %1070 = vmatpush.bf16.msra.mxu0 %v1031
    %1071 = vmatmul.bf16.gmra.mxu0 %v955
    %v1072 = vpop.f32.mrf.mxu0
    %v1073 = vadd.f32 %v933, %v1072
    %v1074 = vpop.f32.mrf.mxu0
    %v1075 = vadd.f32 %v935, %v1074
    %1076 = vmatmul.bf16.gmra.mxu0 %v960
    %v1077 = vpop.f32.mrf.mxu0
    %v1078 = vadd.f32 %v938, %v1077
    %v1079 = vpop.f32.mrf.mxu0
    %v1080 = vadd.f32 %v940, %v1079
    %1081 = vdwg.mxu0
    %1082 = vmatpush.bf16.msra.mxu0 %v1046
    %1083 = vmatpush.bf16.msra.mxu0 %v1045
    %1084 = vmatpush.bf16.msra.mxu0 %v1044
    %1085 = vmatpush.bf16.msra.mxu0 %v1043
    %1086 = vmatpush.bf16.msra.mxu0 %v1042
    %1087 = vmatpush.bf16.msra.mxu0 %v1041
    %1088 = vmatpush.bf16.msra.mxu0 %v1040
    %1089 = vmatpush.bf16.msra.mxu0 %v1039
    %1090 = vmatmul.bf16.gmra.mxu0 %v958
    %v1091 = vpop.f32.mrf.mxu0
    %v1092 = vadd.f32 %v1073, %v1091
    %v1093 = vpop.f32.mrf.mxu0
    %v1094 = vadd.f32 %v1075, %v1093
    %1095 = vmatmul.bf16.gmra.mxu0 %v962
    %v1096 = vpop.f32.mrf.mxu0
    %v1097 = vadd.f32 %v1078, %v1096
    %v1098 = vpop.f32.mrf.mxu0
    %v1099 = vadd.f32 %v1080, %v1098
    %1100 = vdwg.mxu0
    %v1101 = vld [vmem:[#allocation3 + $0x20] sm:$0xff]
    %s1102 = scalar_lea.vmem [#allocation11], 512
    %v1103 = vld [vmem:[%s1102] sm:$0xf]
    %v1104 = vld [vmem:[%s1102 + $0x4] sm:$0xf]
    %v1105 = vld [vmem:[%s1102 + $0x8] sm:$0xf]
    %v1106 = vld [vmem:[%s1102 + $0xc] sm:$0xf]
    %v1107 = vld [vmem:[%s1102 + $0x10] sm:$0xf]
    %v1108 = vld [vmem:[%s1102 + $0x14] sm:$0xf]
    %v1109 = vld [vmem:[%s1102 + $0x18] sm:$0xf]
    %v1110 = vld [vmem:[%s1102 + $0x1c] sm:$0xf]
    %v1111 = vld [vmem:[%s1102 + $0x20] sm:$0xf]
    %v1112 = vld [vmem:[%s1102 + $0x24] sm:$0xf]
    %v1113 = vld [vmem:[%s1102 + $0x28] sm:$0xf]
    %v1114 = vld [vmem:[%s1102 + $0x2c] sm:$0xf]
    %v1115 = vld [vmem:[%s1102 + $0x30] sm:$0xf]
    %v1116 = vld [vmem:[%s1102 + $0x34] sm:$0xf]
    %v1117 = vld [vmem:[%s1102 + $0x38] sm:$0xf]
    %v1118 = vld [vmem:[%s1102 + $0x3c] sm:$0xf]
    %v1119 = vld [vmem:[%s1102 + $0x40] sm:$0xf]
    %v1120 = vld [vmem:[%s1102 + $0x44] sm:$0xf]
    %v1121 = vld [vmem:[%s1102 + $0x48] sm:$0xf]
    %v1122 = vld [vmem:[%s1102 + $0x4c] sm:$0xf]
    %v1123 = vld [vmem:[%s1102 + $0x50] sm:$0xf]
    %v1124 = vld [vmem:[%s1102 + $0x54] sm:$0xf]
    %v1125 = vld [vmem:[%s1102 + $0x58] sm:$0xf]
    %v1126 = vld [vmem:[%s1102 + $0x5c] sm:$0xf]
    %v1127 = vld [vmem:[%s1102 + $0x60] sm:$0xf]
    %v1128 = vld [vmem:[%s1102 + $0x64] sm:$0xf]
    %v1129 = vld [vmem:[%s1102 + $0x68] sm:$0xf]
    %v1130 = vld [vmem:[%s1102 + $0x6c] sm:$0xf]
    %v1131 = vld [vmem:[%s1102 + $0x70] sm:$0xf]
    %v1132 = vld [vmem:[%s1102 + $0x74] sm:$0xf]
    %v1133 = vld [vmem:[%s1102 + $0x78] sm:$0xf]
    %v1134 = vld [vmem:[%s1102 + $0x7c] sm:$0xf]
    %v1136 = vunpack.c.l.b16 %v1101
    %v1137 = vunpack.c.h.b16 %v1101
    %v1138 = vpack.c.b16 %v444, %v442
    %v1139 = vpack.c.b16 %v445, %v443
    %v1140 = vpack.c.b16 %v1136, %v446
    %v1141 = vpack.c.b16 %v1137, %v447
    %v1178 = vunpack.c.l.b16 %v1103
    %v1179 = vunpack.c.l.b16 %v1104
    %v1180 = vunpack.c.l.b16 %v1105
    %v1181 = vunpack.c.l.b16 %v1106
    %v1182 = vunpack.c.l.b16 %v1107
    %v1183 = vunpack.c.l.b16 %v1108
    %v1184 = vunpack.c.l.b16 %v1109
    %v1185 = vunpack.c.l.b16 %v1110
    %v1186 = vunpack.c.l.b16 %v1111
    %v1187 = vunpack.c.l.b16 %v1112
    %v1188 = vunpack.c.l.b16 %v1113
    %v1189 = vunpack.c.l.b16 %v1114
    %v1190 = vunpack.c.l.b16 %v1115
    %v1191 = vunpack.c.l.b16 %v1116
    %v1192 = vunpack.c.l.b16 %v1117
    %v1193 = vunpack.c.l.b16 %v1118
    %v1194 = vunpack.c.l.b16 %v1119
    %v1195 = vunpack.c.l.b16 %v1120
    %v1196 = vunpack.c.l.b16 %v1121
    %v1197 = vunpack.c.l.b16 %v1122
    %v1198 = vunpack.c.l.b16 %v1123
    %v1199 = vunpack.c.l.b16 %v1124
    %v1200 = vunpack.c.l.b16 %v1125
    %v1201 = vunpack.c.l.b16 %v1126
    %v1202 = vunpack.c.l.b16 %v1127
    %v1203 = vunpack.c.l.b16 %v1128
    %v1204 = vunpack.c.l.b16 %v1129
    %v1205 = vunpack.c.l.b16 %v1130
    %v1206 = vunpack.c.l.b16 %v1131
    %v1207 = vunpack.c.l.b16 %v1132
    %v1208 = vunpack.c.l.b16 %v1133
    %v1209 = vunpack.c.l.b16 %v1134
    %v1210 = vpack.c.b16 %v1179, %v1178
    %v1211 = vpack.c.b16 %v1181, %v1180
    %v1212 = vpack.c.b16 %v1183, %v1182
    %v1213 = vpack.c.b16 %v1185, %v1184
    %v1214 = vpack.c.b16 %v1187, %v1186
    %v1215 = vpack.c.b16 %v1189, %v1188
    %v1216 = vpack.c.b16 %v1191, %v1190
    %v1217 = vpack.c.b16 %v1193, %v1192
    %v1218 = vpack.c.b16 %v1195, %v1194
    %v1219 = vpack.c.b16 %v1197, %v1196
    %v1220 = vpack.c.b16 %v1199, %v1198
    %v1221 = vpack.c.b16 %v1201, %v1200
    %v1222 = vpack.c.b16 %v1203, %v1202
    %v1223 = vpack.c.b16 %v1205, %v1204
    %v1224 = vpack.c.b16 %v1207, %v1206
    %v1225 = vpack.c.b16 %v1209, %v1208
    %1242 = vmatpush.bf16.msra.mxu0 %v1217
    %1243 = vmatpush.bf16.msra.mxu0 %v1216
    %1244 = vmatpush.bf16.msra.mxu0 %v1215
    %1245 = vmatpush.bf16.msra.mxu0 %v1214
    %1246 = vmatpush.bf16.msra.mxu0 %v1213
    %1247 = vmatpush.bf16.msra.mxu0 %v1212
    %1248 = vmatpush.bf16.msra.mxu0 %v1211
    %1249 = vmatpush.bf16.msra.mxu0 %v1210
    %1250 = vmatmul.bf16.gmra.mxu0 %v1138
    %v1251 = vpop.f32.mrf.mxu0
    %v1252 = vadd.f32 0.0, %v1251
    %v1253 = vpop.f32.mrf.mxu0
    %v1254 = vadd.f32 0.0, %v1253
    %1255 = vmatmul.bf16.gmra.mxu0 %v1140
    %v1256 = vpop.f32.mrf.mxu0
    %v1257 = vadd.f32 0.0, %v1256
    %v1258 = vpop.f32.mrf.mxu0
    %v1259 = vadd.f32 0.0, %v1258
    %1260 = vdwg.mxu0
    %1261 = vmatpush.bf16.msra.mxu0 %v1225
    %1262 = vmatpush.bf16.msra.mxu0 %v1224
    %1263 = vmatpush.bf16.msra.mxu0 %v1223
    %1264 = vmatpush.bf16.msra.mxu0 %v1222
    %1265 = vmatpush.bf16.msra.mxu0 %v1221
    %1266 = vmatpush.bf16.msra.mxu0 %v1220
    %1267 = vmatpush.bf16.msra.mxu0 %v1219
    %1268 = vmatpush.bf16.msra.mxu0 %v1218
    %1269 = vmatmul.bf16.gmra.mxu0 %v1139
    %v1270 = vpop.f32.mrf.mxu0
    %v1271 = vadd.f32 %v1252, %v1270
    %v1272 = vpop.f32.mrf.mxu0
    %v1273 = vadd.f32 %v1254, %v1272
    %1274 = vmatmul.bf16.gmra.mxu0 %v1141
    %v1275 = vpop.f32.mrf.mxu0
    %v1276 = vadd.f32 %v1257, %v1275
    %v1277 = vpop.f32.mrf.mxu0
    %v1278 = vadd.f32 %v1259, %v1277
    %1279 = vdwg.mxu0
    %v1280 = vadd.f32 %v739, %v1271
    %v1281 = vadd.f32 %v741, %v1273
    %v1282 = vadd.f32 %v744, %v1276
    %v1283 = vadd.f32 %v746, %v1278
    %v1284 = vld [vmem:[#allocation3 + $0x8] sm:$0xee]
    %v1285 = vld [vmem:[#allocation3 + $0x10] sm:$0xff]
    %v1286 = vld [vmem:[#allocation3 + $0x18] sm:$0xff]
    %v1287 = vld [vmem:[#allocation3 + $0x20] sm:$0xff]
    %v1288 = vld [vmem:[#allocation3 + $0x28] sm:$0x11]
    %s1289 = scalar_lea.vmem [#allocation11], 640
    %v1290 = vld [vmem:[%s1289] sm:$0xf]
    %v1291 = vld [vmem:[%s1289 + $0x4] sm:$0xf]
    %v1292 = vld [vmem:[%s1289 + $0x8] sm:$0xf]
    %v1293 = vld [vmem:[%s1289 + $0xc] sm:$0xf]
    %v1294 = vld [vmem:[%s1289 + $0x10] sm:$0xf]
    %v1295 = vld [vmem:[%s1289 + $0x14] sm:$0xf]
    %v1296 = vld [vmem:[%s1289 + $0x18] sm:$0xf]
    %v1297 = vld [vmem:[%s1289 + $0x1c] sm:$0xf]
    %v1298 = vld [vmem:[%s1289 + $0x20] sm:$0xf]
    %v1299 = vld [vmem:[%s1289 + $0x24] sm:$0xf]
    %v1300 = vld [vmem:[%s1289 + $0x28] sm:$0xf]
    %v1301 = vld [vmem:[%s1289 + $0x2c] sm:$0xf]
    %v1302 = vld [vmem:[%s1289 + $0x30] sm:$0xf]
    %v1303 = vld [vmem:[%s1289 + $0x34] sm:$0xf]
    %v1304 = vld [vmem:[%s1289 + $0x38] sm:$0xf]
    %v1305 = vld [vmem:[%s1289 + $0x3c] sm:$0xf]
    %v1306 = vld [vmem:[%s1289 + $0x40] sm:$0xf]
    %v1307 = vld [vmem:[%s1289 + $0x44] sm:$0xf]
    %v1308 = vld [vmem:[%s1289 + $0x48] sm:$0xf]
    %v1309 = vld [vmem:[%s1289 + $0x4c] sm:$0xf]
    %v1310 = vld [vmem:[%s1289 + $0x50] sm:$0xf]
    %v1311 = vld [vmem:[%s1289 + $0x54] sm:$0xf]
    %v1312 = vld [vmem:[%s1289 + $0x58] sm:$0xf]
    %v1313 = vld [vmem:[%s1289 + $0x5c] sm:$0xf]
    %v1314 = vld [vmem:[%s1289 + $0x60] sm:$0xf]
    %v1315 = vld [vmem:[%s1289 + $0x64] sm:$0xf]
    %v1316 = vld [vmem:[%s1289 + $0x68] sm:$0xf]
    %v1317 = vld [vmem:[%s1289 + $0x6c] sm:$0xf]
    %v1318 = vld [vmem:[%s1289 + $0x70] sm:$0xf]
    %v1319 = vld [vmem:[%s1289 + $0x74] sm:$0xf]
    %v1320 = vld [vmem:[%s1289 + $0x78] sm:$0xf]
    %v1321 = vld [vmem:[%s1289 + $0x7c] sm:$0xf]
    %v1327 = vunpack.c.l.b16 %v1284
    %v1328 = vunpack.c.h.b16 %v1284
    %v1329 = vunpack.c.l.b16 %v1285
    %v1330 = vunpack.c.h.b16 %v1285
    %v1331 = vunpack.c.l.b16 %v1286
    %v1332 = vunpack.c.h.b16 %v1286
    %v1333 = vunpack.c.l.b16 %v1287
    %v1334 = vunpack.c.h.b16 %v1287
    %v1335 = vunpack.c.l.b16 %v1288
    %v1336 = vunpack.c.h.b16 %v1288
    %v1337 = vpack.c.b16 %v1329, %v1327
    %v1338 = vpack.c.b16 %v1330, %v1328
    %v1339 = vpack.c.b16 %v1333, %v1331
    %v1340 = vpack.c.b16 %v1334, %v1332
    %v1341 = vpack.c.b16 %v1335, %v1335
    %v1342 = vpack.c.b16 %v1336, %v1336
    %v1343 = vrot.slane %v1337, 1
    %v1344 = vrot.slane %v1339, 1
    %v1345 = vsel %vm952, %v1343, %v1344
    %v1346 = vrot.slane %v1338, 1
    %v1347 = vrot.slane %v1340, 1
    %v1348 = vsel %vm952, %v1346, %v1347
    %v1349 = vrot.slane %v1341, 1
    %v1350 = vsel %vm952, %v1344, %v1349
    %v1351 = vrot.slane %v1342, 1
    %v1352 = vsel %vm952, %v1347, %v1351
    %v1389 = vunpack.c.l.b16 %v1290
    %v1390 = vunpack.c.l.b16 %v1291
    %v1391 = vunpack.c.l.b16 %v1292
    %v1392 = vunpack.c.l.b16 %v1293
    %v1393 = vunpack.c.l.b16 %v1294
    %v1394 = vunpack.c.l.b16 %v1295
    %v1395 = vunpack.c.l.b16 %v1296
    %v1396 = vunpack.c.l.b16 %v1297
    %v1397 = vunpack.c.l.b16 %v1298
    %v1398 = vunpack.c.l.b16 %v1299
    %v1399 = vunpack.c.l.b16 %v1300
    %v1400 = vunpack.c.l.b16 %v1301
    %v1401 = vunpack.c.l.b16 %v1302
    %v1402 = vunpack.c.l.b16 %v1303
    %v1403 = vunpack.c.l.b16 %v1304
    %v1404 = vunpack.c.l.b16 %v1305
    %v1405 = vunpack.c.l.b16 %v1306
    %v1406 = vunpack.c.l.b16 %v1307
    %v1407 = vunpack.c.l.b16 %v1308
    %v1408 = vunpack.c.l.b16 %v1309
    %v1409 = vunpack.c.l.b16 %v1310
    %v1410 = vunpack.c.l.b16 %v1311
    %v1411 = vunpack.c.l.b16 %v1312
    %v1412 = vunpack.c.l.b16 %v1313
    %v1413 = vunpack.c.l.b16 %v1314
    %v1414 = vunpack.c.l.b16 %v1315
    %v1415 = vunpack.c.l.b16 %v1316
    %v1416 = vunpack.c.l.b16 %v1317
    %v1417 = vunpack.c.l.b16 %v1318
    %v1418 = vunpack.c.l.b16 %v1319
    %v1419 = vunpack.c.l.b16 %v1320
    %v1420 = vunpack.c.l.b16 %v1321
    %v1421 = vpack.c.b16 %v1390, %v1389
    %v1422 = vpack.c.b16 %v1392, %v1391
    %v1423 = vpack.c.b16 %v1394, %v1393
    %v1424 = vpack.c.b16 %v1396, %v1395
    %v1425 = vpack.c.b16 %v1398, %v1397
    %v1426 = vpack.c.b16 %v1400, %v1399
    %v1427 = vpack.c.b16 %v1402, %v1401
    %v1428 = vpack.c.b16 %v1404, %v1403
    %v1429 = vpack.c.b16 %v1406, %v1405
    %v1430 = vpack.c.b16 %v1408, %v1407
    %v1431 = vpack.c.b16 %v1410, %v1409
    %v1432 = vpack.c.b16 %v1412, %v1411
    %v1433 = vpack.c.b16 %v1414, %v1413
    %v1434 = vpack.c.b16 %v1416, %v1415
    %v1435 = vpack.c.b16 %v1418, %v1417
    %v1436 = vpack.c.b16 %v1420, %v1419
    %1453 = vmatpush.bf16.msra.mxu0 %v1428
    %1454 = vmatpush.bf16.msra.mxu0 %v1427
    %1455 = vmatpush.bf16.msra.mxu0 %v1426
    %1456 = vmatpush.bf16.msra.mxu0 %v1425
    %1457 = vmatpush.bf16.msra.mxu0 %v1424
    %1458 = vmatpush.bf16.msra.mxu0 %v1423
    %1459 = vmatpush.bf16.msra.mxu0 %v1422
    %1460 = vmatpush.bf16.msra.mxu0 %v1421
    %1461 = vmatmul.bf16.gmra.mxu0 %v1345
    %v1462 = vpop.f32.mrf.mxu0
    %v1463 = vadd.f32 0.0, %v1462
    %v1464 = vpop.f32.mrf.mxu0
    %v1465 = vadd.f32 0.0, %v1464
    %1466 = vmatmul.bf16.gmra.mxu0 %v1350
    %v1467 = vpop.f32.mrf.mxu0
    %v1468 = vadd.f32 0.0, %v1467
    %v1469 = vpop.f32.mrf.mxu0
    %v1470 = vadd.f32 0.0, %v1469
    %1471 = vdwg.mxu0
    %1472 = vmatpush.bf16.msra.mxu0 %v1436
    %1473 = vmatpush.bf16.msra.mxu0 %v1435
    %1474 = vmatpush.bf16.msra.mxu0 %v1434
    %1475 = vmatpush.bf16.msra.mxu0 %v1433
    %1476 = vmatpush.bf16.msra.mxu0 %v1432
    %1477 = vmatpush.bf16.msra.mxu0 %v1431
    %1478 = vmatpush.bf16.msra.mxu0 %v1430
    %1479 = vmatpush.bf16.msra.mxu0 %v1429
    %1480 = vmatmul.bf16.gmra.mxu0 %v1348
    %v1481 = vpop.f32.mrf.mxu0
    %v1482 = vadd.f32 %v1463, %v1481
    %v1483 = vpop.f32.mrf.mxu0
    %v1484 = vadd.f32 %v1465, %v1483
    %1485 = vmatmul.bf16.gmra.mxu0 %v1352
    %v1486 = vpop.f32.mrf.mxu0
    %v1487 = vadd.f32 %v1468, %v1486
    %v1488 = vpop.f32.mrf.mxu0
    %v1489 = vadd.f32 %v1470, %v1488
    %1490 = vdwg.mxu0
    %v1491 = vadd.f32 %v1092, %v1482
    %v1492 = vadd.f32 %v1094, %v1484
    %v1493 = vadd.f32 %v1097, %v1487
    %v1494 = vadd.f32 %v1099, %v1489
    %v1495 = vld [vmem:[#allocation3 + $0x8] sm:$0xcc]
    %v1496 = vld [vmem:[#allocation3 + $0x28] sm:$0x33]
    %s1497 = scalar_lea.vmem [#allocation11], 768
    %v1498 = vld [vmem:[%s1497] sm:$0xf]
    %v1499 = vld [vmem:[%s1497 + $0x4] sm:$0xf]
    %v1500 = vld [vmem:[%s1497 + $0x8] sm:$0xf]
    %v1501 = vld [vmem:[%s1497 + $0xc] sm:$0xf]
    %v1502 = vld [vmem:[%s1497 + $0x10] sm:$0xf]
    %v1503 = vld [vmem:[%s1497 + $0x14] sm:$0xf]
    %v1504 = vld [vmem:[%s1497 + $0x18] sm:$0xf]
    %v1505 = vld [vmem:[%s1497 + $0x1c] sm:$0xf]
    %v1506 = vld [vmem:[%s1497 + $0x20] sm:$0xf]
    %v1507 = vld [vmem:[%s1497 + $0x24] sm:$0xf]
    %v1508 = vld [vmem:[%s1497 + $0x28] sm:$0xf]
    %v1509 = vld [vmem:[%s1497 + $0x2c] sm:$0xf]
    %v1510 = vld [vmem:[%s1497 + $0x30] sm:$0xf]
    %v1511 = vld [vmem:[%s1497 + $0x34] sm:$0xf]
    %v1512 = vld [vmem:[%s1497 + $0x38] sm:$0xf]
    %v1513 = vld [vmem:[%s1497 + $0x3c] sm:$0xf]
    %v1514 = vld [vmem:[%s1497 + $0x40] sm:$0xf]
    %v1515 = vld [vmem:[%s1497 + $0x44] sm:$0xf]
    %v1516 = vld [vmem:[%s1497 + $0x48] sm:$0xf]
    %v1517 = vld [vmem:[%s1497 + $0x4c] sm:$0xf]
    %v1518 = vld [vmem:[%s1497 + $0x50] sm:$0xf]
    %v1519 = vld [vmem:[%s1497 + $0x54] sm:$0xf]
    %v1520 = vld [vmem:[%s1497 + $0x58] sm:$0xf]
    %v1521 = vld [vmem:[%s1497 + $0x5c] sm:$0xf]
    %v1522 = vld [vmem:[%s1497 + $0x60] sm:$0xf]
    %v1523 = vld [vmem:[%s1497 + $0x64] sm:$0xf]
    %v1524 = vld [vmem:[%s1497 + $0x68] sm:$0xf]
    %v1525 = vld [vmem:[%s1497 + $0x6c] sm:$0xf]
    %v1526 = vld [vmem:[%s1497 + $0x70] sm:$0xf]
    %v1527 = vld [vmem:[%s1497 + $0x74] sm:$0xf]
    %v1528 = vld [vmem:[%s1497 + $0x78] sm:$0xf]
    %v1529 = vld [vmem:[%s1497 + $0x7c] sm:$0xf]
    %v1532 = vunpack.c.l.b16 %v1495
    %v1533 = vunpack.c.h.b16 %v1495
    %v1534 = vunpack.c.l.b16 %v1496
    %v1535 = vunpack.c.h.b16 %v1496
    %v1536 = vpack.c.b16 %v1329, %v1532
    %v1537 = vpack.c.b16 %v1330, %v1533
    %v1538 = vpack.c.b16 %v1534, %v1534
    %v1539 = vpack.c.b16 %v1535, %v1535
    %v1540 = vrot.slane %v1536, 2
    %v1541 = vrot.slane %v1339, 2
    %v1542 = vsel %vm456, %v1540, %v1541
    %v1543 = vrot.slane %v1537, 2
    %v1544 = vrot.slane %v1340, 2
    %v1545 = vsel %vm456, %v1543, %v1544
    %v1546 = vrot.slane %v1538, 2
    %v1547 = vsel %vm456, %v1541, %v1546
    %v1548 = vrot.slane %v1539, 2
    %v1549 = vsel %vm456, %v1544, %v1548
    %v1586 = vunpack.c.l.b16 %v1498
    %v1587 = vunpack.c.l.b16 %v1499
    %v1588 = vunpack.c.l.b16 %v1500
    %v1589 = vunpack.c.l.b16 %v1501
    %v1590 = vunpack.c.l.b16 %v1502
    %v1591 = vunpack.c.l.b16 %v1503
    %v1592 = vunpack.c.l.b16 %v1504
    %v1593 = vunpack.c.l.b16 %v1505
    %v1594 = vunpack.c.l.b16 %v1506
    %v1595 = vunpack.c.l.b16 %v1507
    %v1596 = vunpack.c.l.b16 %v1508
    %v1597 = vunpack.c.l.b16 %v1509
    %v1598 = vunpack.c.l.b16 %v1510
    %v1599 = vunpack.c.l.b16 %v1511
    %v1600 = vunpack.c.l.b16 %v1512
    %v1601 = vunpack.c.l.b16 %v1513
    %v1602 = vunpack.c.l.b16 %v1514
    %v1603 = vunpack.c.l.b16 %v1515
    %v1604 = vunpack.c.l.b16 %v1516
    %v1605 = vunpack.c.l.b16 %v1517
    %v1606 = vunpack.c.l.b16 %v1518
    %v1607 = vunpack.c.l.b16 %v1519
    %v1608 = vunpack.c.l.b16 %v1520
    %v1609 = vunpack.c.l.b16 %v1521
    %v1610 = vunpack.c.l.b16 %v1522
    %v1611 = vunpack.c.l.b16 %v1523
    %v1612 = vunpack.c.l.b16 %v1524
    %v1613 = vunpack.c.l.b16 %v1525
    %v1614 = vunpack.c.l.b16 %v1526
    %v1615 = vunpack.c.l.b16 %v1527
    %v1616 = vunpack.c.l.b16 %v1528
    %v1617 = vunpack.c.l.b16 %v1529
    %v1618 = vpack.c.b16 %v1587, %v1586
    %v1619 = vpack.c.b16 %v1589, %v1588
    %v1620 = vpack.c.b16 %v1591, %v1590
    %v1621 = vpack.c.b16 %v1593, %v1592
    %v1622 = vpack.c.b16 %v1595, %v1594
    %v1623 = vpack.c.b16 %v1597, %v1596
    %v1624 = vpack.c.b16 %v1599, %v1598
    %v1625 = vpack.c.b16 %v1601, %v1600
    %v1626 = vpack.c.b16 %v1603, %v1602
    %v1627 = vpack.c.b16 %v1605, %v1604
    %v1628 = vpack.c.b16 %v1607, %v1606
    %v1629 = vpack.c.b16 %v1609, %v1608
    %v1630 = vpack.c.b16 %v1611, %v1610
    %v1631 = vpack.c.b16 %v1613, %v1612
    %v1632 = vpack.c.b16 %v1615, %v1614
    %v1633 = vpack.c.b16 %v1617, %v1616
    %1650 = vmatpush.bf16.msra.mxu0 %v1625
    %1651 = vmatpush.bf16.msra.mxu0 %v1624
    %1652 = vmatpush.bf16.msra.mxu0 %v1623
    %1653 = vmatpush.bf16.msra.mxu0 %v1622
    %1654 = vmatpush.bf16.msra.mxu0 %v1621
    %1655 = vmatpush.bf16.msra.mxu0 %v1620
    %1656 = vmatpush.bf16.msra.mxu0 %v1619
    %1657 = vmatpush.bf16.msra.mxu0 %v1618
    %1658 = vmatmul.bf16.gmra.mxu0 %v1542
    %v1659 = vpop.f32.mrf.mxu0
    %v1660 = vadd.f32 0.0, %v1659
    %v1661 = vpop.f32.mrf.mxu0
    %v1662 = vadd.f32 0.0, %v1661
    %1663 = vmatmul.bf16.gmra.mxu0 %v1547
    %v1664 = vpop.f32.mrf.mxu0
    %v1665 = vadd.f32 0.0, %v1664
    %v1666 = vpop.f32.mrf.mxu0
    %v1667 = vadd.f32 0.0, %v1666
    %1668 = vdwg.mxu0
    %1669 = vmatpush.bf16.msra.mxu0 %v1633
    %1670 = vmatpush.bf16.msra.mxu0 %v1632
    %1671 = vmatpush.bf16.msra.mxu0 %v1631
    %1672 = vmatpush.bf16.msra.mxu0 %v1630
    %1673 = vmatpush.bf16.msra.mxu0 %v1629
    %1674 = vmatpush.bf16.msra.mxu0 %v1628
    %1675 = vmatpush.bf16.msra.mxu0 %v1627
    %1676 = vmatpush.bf16.msra.mxu0 %v1626
    %1677 = vmatmul.bf16.gmra.mxu0 %v1545
    %v1678 = vpop.f32.mrf.mxu0
    %v1679 = vadd.f32 %v1660, %v1678
    %v1680 = vpop.f32.mrf.mxu0
    %v1681 = vadd.f32 %v1662, %v1680
    %1682 = vmatmul.bf16.gmra.mxu0 %v1549
    %v1683 = vpop.f32.mrf.mxu0
    %v1684 = vadd.f32 %v1665, %v1683
    %v1685 = vpop.f32.mrf.mxu0
    %v1686 = vadd.f32 %v1667, %v1685
    %1687 = vdwg.mxu0
    %v1688 = vadd.f32 %v1280, %v1679
    %v1689 = vadd.f32 %v1281, %v1681
    %v1690 = vadd.f32 %v1282, %v1684
    %v1691 = vadd.f32 %v1283, %v1686
    %v1692 = vld [vmem:[#allocation3 + $0x8] sm:$0x8]
    %v1693 = vld [vmem:[#allocation3 + $0x10] sm:$0xf]
    %v1694 = vld [vmem:[#allocation3 + $0x18] sm:$0xf]
    %v1695 = vld [vmem:[#allocation3 + $0x20] sm:$0xf]
    %v1696 = vld [vmem:[#allocation3 + $0x28] sm:$0x7]
    %v1697 = vld [vmem:[#allocation12] sm:$0xf]
    %v1698 = vld [vmem:[#allocation12 + $0x4] sm:$0xf]
    %v1699 = vld [vmem:[#allocation12 + $0x8] sm:$0xf]
    %v1700 = vld [vmem:[#allocation12 + $0xc] sm:$0xf]
    %v1701 = vld [vmem:[#allocation12 + $0x10] sm:$0xf]
    %v1702 = vld [vmem:[#allocation12 + $0x14] sm:$0xf]
    %v1703 = vld [vmem:[#allocation12 + $0x18] sm:$0xf]
    %v1704 = vld [vmem:[#allocation12 + $0x1c] sm:$0xf]
    %v1705 = vld [vmem:[#allocation12 + $0x20] sm:$0xf]
    %v1706 = vld [vmem:[#allocation12 + $0x24] sm:$0xf]
    %v1707 = vld [vmem:[#allocation12 + $0x28] sm:$0xf]
    %v1708 = vld [vmem:[#allocation12 + $0x2c] sm:$0xf]
    %v1709 = vld [vmem:[#allocation12 + $0x30] sm:$0xf]
    %v1710 = vld [vmem:[#allocation12 + $0x34] sm:$0xf]
    %v1711 = vld [vmem:[#allocation12 + $0x38] sm:$0xf]
    %v1712 = vld [vmem:[#allocation12 + $0x3c] sm:$0xf]
    %v1718 = vunpack.c.l.b16 %v1692
    %v1719 = vunpack.c.l.b16 %v1693
    %v1720 = vunpack.c.l.b16 %v1694
    %v1721 = vunpack.c.l.b16 %v1695
    %v1722 = vunpack.c.l.b16 %v1696
    %v1723 = vpack.c.b16 %v1719, %v1718
    %v1724 = vpack.c.b16 %v1721, %v1720
    %v1725 = vpack.c.b16 %v1722, %v1722
    %v1726 = vrot.slane %v1723, 3
    %v1727 = vrot.slane %v1724, 3
    %v1728 = vsel %vm793, %v1726, %v1727
    %v1729 = vrot.slane %v1725, 3
    %v1730 = vsel %vm793, %v1727, %v1729
    %v1749 = vunpack.c.l.b16 %v1697
    %v1750 = vunpack.c.l.b16 %v1698
    %v1751 = vunpack.c.l.b16 %v1699
    %v1752 = vunpack.c.l.b16 %v1700
    %v1753 = vunpack.c.l.b16 %v1701
    %v1754 = vunpack.c.l.b16 %v1702
    %v1755 = vunpack.c.l.b16 %v1703
    %v1756 = vunpack.c.l.b16 %v1704
    %v1757 = vunpack.c.l.b16 %v1705
    %v1758 = vunpack.c.l.b16 %v1706
    %v1759 = vunpack.c.l.b16 %v1707
    %v1760 = vunpack.c.l.b16 %v1708
    %v1761 = vunpack.c.l.b16 %v1709
    %v1762 = vunpack.c.l.b16 %v1710
    %v1763 = vunpack.c.l.b16 %v1711
    %v1764 = vunpack.c.l.b16 %v1712
    %v1765 = vpack.c.b16 %v1750, %v1749
    %v1766 = vpack.c.b16 %v1752, %v1751
    %v1767 = vpack.c.b16 %v1754, %v1753
    %v1768 = vpack.c.b16 %v1756, %v1755
    %v1769 = vpack.c.b16 %v1758, %v1757
    %v1770 = vpack.c.b16 %v1760, %v1759
    %v1771 = vpack.c.b16 %v1762, %v1761
    %v1772 = vpack.c.b16 %v1764, %v1763
    %1781 = vmatpush.bf16.msra.mxu0 %v1772
    %1782 = vmatpush.bf16.msra.mxu0 %v1771
    %1783 = vmatpush.bf16.msra.mxu0 %v1770
    %1784 = vmatpush.bf16.msra.mxu0 %v1769
    %1785 = vmatpush.bf16.msra.mxu0 %v1768
    %1786 = vmatpush.bf16.msra.mxu0 %v1767
    %1787 = vmatpush.bf16.msra.mxu0 %v1766
    %1788 = vmatpush.bf16.msra.mxu0 %v1765
    %1789 = vmatmul.bf16.gmra.mxu0 %v1728
    %v1790 = vpop.f32.mrf.mxu0
    %v1791 = vadd.f32 0.0, %v1790
    %v1792 = vpop.f32.mrf.mxu0
    %v1793 = vadd.f32 0.0, %v1792
    %1794 = vmatmul.bf16.gmra.mxu0 %v1730
    %v1795 = vpop.f32.mrf.mxu0
    %v1796 = vadd.f32 0.0, %v1795
    %v1797 = vpop.f32.mrf.mxu0
    %v1798 = vadd.f32 0.0, %v1797
    %1799 = vdwg.mxu0
    %v1800 = vadd.f32 %v1491, %v1791
    %v1801 = vadd.f32 %v1492, %v1793
    %v1802 = vadd.f32 %v1493, %v1796
    %v1803 = vadd.f32 %v1494, %v1798
    %v1804 = vadd.f32 %v1688, %v1800
    %v1805 = vadd.f32 %v1689, %v1801
    %v1806 = vadd.f32 %v1690, %v1802
    %v1807 = vadd.f32 %v1691, %v1803
    %v1808 = vld [vmem:[%s6] sm:$0x1]
    %v1810 = vperm.slane %v1808, 0
    %v1812 = vadd.f32 %v1804, %v1810
    %v1813 = vadd.f32 %v1805, %v1810
    %v1814 = vadd.f32 %v1806, %v1810
    %v1815 = vadd.f32 %v1807, %v1810
    %v1816 = vld [vmem:[%s7] sm:$0x1]
    %v1817 = vld [vmem:[%s8] sm:$0x1]
    %v1818 = vadd.f32 %v1812, %v1813
    %v1819 = vadd.f32 %v1818, %v1814
    %v1820 = vadd.f32 %v1819, %v1815
    %v1821 = vrot.slane %v1820, 4
    %v1822 = vadd.f32 %v1820, %v1821
    %v1823 = vrot.slane %v1822, 2
    %v1824 = vadd.f32 %v1822, %v1823
    %v1825 = vrot.slane %v1824, 1
    %v1826 = vadd.f32 %v1824, %v1825
    %v1827 = vmul.f32 %v1812, %v1812
    %v1828 = vmul.f32 %v1813, %v1813
    %v1829 = vmul.f32 %v1814, %v1814
    %v1830 = vmul.f32 %v1815, %v1815
    %v1831 = vadd.f32 %v1827, %v1828
    %v1832 = vadd.f32 %v1831, %v1829
    %v1833 = vadd.f32 %v1832, %v1830
    %v1834 = vrot.slane %v1833, 4
    %v1835 = vadd.f32 %v1833, %v1834
    %v1836 = vrot.slane %v1835, 2
    %v1837 = vadd.f32 %v1835, %v1836
    %v1838 = vrot.slane %v1837, 1
    %v1839 = vadd.f32 %v1837, %v1838
    %v1840 = vsel %vm217, %v1826, %v1839
    %1841 = vmatpush.msra.mxu0 %v132
    %1842 = vmatpush.msra.mxu0 %v131
    %1843 = vmatpush.msra.mxu0 %v130
    %1844 = vmatpush.msra.mxu0 %v129
    %1845 = vmatpush.msra.mxu0 %v128
    %1846 = vmatpush.msra.mxu0 %v127
    %1847 = vmatpush.msra.mxu0 %v126
    %1848 = vmatpush.msra.mxu0 %v125
    %1849 = vmatpush.msra.mxu0 %v124
    %1850 = vmatpush.msra.mxu0 %v123
    %1851 = vmatpush.msra.mxu0 %v122
    %1852 = vmatpush.msra.mxu0 %v121
    %1853 = vmatpush.msra.mxu0 %v120
    %1854 = vmatpush.msra.mxu0 %v119
    %1855 = vmatpush.msra.mxu0 %v118
    %1856 = vmatpush.msra.mxu0 %v117
    %1857 = vmatmul.f32.gmra.mxu0 %v1840
    %v1858 = vpop.f32.mrf.mxu0
    %v1859 = vadd.f32 0.0, %v1858
    %1860 = vdwg.mxu0
    %v1861 = vmul.f32 %v1859, 0.001953125
    %v1862 = vmul.f32 %v1861, %v1861
    %v1864 = vrot.slane %v1862, 7
    %v1866 = vsub.f32 %v1861, %v1864
    %v1867 = vadd.f32 %v1866, 1e-05
    %v1868 = vrsqrt.pop %v1867
    %v1869 = vmul.f32 %v1868, %v1867
    %v1870 = vmul.f32 %v1869, %v1868
    %v1871 = vmul.f32 0.5, %v1870
    %v1872 = vsub.f32 1.5, %v1871
    %v1873 = vmul.f32 %v1868, %v1872
    %vm1874 = vweird.f32 %v1867
    %vm1875 = vweird.f32 %v1868
    %vm1876 = vmor %vm1874, %vm1875
    %v1877 = vsel %vm1876, %v1868, %v1873
    %v1879 = vperm.slane %v1816, 0
    %v1881 = vmul.f32 %v1877, %v1879
    %v1883 = vrot.slane %v1881, 1
    %v1885 = vmul.f32 %v1861, %v1883
    %v1886 = vsub.f32 %v1817, %v1885
    %v1887 = vperm.slane %v1881, 1
    %v1888 = vmul.f32 %v1812, %v1887
    %v1889 = vmul.f32 %v1813, %v1887
    %v1890 = vmul.f32 %v1814, %v1887
    %v1891 = vmul.f32 %v1815, %v1887
    %v1893 = vperm.slane %v1886, 0
    %v1895 = vadd.f32 %v1888, %v1893
    %v1896 = vadd.f32 %v1889, %v1893
    %v1897 = vadd.f32 %v1890, %v1893
    %v1898 = vadd.f32 %v1891, %v1893
    %v1899 = vmax.f32 %v1895, 0.0
    %v1900 = vmax.f32 %v1896, 0.0
    %v1901 = vmax.f32 %v1897, 0.0
    %v1902 = vmax.f32 %v1898, 0.0
    %1903 = vst [vmem:[#allocation2] sm:$0x7f] 0.0
    %1904 = vst [vmem:[#allocation2 + $0x7] sm:$0xff] %v1899
    %1905 = vst [vmem:[#allocation2 + $0xf] sm:$0xff] %v1900
    %1906 = vst [vmem:[#allocation2 + $0x17] sm:$0xff] %v1901
    %1907 = vst [vmem:[#allocation2 + $0x1f] sm:$0xff] %v1902
    %1908 = vst [vmem:[#allocation2 + $0x27] sm:$0xff] 0.0
    %1909 = vst [vmem:[#allocation2 + $0x2f] sm:$0x1] 0.0
    %v1910 = vld [vmem:[#allocation2] ss:$2 sm:$0xff]
    %v1911 = vld [vmem:[%s145] ss:$2 sm:$0xff]
    %v1912 = vld [vmem:[%s147] ss:$2 sm:$0xff]
    %v1913 = vpack.c.bf16 %v1910, %v1910
    %v1914 = vpack.c.bf16 %v1911, %v1911
    %v1915 = vpack.c.bf16 %v1912, %v1912
    %1916 = vst [vmem:[#allocation3] sm:$0xf] %v1913
    %1917 = vst [vmem:[#allocation3 + $0x8] sm:$0xf] %v1914
    %1918 = vst [vmem:[#allocation3 + $0x10] sm:$0xf] %v1915
    %v1919 = vld [vmem:[%s149] ss:$2 sm:$0xff]
    %v1920 = vld [vmem:[%s151] ss:$2 sm:$0xff]
    %v1921 = vld [vmem:[%s153] ss:$2 sm:$0xff]
    %v1922 = vpack.c.bf16 %v1919, %v1919
    %v1923 = vpack.c.bf16 %v1920, %v1920
    %v1924 = vpack.c.bf16 %v1921, %v1921
    %1925 = vst [vmem:[#allocation3 + $0x4] sm:$0xf] %v1922
    %1926 = vst [vmem:[#allocation3 + $0xc] sm:$0xf] %v1923
    %1927 = vst [vmem:[#allocation3 + $0x14] sm:$0xf] %v1924
    %s1928 = scalar_lea.vmem [#allocation2], 2
    %v1929 = vld [vmem:[%s1928] ss:$2 sm:$0xff]
    %s1930 = scalar_lea.vmem [#allocation2], 18
    %v1931 = vld [vmem:[%s1930] ss:$2 sm:$0xff]
    %s1932 = scalar_lea.vmem [#allocation2], 34
    %v1933 = vld [vmem:[%s1932] ss:$2 sm:$0x3f]
    %v1934 = vpack.c.bf16 %v1929, %v1929
    %v1935 = vpack.c.bf16 %v1931, %v1931
    %v1936 = vpack.c.bf16 %v1933, %v1933
    %1937 = vst [vmem:[#allocation4] sm:$0xf] %v1934
    %1938 = vst [vmem:[#allocation4 + $0x8] sm:$0xf] %v1935
    %1939 = vst [vmem:[#allocation4 + $0x10] sm:$0x7] %v1936
    %s1940 = scalar_lea.vmem [#allocation2], 3
    %v1941 = vld [vmem:[%s1940] ss:$2 sm:$0xff]
    %s1942 = scalar_lea.vmem [#allocation2], 19
    %v1943 = vld [vmem:[%s1942] ss:$2 sm:$0xff]
    %s1944 = scalar_lea.vmem [#allocation2], 35
    %v1945 = vld [vmem:[%s1944] ss:$2 sm:$0x3f]
    %v1946 = vpack.c.bf16 %v1941, %v1941
    %v1947 = vpack.c.bf16 %v1943, %v1943
    %v1948 = vpack.c.bf16 %v1945, %v1945
    %1949 = vst [vmem:[#allocation4 + $0x4] sm:$0xf] %v1946
    %1950 = vst [vmem:[#allocation4 + $0xc] sm:$0xf] %v1947
    %1951 = vst [vmem:[#allocation4 + $0x14] sm:$0x7] %v1948
    %v1952 = vld [vmem:[#allocation3] sm:$0xff]
    %v1953 = vld [vmem:[#allocation3 + $0x8] sm:$0xff]
    %v1954 = vld [vmem:[#allocation14] sm:$0xf]
    %v1955 = vld [vmem:[#allocation14 + $0x4] sm:$0xf]
    %v1956 = vld [vmem:[#allocation14 + $0x8] sm:$0xf]
    %v1957 = vld [vmem:[#allocation14 + $0xc] sm:$0xf]
    %v1958 = vld [vmem:[#allocation14 + $0x10] sm:$0xf]
    %v1959 = vld [vmem:[#allocation14 + $0x14] sm:$0xf]
    %v1960 = vld [vmem:[#allocation14 + $0x18] sm:$0xf]
    %v1961 = vld [vmem:[#allocation14 + $0x1c] sm:$0xf]
    %v1962 = vld [vmem:[#allocation14 + $0x20] sm:$0xf]
    %v1963 = vld [vmem:[#allocation14 + $0x24] sm:$0xf]
    %v1964 = vld [vmem:[#allocation14 + $0x28] sm:$0xf]
    %v1965 = vld [vmem:[#allocation14 + $0x2c] sm:$0xf]
    %v1966 = vld [vmem:[#allocation14 + $0x30] sm:$0xf]
    %v1967 = vld [vmem:[#allocation14 + $0x34] sm:$0xf]
    %v1968 = vld [vmem:[#allocation14 + $0x38] sm:$0xf]
    %v1969 = vld [vmem:[#allocation14 + $0x3c] sm:$0xf]
    %v1970 = vld [vmem:[#allocation14 + $0x40] sm:$0xf]
    %v1971 = vld [vmem:[#allocation14 + $0x44] sm:$0xf]
    %v1972 = vld [vmem:[#allocation14 + $0x48] sm:$0xf]
    %v1973 = vld [vmem:[#allocation14 + $0x4c] sm:$0xf]
    %v1974 = vld [vmem:[#allocation14 + $0x50] sm:$0xf]
    %v1975 = vld [vmem:[#allocation14 + $0x54] sm:$0xf]
    %v1976 = vld [vmem:[#allocation14 + $0x58] sm:$0xf]
    %v1977 = vld [vmem:[#allocation14 + $0x5c] sm:$0xf]
    %v1978 = vld [vmem:[#allocation14 + $0x60] sm:$0xf]
    %v1979 = vld [vmem:[#allocation14 + $0x64] sm:$0xf]
    %v1980 = vld [vmem:[#allocation14 + $0x68] sm:$0xf]
    %v1981 = vld [vmem:[#allocation14 + $0x6c] sm:$0xf]
    %v1982 = vld [vmem:[#allocation14 + $0x70] sm:$0xf]
    %v1983 = vld [vmem:[#allocation14 + $0x74] sm:$0xf]
    %v1984 = vld [vmem:[#allocation14 + $0x78] sm:$0xf]
    %v1985 = vld [vmem:[#allocation14 + $0x7c] sm:$0xf]
    %v1986 = vld [vmem:[#allocation4] sm:$0xff]
    %v1987 = vld [vmem:[#allocation4 + $0x8] sm:$0xff]
    %s1988 = scalar_lea.vmem [#allocation14], 128
    %v1989 = vld [vmem:[%s1988] sm:$0xf]
    %v1990 = vld [vmem:[%s1988 + $0x4] sm:$0xf]
    %v1991 = vld [vmem:[%s1988 + $0x8] sm:$0xf]
    %v1992 = vld [vmem:[%s1988 + $0xc] sm:$0xf]
    %v1993 = vld [vmem:[%s1988 + $0x10] sm:$0xf]
    %v1994 = vld [vmem:[%s1988 + $0x14] sm:$0xf]
    %v1995 = vld [vmem:[%s1988 + $0x18] sm:$0xf]
    %v1996 = vld [vmem:[%s1988 + $0x1c] sm:$0xf]
    %v1997 = vld [vmem:[%s1988 + $0x20] sm:$0xf]
    %v1998 = vld [vmem:[%s1988 + $0x24] sm:$0xf]
    %v1999 = vld [vmem:[%s1988 + $0x28] sm:$0xf]
    %v2000 = vld [vmem:[%s1988 + $0x2c] sm:$0xf]
    %v2001 = vld [vmem:[%s1988 + $0x30] sm:$0xf]
    %v2002 = vld [vmem:[%s1988 + $0x34] sm:$0xf]
    %v2003 = vld [vmem:[%s1988 + $0x38] sm:$0xf]
    %v2004 = vld [vmem:[%s1988 + $0x3c] sm:$0xf]
    %v2005 = vld [vmem:[%s1988 + $0x40] sm:$0xf]
    %v2006 = vld [vmem:[%s1988 + $0x44] sm:$0xf]
    %v2007 = vld [vmem:[%s1988 + $0x48] sm:$0xf]
    %v2008 = vld [vmem:[%s1988 + $0x4c] sm:$0xf]
    %v2009 = vld [vmem:[%s1988 + $0x50] sm:$0xf]
    %v2010 = vld [vmem:[%s1988 + $0x54] sm:$0xf]
    %v2011 = vld [vmem:[%s1988 + $0x58] sm:$0xf]
    %v2012 = vld [vmem:[%s1988 + $0x5c] sm:$0xf]
    %v2013 = vld [vmem:[%s1988 + $0x60] sm:$0xf]
    %v2014 = vld [vmem:[%s1988 + $0x64] sm:$0xf]
    %v2015 = vld [vmem:[%s1988 + $0x68] sm:$0xf]
    %v2016 = vld [vmem:[%s1988 + $0x6c] sm:$0xf]
    %v2017 = vld [vmem:[%s1988 + $0x70] sm:$0xf]
    %v2018 = vld [vmem:[%s1988 + $0x74] sm:$0xf]
    %v2019 = vld [vmem:[%s1988 + $0x78] sm:$0xf]
    %v2020 = vld [vmem:[%s1988 + $0x7c] sm:$0xf]
    %v2021 = vld [vmem:[#allocation3] sm:$0xee]
    %v2022 = vld [vmem:[#allocation3 + $0x10] sm:$0x11]
    %s2023 = scalar_lea.vmem [#allocation14], 256
    %v2024 = vld [vmem:[%s2023] sm:$0xf]
    %v2025 = vld [vmem:[%s2023 + $0x4] sm:$0xf]
    %v2026 = vld [vmem:[%s2023 + $0x8] sm:$0xf]
    %v2027 = vld [vmem:[%s2023 + $0xc] sm:$0xf]
    %v2028 = vld [vmem:[%s2023 + $0x10] sm:$0xf]
    %v2029 = vld [vmem:[%s2023 + $0x14] sm:$0xf]
    %v2030 = vld [vmem:[%s2023 + $0x18] sm:$0xf]
    %v2031 = vld [vmem:[%s2023 + $0x1c] sm:$0xf]
    %v2032 = vld [vmem:[%s2023 + $0x20] sm:$0xf]
    %v2033 = vld [vmem:[%s2023 + $0x24] sm:$0xf]
    %v2034 = vld [vmem:[%s2023 + $0x28] sm:$0xf]
    %v2035 = vld [vmem:[%s2023 + $0x2c] sm:$0xf]
    %v2036 = vld [vmem:[%s2023 + $0x30] sm:$0xf]
    %v2037 = vld [vmem:[%s2023 + $0x34] sm:$0xf]
    %v2038 = vld [vmem:[%s2023 + $0x38] sm:$0xf]
    %v2039 = vld [vmem:[%s2023 + $0x3c] sm:$0xf]
    %v2040 = vld [vmem:[%s2023 + $0x40] sm:$0xf]
    %v2041 = vld [vmem:[%s2023 + $0x44] sm:$0xf]
    %v2042 = vld [vmem:[%s2023 + $0x48] sm:$0xf]
    %v2043 = vld [vmem:[%s2023 + $0x4c] sm:$0xf]
    %v2044 = vld [vmem:[%s2023 + $0x50] sm:$0xf]
    %v2045 = vld [vmem:[%s2023 + $0x54] sm:$0xf]
    %v2046 = vld [vmem:[%s2023 + $0x58] sm:$0xf]
    %v2047 = vld [vmem:[%s2023 + $0x5c] sm:$0xf]
    %v2048 = vld [vmem:[%s2023 + $0x60] sm:$0xf]
    %v2049 = vld [vmem:[%s2023 + $0x64] sm:$0xf]
    %v2050 = vld [vmem:[%s2023 + $0x68] sm:$0xf]
    %v2051 = vld [vmem:[%s2023 + $0x6c] sm:$0xf]
    %v2052 = vld [vmem:[%s2023 + $0x70] sm:$0xf]
    %v2053 = vld [vmem:[%s2023 + $0x74] sm:$0xf]
    %v2054 = vld [vmem:[%s2023 + $0x78] sm:$0xf]
    %v2055 = vld [vmem:[%s2023 + $0x7c] sm:$0xf]
    %v2059 = vunpack.c.l.b16 %v2021
    %v2060 = vunpack.c.h.b16 %v2021
    %v2061 = vunpack.c.l.b16 %v1953
    %v2062 = vunpack.c.h.b16 %v1953
    %v2063 = vunpack.c.l.b16 %v2022
    %v2064 = vunpack.c.h.b16 %v2022
    %v2065 = vpack.c.b16 %v2061, %v2059
    %v2066 = vpack.c.b16 %v2062, %v2060
    %v2067 = vpack.c.b16 %v2063, %v2063
    %v2068 = vpack.c.b16 %v2064, %v2064
    %v2069 = vrot.slane %v2065, 1
    %v2070 = vrot.slane %v2067, 1
    %v2071 = vsel %vm952, %v2069, %v2070
    %v2072 = vrot.slane %v2066, 1
    %v2073 = vrot.slane %v2068, 1
    %v2074 = vsel %vm952, %v2072, %v2073
    %v2109 = vunpack.c.l.b16 %v2024
    %v2110 = vunpack.c.l.b16 %v2025
    %v2111 = vunpack.c.l.b16 %v2026
    %v2112 = vunpack.c.l.b16 %v2027
    %v2113 = vunpack.c.l.b16 %v2028
    %v2114 = vunpack.c.l.b16 %v2029
    %v2115 = vunpack.c.l.b16 %v2030
    %v2116 = vunpack.c.l.b16 %v2031
    %v2117 = vunpack.c.l.b16 %v2032
    %v2118 = vunpack.c.l.b16 %v2033
    %v2119 = vunpack.c.l.b16 %v2034
    %v2120 = vunpack.c.l.b16 %v2035
    %v2121 = vunpack.c.l.b16 %v2036
    %v2122 = vunpack.c.l.b16 %v2037
    %v2123 = vunpack.c.l.b16 %v2038
    %v2124 = vunpack.c.l.b16 %v2039
    %v2125 = vunpack.c.l.b16 %v2040
    %v2126 = vunpack.c.l.b16 %v2041
    %v2127 = vunpack.c.l.b16 %v2042
    %v2128 = vunpack.c.l.b16 %v2043
    %v2129 = vunpack.c.l.b16 %v2044
    %v2130 = vunpack.c.l.b16 %v2045
    %v2131 = vunpack.c.l.b16 %v2046
    %v2132 = vunpack.c.l.b16 %v2047
    %v2133 = vunpack.c.l.b16 %v2048
    %v2134 = vunpack.c.l.b16 %v2049
    %v2135 = vunpack.c.l.b16 %v2050
    %v2136 = vunpack.c.l.b16 %v2051
    %v2137 = vunpack.c.l.b16 %v2052
    %v2138 = vunpack.c.l.b16 %v2053
    %v2139 = vunpack.c.l.b16 %v2054
    %v2140 = vunpack.c.l.b16 %v2055
    %v2141 = vpack.c.b16 %v2110, %v2109
    %v2142 = vpack.c.b16 %v2112, %v2111
    %v2143 = vpack.c.b16 %v2114, %v2113
    %v2144 = vpack.c.b16 %v2116, %v2115
    %v2145 = vpack.c.b16 %v2118, %v2117
    %v2146 = vpack.c.b16 %v2120, %v2119
    %v2147 = vpack.c.b16 %v2122, %v2121
    %v2148 = vpack.c.b16 %v2124, %v2123
    %v2149 = vpack.c.b16 %v2126, %v2125
    %v2150 = vpack.c.b16 %v2128, %v2127
    %v2151 = vpack.c.b16 %v2130, %v2129
    %v2152 = vpack.c.b16 %v2132, %v2131
    %v2153 = vpack.c.b16 %v2134, %v2133
    %v2154 = vpack.c.b16 %v2136, %v2135
    %v2155 = vpack.c.b16 %v2138, %v2137
    %v2156 = vpack.c.b16 %v2140, %v2139
    %2173 = vmatpush.bf16.msra.mxu0 %v2148
    %2174 = vmatpush.bf16.msra.mxu0 %v2147
    %2175 = vmatpush.bf16.msra.mxu0 %v2146
    %2176 = vmatpush.bf16.msra.mxu0 %v2145
    %2177 = vmatpush.bf16.msra.mxu0 %v2144
    %2178 = vmatpush.bf16.msra.mxu0 %v2143
    %2179 = vmatpush.bf16.msra.mxu0 %v2142
    %2180 = vmatpush.bf16.msra.mxu0 %v2141
    %2181 = vmatmul.bf16.gmra.mxu0 %v2071
    %v2182 = vpop.f32.mrf.mxu0
    %v2183 = vadd.f32 0.0, %v2182
    %v2184 = vpop.f32.mrf.mxu0
    %v2185 = vadd.f32 0.0, %v2184
    %2186 = vdwg.mxu0
    %2187 = vmatpush.bf16.msra.mxu0 %v2156
    %2188 = vmatpush.bf16.msra.mxu0 %v2155
    %2189 = vmatpush.bf16.msra.mxu0 %v2154
    %2190 = vmatpush.bf16.msra.mxu0 %v2153
    %2191 = vmatpush.bf16.msra.mxu0 %v2152
    %2192 = vmatpush.bf16.msra.mxu0 %v2151
    %2193 = vmatpush.bf16.msra.mxu0 %v2150
    %2194 = vmatpush.bf16.msra.mxu0 %v2149
    %2195 = vmatmul.bf16.gmra.mxu0 %v2074
    %v2196 = vpop.f32.mrf.mxu0
    %v2197 = vadd.f32 %v2183, %v2196
    %v2198 = vpop.f32.mrf.mxu0
    %v2199 = vadd.f32 %v2185, %v2198
    %2200 = vdwg.mxu0
    %v2202 = vunpack.c.l.b16 %v1952
    %v2203 = vunpack.c.h.b16 %v1952
    %v2204 = vpack.c.b16 %v2061, %v2202
    %v2205 = vpack.c.b16 %v2062, %v2203
    %v2240 = vunpack.c.l.b16 %v1954
    %v2241 = vunpack.c.l.b16 %v1955
    %v2242 = vunpack.c.l.b16 %v1956
    %v2243 = vunpack.c.l.b16 %v1957
    %v2244 = vunpack.c.l.b16 %v1958
    %v2245 = vunpack.c.l.b16 %v1959
    %v2246 = vunpack.c.l.b16 %v1960
    %v2247 = vunpack.c.l.b16 %v1961
    %v2248 = vunpack.c.l.b16 %v1962
    %v2249 = vunpack.c.l.b16 %v1963
    %v2250 = vunpack.c.l.b16 %v1964
    %v2251 = vunpack.c.l.b16 %v1965
    %v2252 = vunpack.c.l.b16 %v1966
    %v2253 = vunpack.c.l.b16 %v1967
    %v2254 = vunpack.c.l.b16 %v1968
    %v2255 = vunpack.c.l.b16 %v1969
    %v2256 = vunpack.c.l.b16 %v1970
    %v2257 = vunpack.c.l.b16 %v1971
    %v2258 = vunpack.c.l.b16 %v1972
    %v2259 = vunpack.c.l.b16 %v1973
    %v2260 = vunpack.c.l.b16 %v1974
    %v2261 = vunpack.c.l.b16 %v1975
    %v2262 = vunpack.c.l.b16 %v1976
    %v2263 = vunpack.c.l.b16 %v1977
    %v2264 = vunpack.c.l.b16 %v1978
    %v2265 = vunpack.c.l.b16 %v1979
    %v2266 = vunpack.c.l.b16 %v1980
    %v2267 = vunpack.c.l.b16 %v1981
    %v2268 = vunpack.c.l.b16 %v1982
    %v2269 = vunpack.c.l.b16 %v1983
    %v2270 = vunpack.c.l.b16 %v1984
    %v2271 = vunpack.c.l.b16 %v1985
    %v2272 = vpack.c.b16 %v2241, %v2240
    %v2273 = vpack.c.b16 %v2243, %v2242
    %v2274 = vpack.c.b16 %v2245, %v2244
    %v2275 = vpack.c.b16 %v2247, %v2246
    %v2276 = vpack.c.b16 %v2249, %v2248
    %v2277 = vpack.c.b16 %v2251, %v2250
    %v2278 = vpack.c.b16 %v2253, %v2252
    %v2279 = vpack.c.b16 %v2255, %v2254
    %v2280 = vpack.c.b16 %v2257, %v2256
    %v2281 = vpack.c.b16 %v2259, %v2258
    %v2282 = vpack.c.b16 %v2261, %v2260
    %v2283 = vpack.c.b16 %v2263, %v2262
    %v2284 = vpack.c.b16 %v2265, %v2264
    %v2285 = vpack.c.b16 %v2267, %v2266
    %v2286 = vpack.c.b16 %v2269, %v2268
    %v2287 = vpack.c.b16 %v2271, %v2270
    %2304 = vmatpush.bf16.msra.mxu0 %v2279
    %2305 = vmatpush.bf16.msra.mxu0 %v2278
    %2306 = vmatpush.bf16.msra.mxu0 %v2277
    %2307 = vmatpush.bf16.msra.mxu0 %v2276
    %2308 = vmatpush.bf16.msra.mxu0 %v2275
    %2309 = vmatpush.bf16.msra.mxu0 %v2274
    %2310 = vmatpush.bf16.msra.mxu0 %v2273
    %2311 = vmatpush.bf16.msra.mxu0 %v2272
    %2312 = vmatmul.bf16.gmra.mxu0 %v2204
    %v2313 = vpop.f32.mrf.mxu0
    %v2314 = vadd.f32 %v2197, %v2313
    %v2315 = vpop.f32.mrf.mxu0
    %v2316 = vadd.f32 %v2199, %v2315
    %2317 = vdwg.mxu0
    %2318 = vmatpush.bf16.msra.mxu0 %v2287
    %2319 = vmatpush.bf16.msra.mxu0 %v2286
    %2320 = vmatpush.bf16.msra.mxu0 %v2285
    %2321 = vmatpush.bf16.msra.mxu0 %v2284
    %2322 = vmatpush.bf16.msra.mxu0 %v2283
    %2323 = vmatpush.bf16.msra.mxu0 %v2282
    %2324 = vmatpush.bf16.msra.mxu0 %v2281
    %2325 = vmatpush.bf16.msra.mxu0 %v2280
    %2326 = vmatmul.bf16.gmra.mxu0 %v2205
    %v2327 = vpop.f32.mrf.mxu0
    %v2328 = vadd.f32 %v2314, %v2327
    %v2329 = vpop.f32.mrf.mxu0
    %v2330 = vadd.f32 %v2316, %v2329
    %2331 = vdwg.mxu0
    %v2332 = vld [vmem:[#allocation4] sm:$0xee]
    %v2333 = vld [vmem:[#allocation4 + $0x8] sm:$0xff]
    %v2334 = vld [vmem:[#allocation4 + $0x10] sm:$0x11]
    %s2335 = scalar_lea.vmem [#allocation14], 384
    %v2336 = vld [vmem:[%s2335] sm:$0xf]
    %v2337 = vld [vmem:[%s2335 + $0x4] sm:$0xf]
    %v2338 = vld [vmem:[%s2335 + $0x8] sm:$0xf]
    %v2339 = vld [vmem:[%s2335 + $0xc] sm:$0xf]
    %v2340 = vld [vmem:[%s2335 + $0x10] sm:$0xf]
    %v2341 = vld [vmem:[%s2335 + $0x14] sm:$0xf]
    %v2342 = vld [vmem:[%s2335 + $0x18] sm:$0xf]
    %v2343 = vld [vmem:[%s2335 + $0x1c] sm:$0xf]
    %v2344 = vld [vmem:[%s2335 + $0x20] sm:$0xf]
    %v2345 = vld [vmem:[%s2335 + $0x24] sm:$0xf]
    %v2346 = vld [vmem:[%s2335 + $0x28] sm:$0xf]
    %v2347 = vld [vmem:[%s2335 + $0x2c] sm:$0xf]
    %v2348 = vld [vmem:[%s2335 + $0x30] sm:$0xf]
    %v2349 = vld [vmem:[%s2335 + $0x34] sm:$0xf]
    %v2350 = vld [vmem:[%s2335 + $0x38] sm:$0xf]
    %v2351 = vld [vmem:[%s2335 + $0x3c] sm:$0xf]
    %v2352 = vld [vmem:[%s2335 + $0x40] sm:$0xf]
    %v2353 = vld [vmem:[%s2335 + $0x44] sm:$0xf]
    %v2354 = vld [vmem:[%s2335 + $0x48] sm:$0xf]
    %v2355 = vld [vmem:[%s2335 + $0x4c] sm:$0xf]
    %v2356 = vld [vmem:[%s2335 + $0x50] sm:$0xf]
    %v2357 = vld [vmem:[%s2335 + $0x54] sm:$0xf]
    %v2358 = vld [vmem:[%s2335 + $0x58] sm:$0xf]
    %v2359 = vld [vmem:[%s2335 + $0x5c] sm:$0xf]
    %v2360 = vld [vmem:[%s2335 + $0x60] sm:$0xf]
    %v2361 = vld [vmem:[%s2335 + $0x64] sm:$0xf]
    %v2362 = vld [vmem:[%s2335 + $0x68] sm:$0xf]
    %v2363 = vld [vmem:[%s2335 + $0x6c] sm:$0xf]
    %v2364 = vld [vmem:[%s2335 + $0x70] sm:$0xf]
    %v2365 = vld [vmem:[%s2335 + $0x74] sm:$0xf]
    %v2366 = vld [vmem:[%s2335 + $0x78] sm:$0xf]
    %v2367 = vld [vmem:[%s2335 + $0x7c] sm:$0xf]
    %v2371 = vunpack.c.l.b16 %v2332
    %v2372 = vunpack.c.h.b16 %v2332
    %v2373 = vunpack.c.l.b16 %v2333
    %v2374 = vunpack.c.h.b16 %v2333
    %v2375 = vunpack.c.l.b16 %v2334
    %v2376 = vunpack.c.h.b16 %v2334
    %v2377 = vpack.c.b16 %v2373, %v2371
    %v2378 = vpack.c.b16 %v2374, %v2372
    %v2379 = vpack.c.b16 %v2375, %v2375
    %v2380 = vpack.c.b16 %v2376, %v2376
    %v2381 = vrot.slane %v2377, 1
    %v2382 = vrot.slane %v2379, 1
    %v2383 = vsel %vm952, %v2381, %v2382
    %v2384 = vrot.slane %v2378, 1
    %v2385 = vrot.slane %v2380, 1
    %v2386 = vsel %vm952, %v2384, %v2385
    %v2421 = vunpack.c.l.b16 %v2336
    %v2422 = vunpack.c.l.b16 %v2337
    %v2423 = vunpack.c.l.b16 %v2338
    %v2424 = vunpack.c.l.b16 %v2339
    %v2425 = vunpack.c.l.b16 %v2340
    %v2426 = vunpack.c.l.b16 %v2341
    %v2427 = vunpack.c.l.b16 %v2342
    %v2428 = vunpack.c.l.b16 %v2343
    %v2429 = vunpack.c.l.b16 %v2344
    %v2430 = vunpack.c.l.b16 %v2345
    %v2431 = vunpack.c.l.b16 %v2346
    %v2432 = vunpack.c.l.b16 %v2347
    %v2433 = vunpack.c.l.b16 %v2348
    %v2434 = vunpack.c.l.b16 %v2349
    %v2435 = vunpack.c.l.b16 %v2350
    %v2436 = vunpack.c.l.b16 %v2351
    %v2437 = vunpack.c.l.b16 %v2352
    %v2438 = vunpack.c.l.b16 %v2353
    %v2439 = vunpack.c.l.b16 %v2354
    %v2440 = vunpack.c.l.b16 %v2355
    %v2441 = vunpack.c.l.b16 %v2356
    %v2442 = vunpack.c.l.b16 %v2357
    %v2443 = vunpack.c.l.b16 %v2358
    %v2444 = vunpack.c.l.b16 %v2359
    %v2445 = vunpack.c.l.b16 %v2360
    %v2446 = vunpack.c.l.b16 %v2361
    %v2447 = vunpack.c.l.b16 %v2362
    %v2448 = vunpack.c.l.b16 %v2363
    %v2449 = vunpack.c.l.b16 %v2364
    %v2450 = vunpack.c.l.b16 %v2365
    %v2451 = vunpack.c.l.b16 %v2366
    %v2452 = vunpack.c.l.b16 %v2367
    %v2453 = vpack.c.b16 %v2422, %v2421
    %v2454 = vpack.c.b16 %v2424, %v2423
    %v2455 = vpack.c.b16 %v2426, %v2425
    %v2456 = vpack.c.b16 %v2428, %v2427
    %v2457 = vpack.c.b16 %v2430, %v2429
    %v2458 = vpack.c.b16 %v2432, %v2431
    %v2459 = vpack.c.b16 %v2434, %v2433
    %v2460 = vpack.c.b16 %v2436, %v2435
    %v2461 = vpack.c.b16 %v2438, %v2437
    %v2462 = vpack.c.b16 %v2440, %v2439
    %v2463 = vpack.c.b16 %v2442, %v2441
    %v2464 = vpack.c.b16 %v2444, %v2443
    %v2465 = vpack.c.b16 %v2446, %v2445
    %v2466 = vpack.c.b16 %v2448, %v2447
    %v2467 = vpack.c.b16 %v2450, %v2449
    %v2468 = vpack.c.b16 %v2452, %v2451
    %2485 = vmatpush.bf16.msra.mxu0 %v2460
    %2486 = vmatpush.bf16.msra.mxu0 %v2459
    %2487 = vmatpush.bf16.msra.mxu0 %v2458
    %2488 = vmatpush.bf16.msra.mxu0 %v2457
    %2489 = vmatpush.bf16.msra.mxu0 %v2456
    %2490 = vmatpush.bf16.msra.mxu0 %v2455
    %2491 = vmatpush.bf16.msra.mxu0 %v2454
    %2492 = vmatpush.bf16.msra.mxu0 %v2453
    %2493 = vmatmul.bf16.gmra.mxu0 %v2383
    %v2494 = vpop.f32.mrf.mxu0
    %v2495 = vadd.f32 0.0, %v2494
    %v2496 = vpop.f32.mrf.mxu0
    %v2497 = vadd.f32 0.0, %v2496
    %2498 = vdwg.mxu0
    %2499 = vmatpush.bf16.msra.mxu0 %v2468
    %2500 = vmatpush.bf16.msra.mxu0 %v2467
    %2501 = vmatpush.bf16.msra.mxu0 %v2466
    %2502 = vmatpush.bf16.msra.mxu0 %v2465
    %2503 = vmatpush.bf16.msra.mxu0 %v2464
    %2504 = vmatpush.bf16.msra.mxu0 %v2463
    %2505 = vmatpush.bf16.msra.mxu0 %v2462
    %2506 = vmatpush.bf16.msra.mxu0 %v2461
    %2507 = vmatmul.bf16.gmra.mxu0 %v2386
    %v2508 = vpop.f32.mrf.mxu0
    %v2509 = vadd.f32 %v2495, %v2508
    %v2510 = vpop.f32.mrf.mxu0
    %v2511 = vadd.f32 %v2497, %v2510
    %2512 = vdwg.mxu0
    %v2515 = vunpack.c.l.b16 %v1986
    %v2516 = vunpack.c.h.b16 %v1986
    %v2517 = vunpack.c.l.b16 %v1987
    %v2518 = vunpack.c.h.b16 %v1987
    %v2519 = vpack.c.b16 %v2517, %v2515
    %v2520 = vpack.c.b16 %v2518, %v2516
    %v2555 = vunpack.c.l.b16 %v1989
    %v2556 = vunpack.c.l.b16 %v1990
    %v2557 = vunpack.c.l.b16 %v1991
    %v2558 = vunpack.c.l.b16 %v1992
    %v2559 = vunpack.c.l.b16 %v1993
    %v2560 = vunpack.c.l.b16 %v1994
    %v2561 = vunpack.c.l.b16 %v1995
    %v2562 = vunpack.c.l.b16 %v1996
    %v2563 = vunpack.c.l.b16 %v1997
    %v2564 = vunpack.c.l.b16 %v1998
    %v2565 = vunpack.c.l.b16 %v1999
    %v2566 = vunpack.c.l.b16 %v2000
    %v2567 = vunpack.c.l.b16 %v2001
    %v2568 = vunpack.c.l.b16 %v2002
    %v2569 = vunpack.c.l.b16 %v2003
    %v2570 = vunpack.c.l.b16 %v2004
    %v2571 = vunpack.c.l.b16 %v2005
    %v2572 = vunpack.c.l.b16 %v2006
    %v2573 = vunpack.c.l.b16 %v2007
    %v2574 = vunpack.c.l.b16 %v2008
    %v2575 = vunpack.c.l.b16 %v2009
    %v2576 = vunpack.c.l.b16 %v2010
    %v2577 = vunpack.c.l.b16 %v2011
    %v2578 = vunpack.c.l.b16 %v2012
    %v2579 = vunpack.c.l.b16 %v2013
    %v2580 = vunpack.c.l.b16 %v2014
    %v2581 = vunpack.c.l.b16 %v2015
    %v2582 = vunpack.c.l.b16 %v2016
    %v2583 = vunpack.c.l.b16 %v2017
    %v2584 = vunpack.c.l.b16 %v2018
    %v2585 = vunpack.c.l.b16 %v2019
    %v2586 = vunpack.c.l.b16 %v2020
    %v2587 = vpack.c.b16 %v2556, %v2555
    %v2588 = vpack.c.b16 %v2558, %v2557
    %v2589 = vpack.c.b16 %v2560, %v2559
    %v2590 = vpack.c.b16 %v2562, %v2561
    %v2591 = vpack.c.b16 %v2564, %v2563
    %v2592 = vpack.c.b16 %v2566, %v2565
    %v2593 = vpack.c.b16 %v2568, %v2567
    %v2594 = vpack.c.b16 %v2570, %v2569
    %v2595 = vpack.c.b16 %v2572, %v2571
    %v2596 = vpack.c.b16 %v2574, %v2573
    %v2597 = vpack.c.b16 %v2576, %v2575
    %v2598 = vpack.c.b16 %v2578, %v2577
    %v2599 = vpack.c.b16 %v2580, %v2579
    %v2600 = vpack.c.b16 %v2582, %v2581
    %v2601 = vpack.c.b16 %v2584, %v2583
    %v2602 = vpack.c.b16 %v2586, %v2585
    %2619 = vmatpush.bf16.msra.mxu0 %v2594
    %2620 = vmatpush.bf16.msra.mxu0 %v2593
    %2621 = vmatpush.bf16.msra.mxu0 %v2592
    %2622 = vmatpush.bf16.msra.mxu0 %v2591
    %2623 = vmatpush.bf16.msra.mxu0 %v2590
    %2624 = vmatpush.bf16.msra.mxu0 %v2589
    %2625 = vmatpush.bf16.msra.mxu0 %v2588
    %2626 = vmatpush.bf16.msra.mxu0 %v2587
    %2627 = vmatmul.bf16.gmra.mxu0 %v2519
    %v2628 = vpop.f32.mrf.mxu0
    %v2629 = vadd.f32 %v2509, %v2628
    %v2630 = vpop.f32.mrf.mxu0
    %v2631 = vadd.f32 %v2511, %v2630
    %2632 = vdwg.mxu0
    %2633 = vmatpush.bf16.msra.mxu0 %v2602
    %2634 = vmatpush.bf16.msra.mxu0 %v2601
    %2635 = vmatpush.bf16.msra.mxu0 %v2600
    %2636 = vmatpush.bf16.msra.mxu0 %v2599
    %2637 = vmatpush.bf16.msra.mxu0 %v2598
    %2638 = vmatpush.bf16.msra.mxu0 %v2597
    %2639 = vmatpush.bf16.msra.mxu0 %v2596
    %2640 = vmatpush.bf16.msra.mxu0 %v2595
    %2641 = vmatmul.bf16.gmra.mxu0 %v2520
    %v2642 = vpop.f32.mrf.mxu0
    %v2643 = vadd.f32 %v2629, %v2642
    %v2644 = vpop.f32.mrf.mxu0
    %v2645 = vadd.f32 %v2631, %v2644
    %2646 = vdwg.mxu0
    %v2647 = vld [vmem:[#allocation3] sm:$0xcc]
    %v2648 = vld [vmem:[#allocation3 + $0x10] sm:$0x33]
    %s2649 = scalar_lea.vmem [#allocation14], 512
    %v2650 = vld [vmem:[%s2649] sm:$0xf]
    %v2651 = vld [vmem:[%s2649 + $0x4] sm:$0xf]
    %v2652 = vld [vmem:[%s2649 + $0x8] sm:$0xf]
    %v2653 = vld [vmem:[%s2649 + $0xc] sm:$0xf]
    %v2654 = vld [vmem:[%s2649 + $0x10] sm:$0xf]
    %v2655 = vld [vmem:[%s2649 + $0x14] sm:$0xf]
    %v2656 = vld [vmem:[%s2649 + $0x18] sm:$0xf]
    %v2657 = vld [vmem:[%s2649 + $0x1c] sm:$0xf]
    %v2658 = vld [vmem:[%s2649 + $0x20] sm:$0xf]
    %v2659 = vld [vmem:[%s2649 + $0x24] sm:$0xf]
    %v2660 = vld [vmem:[%s2649 + $0x28] sm:$0xf]
    %v2661 = vld [vmem:[%s2649 + $0x2c] sm:$0xf]
    %v2662 = vld [vmem:[%s2649 + $0x30] sm:$0xf]
    %v2663 = vld [vmem:[%s2649 + $0x34] sm:$0xf]
    %v2664 = vld [vmem:[%s2649 + $0x38] sm:$0xf]
    %v2665 = vld [vmem:[%s2649 + $0x3c] sm:$0xf]
    %v2666 = vld [vmem:[%s2649 + $0x40] sm:$0xf]
    %v2667 = vld [vmem:[%s2649 + $0x44] sm:$0xf]
    %v2668 = vld [vmem:[%s2649 + $0x48] sm:$0xf]
    %v2669 = vld [vmem:[%s2649 + $0x4c] sm:$0xf]
    %v2670 = vld [vmem:[%s2649 + $0x50] sm:$0xf]
    %v2671 = vld [vmem:[%s2649 + $0x54] sm:$0xf]
    %v2672 = vld [vmem:[%s2649 + $0x58] sm:$0xf]
    %v2673 = vld [vmem:[%s2649 + $0x5c] sm:$0xf]
    %v2674 = vld [vmem:[%s2649 + $0x60] sm:$0xf]
    %v2675 = vld [vmem:[%s2649 + $0x64] sm:$0xf]
    %v2676 = vld [vmem:[%s2649 + $0x68] sm:$0xf]
    %v2677 = vld [vmem:[%s2649 + $0x6c] sm:$0xf]
    %v2678 = vld [vmem:[%s2649 + $0x70] sm:$0xf]
    %v2679 = vld [vmem:[%s2649 + $0x74] sm:$0xf]
    %v2680 = vld [vmem:[%s2649 + $0x78] sm:$0xf]
    %v2681 = vld [vmem:[%s2649 + $0x7c] sm:$0xf]
    %v2684 = vunpack.c.l.b16 %v2647
    %v2685 = vunpack.c.h.b16 %v2647
    %v2686 = vunpack.c.l.b16 %v2648
    %v2687 = vunpack.c.h.b16 %v2648
    %v2688 = vpack.c.b16 %v2061, %v2684
    %v2689 = vpack.c.b16 %v2062, %v2685
    %v2690 = vpack.c.b16 %v2686, %v2686
    %v2691 = vpack.c.b16 %v2687, %v2687
    %v2692 = vrot.slane %v2688, 2
    %v2693 = vrot.slane %v2690, 2
    %v2694 = vsel %vm456, %v2692, %v2693
    %v2695 = vrot.slane %v2689, 2
    %v2696 = vrot.slane %v2691, 2
    %v2697 = vsel %vm456, %v2695, %v2696
    %v2732 = vunpack.c.l.b16 %v2650
    %v2733 = vunpack.c.l.b16 %v2651
    %v2734 = vunpack.c.l.b16 %v2652
    %v2735 = vunpack.c.l.b16 %v2653
    %v2736 = vunpack.c.l.b16 %v2654
    %v2737 = vunpack.c.l.b16 %v2655
    %v2738 = vunpack.c.l.b16 %v2656
    %v2739 = vunpack.c.l.b16 %v2657
    %v2740 = vunpack.c.l.b16 %v2658
    %v2741 = vunpack.c.l.b16 %v2659
    %v2742 = vunpack.c.l.b16 %v2660
    %v2743 = vunpack.c.l.b16 %v2661
    %v2744 = vunpack.c.l.b16 %v2662
    %v2745 = vunpack.c.l.b16 %v2663
    %v2746 = vunpack.c.l.b16 %v2664
    %v2747 = vunpack.c.l.b16 %v2665
    %v2748 = vunpack.c.l.b16 %v2666
    %v2749 = vunpack.c.l.b16 %v2667
    %v2750 = vunpack.c.l.b16 %v2668
    %v2751 = vunpack.c.l.b16 %v2669
    %v2752 = vunpack.c.l.b16 %v2670
    %v2753 = vunpack.c.l.b16 %v2671
    %v2754 = vunpack.c.l.b16 %v2672
    %v2755 = vunpack.c.l.b16 %v2673
    %v2756 = vunpack.c.l.b16 %v2674
    %v2757 = vunpack.c.l.b16 %v2675
    %v2758 = vunpack.c.l.b16 %v2676
    %v2759 = vunpack.c.l.b16 %v2677
    %v2760 = vunpack.c.l.b16 %v2678
    %v2761 = vunpack.c.l.b16 %v2679
    %v2762 = vunpack.c.l.b16 %v2680
    %v2763 = vunpack.c.l.b16 %v2681
    %v2764 = vpack.c.b16 %v2733, %v2732
    %v2765 = vpack.c.b16 %v2735, %v2734
    %v2766 = vpack.c.b16 %v2737, %v2736
    %v2767 = vpack.c.b16 %v2739, %v2738
    %v2768 = vpack.c.b16 %v2741, %v2740
    %v2769 = vpack.c.b16 %v2743, %v2742
    %v2770 = vpack.c.b16 %v2745, %v2744
    %v2771 = vpack.c.b16 %v2747, %v2746
    %v2772 = vpack.c.b16 %v2749, %v2748
    %v2773 = vpack.c.b16 %v2751, %v2750
    %v2774 = vpack.c.b16 %v2753, %v2752
    %v2775 = vpack.c.b16 %v2755, %v2754
    %v2776 = vpack.c.b16 %v2757, %v2756
    %v2777 = vpack.c.b16 %v2759, %v2758
    %v2778 = vpack.c.b16 %v2761, %v2760
    %v2779 = vpack.c.b16 %v2763, %v2762
    %2796 = vmatpush.bf16.msra.mxu0 %v2771
    %2797 = vmatpush.bf16.msra.mxu0 %v2770
    %2798 = vmatpush.bf16.msra.mxu0 %v2769
    %2799 = vmatpush.bf16.msra.mxu0 %v2768
    %2800 = vmatpush.bf16.msra.mxu0 %v2767
    %2801 = vmatpush.bf16.msra.mxu0 %v2766
    %2802 = vmatpush.bf16.msra.mxu0 %v2765
    %2803 = vmatpush.bf16.msra.mxu0 %v2764
    %2804 = vmatmul.bf16.gmra.mxu0 %v2694
    %v2805 = vpop.f32.mrf.mxu0
    %v2806 = vadd.f32 0.0, %v2805
    %v2807 = vpop.f32.mrf.mxu0
    %v2808 = vadd.f32 0.0, %v2807
    %2809 = vdwg.mxu0
    %2810 = vmatpush.bf16.msra.mxu0 %v2779
    %2811 = vmatpush.bf16.msra.mxu0 %v2778
    %2812 = vmatpush.bf16.msra.mxu0 %v2777
    %2813 = vmatpush.bf16.msra.mxu0 %v2776
    %2814 = vmatpush.bf16.msra.mxu0 %v2775
    %2815 = vmatpush.bf16.msra.mxu0 %v2774
    %2816 = vmatpush.bf16.msra.mxu0 %v2773
    %2817 = vmatpush.bf16.msra.mxu0 %v2772
    %2818 = vmatmul.bf16.gmra.mxu0 %v2697
    %v2819 = vpop.f32.mrf.mxu0
    %v2820 = vadd.f32 %v2806, %v2819
    %v2821 = vpop.f32.mrf.mxu0
    %v2822 = vadd.f32 %v2808, %v2821
    %2823 = vdwg.mxu0
    %v2824 = vadd.f32 %v2328, %v2820
    %v2825 = vadd.f32 %v2330, %v2822
    %v2826 = vld [vmem:[#allocation4] sm:$0xcc]
    %v2827 = vld [vmem:[#allocation4 + $0x10] sm:$0x33]
    %s2828 = scalar_lea.vmem [#allocation14], 640
    %v2829 = vld [vmem:[%s2828] sm:$0xf]
    %v2830 = vld [vmem:[%s2828 + $0x4] sm:$0xf]
    %v2831 = vld [vmem:[%s2828 + $0x8] sm:$0xf]
    %v2832 = vld [vmem:[%s2828 + $0xc] sm:$0xf]
    %v2833 = vld [vmem:[%s2828 + $0x10] sm:$0xf]
    %v2834 = vld [vmem:[%s2828 + $0x14] sm:$0xf]
    %v2835 = vld [vmem:[%s2828 + $0x18] sm:$0xf]
    %v2836 = vld [vmem:[%s2828 + $0x1c] sm:$0xf]
    %v2837 = vld [vmem:[%s2828 + $0x20] sm:$0xf]
    %v2838 = vld [vmem:[%s2828 + $0x24] sm:$0xf]
    %v2839 = vld [vmem:[%s2828 + $0x28] sm:$0xf]
    %v2840 = vld [vmem:[%s2828 + $0x2c] sm:$0xf]
    %v2841 = vld [vmem:[%s2828 + $0x30] sm:$0xf]
    %v2842 = vld [vmem:[%s2828 + $0x34] sm:$0xf]
    %v2843 = vld [vmem:[%s2828 + $0x38] sm:$0xf]
    %v2844 = vld [vmem:[%s2828 + $0x3c] sm:$0xf]
    %v2845 = vld [vmem:[%s2828 + $0x40] sm:$0xf]
    %v2846 = vld [vmem:[%s2828 + $0x44] sm:$0xf]
    %v2847 = vld [vmem:[%s2828 + $0x48] sm:$0xf]
    %v2848 = vld [vmem:[%s2828 + $0x4c] sm:$0xf]
    %v2849 = vld [vmem:[%s2828 + $0x50] sm:$0xf]
    %v2850 = vld [vmem:[%s2828 + $0x54] sm:$0xf]
    %v2851 = vld [vmem:[%s2828 + $0x58] sm:$0xf]
    %v2852 = vld [vmem:[%s2828 + $0x5c] sm:$0xf]
    %v2853 = vld [vmem:[%s2828 + $0x60] sm:$0xf]
    %v2854 = vld [vmem:[%s2828 + $0x64] sm:$0xf]
    %v2855 = vld [vmem:[%s2828 + $0x68] sm:$0xf]
    %v2856 = vld [vmem:[%s2828 + $0x6c] sm:$0xf]
    %v2857 = vld [vmem:[%s2828 + $0x70] sm:$0xf]
    %v2858 = vld [vmem:[%s2828 + $0x74] sm:$0xf]
    %v2859 = vld [vmem:[%s2828 + $0x78] sm:$0xf]
    %v2860 = vld [vmem:[%s2828 + $0x7c] sm:$0xf]
    %v2863 = vunpack.c.l.b16 %v2826
    %v2864 = vunpack.c.h.b16 %v2826
    %v2865 = vunpack.c.l.b16 %v2827
    %v2866 = vunpack.c.h.b16 %v2827
    %v2867 = vpack.c.b16 %v2373, %v2863
    %v2868 = vpack.c.b16 %v2374, %v2864
    %v2869 = vpack.c.b16 %v2865, %v2865
    %v2870 = vpack.c.b16 %v2866, %v2866
    %v2871 = vrot.slane %v2867, 2
    %v2872 = vrot.slane %v2869, 2
    %v2873 = vsel %vm456, %v2871, %v2872
    %v2874 = vrot.slane %v2868, 2
    %v2875 = vrot.slane %v2870, 2
    %v2876 = vsel %vm456, %v2874, %v2875
    %v2911 = vunpack.c.l.b16 %v2829
    %v2912 = vunpack.c.l.b16 %v2830
    %v2913 = vunpack.c.l.b16 %v2831
    %v2914 = vunpack.c.l.b16 %v2832
    %v2915 = vunpack.c.l.b16 %v2833
    %v2916 = vunpack.c.l.b16 %v2834
    %v2917 = vunpack.c.l.b16 %v2835
    %v2918 = vunpack.c.l.b16 %v2836
    %v2919 = vunpack.c.l.b16 %v2837
    %v2920 = vunpack.c.l.b16 %v2838
    %v2921 = vunpack.c.l.b16 %v2839
    %v2922 = vunpack.c.l.b16 %v2840
    %v2923 = vunpack.c.l.b16 %v2841
    %v2924 = vunpack.c.l.b16 %v2842
    %v2925 = vunpack.c.l.b16 %v2843
    %v2926 = vunpack.c.l.b16 %v2844
    %v2927 = vunpack.c.l.b16 %v2845
    %v2928 = vunpack.c.l.b16 %v2846
    %v2929 = vunpack.c.l.b16 %v2847
    %v2930 = vunpack.c.l.b16 %v2848
    %v2931 = vunpack.c.l.b16 %v2849
    %v2932 = vunpack.c.l.b16 %v2850
    %v2933 = vunpack.c.l.b16 %v2851
    %v2934 = vunpack.c.l.b16 %v2852
    %v2935 = vunpack.c.l.b16 %v2853
    %v2936 = vunpack.c.l.b16 %v2854
    %v2937 = vunpack.c.l.b16 %v2855
    %v2938 = vunpack.c.l.b16 %v2856
    %v2939 = vunpack.c.l.b16 %v2857
    %v2940 = vunpack.c.l.b16 %v2858
    %v2941 = vunpack.c.l.b16 %v2859
    %v2942 = vunpack.c.l.b16 %v2860
    %v2943 = vpack.c.b16 %v2912, %v2911
    %v2944 = vpack.c.b16 %v2914, %v2913
    %v2945 = vpack.c.b16 %v2916, %v2915
    %v2946 = vpack.c.b16 %v2918, %v2917
    %v2947 = vpack.c.b16 %v2920, %v2919
    %v2948 = vpack.c.b16 %v2922, %v2921
    %v2949 = vpack.c.b16 %v2924, %v2923
    %v2950 = vpack.c.b16 %v2926, %v2925
    %v2951 = vpack.c.b16 %v2928, %v2927
    %v2952 = vpack.c.b16 %v2930, %v2929
    %v2953 = vpack.c.b16 %v2932, %v2931
    %v2954 = vpack.c.b16 %v2934, %v2933
    %v2955 = vpack.c.b16 %v2936, %v2935
    %v2956 = vpack.c.b16 %v2938, %v2937
    %v2957 = vpack.c.b16 %v2940, %v2939
    %v2958 = vpack.c.b16 %v2942, %v2941
    %2975 = vmatpush.bf16.msra.mxu0 %v2950
    %2976 = vmatpush.bf16.msra.mxu0 %v2949
    %2977 = vmatpush.bf16.msra.mxu0 %v2948
    %2978 = vmatpush.bf16.msra.mxu0 %v2947
    %2979 = vmatpush.bf16.msra.mxu0 %v2946
    %2980 = vmatpush.bf16.msra.mxu0 %v2945
    %2981 = vmatpush.bf16.msra.mxu0 %v2944
    %2982 = vmatpush.bf16.msra.mxu0 %v2943
    %2983 = vmatmul.bf16.gmra.mxu0 %v2873
    %v2984 = vpop.f32.mrf.mxu0
    %v2985 = vadd.f32 0.0, %v2984
    %v2986 = vpop.f32.mrf.mxu0
    %v2987 = vadd.f32 0.0, %v2986
    %2988 = vdwg.mxu0
    %2989 = vmatpush.bf16.msra.mxu0 %v2958
    %2990 = vmatpush.bf16.msra.mxu0 %v2957
    %2991 = vmatpush.bf16.msra.mxu0 %v2956
    %2992 = vmatpush.bf16.msra.mxu0 %v2955
    %2993 = vmatpush.bf16.msra.mxu0 %v2954
    %2994 = vmatpush.bf16.msra.mxu0 %v2953
    %2995 = vmatpush.bf16.msra.mxu0 %v2952
    %2996 = vmatpush.bf16.msra.mxu0 %v2951
    %2997 = vmatmul.bf16.gmra.mxu0 %v2876
    %v2998 = vpop.f32.mrf.mxu0
    %v2999 = vadd.f32 %v2985, %v2998
    %v3000 = vpop.f32.mrf.mxu0
    %v3001 = vadd.f32 %v2987, %v3000
    %3002 = vdwg.mxu0
    %v3003 = vadd.f32 %v2643, %v2999
    %v3004 = vadd.f32 %v2645, %v3001
    %v3005 = vld [vmem:[#allocation3] sm:$0x88]
    %v3006 = vld [vmem:[#allocation3 + $0x10] sm:$0x77]
    %s3007 = scalar_lea.vmem [#allocation14], 768
    %v3008 = vld [vmem:[%s3007] sm:$0xf]
    %v3009 = vld [vmem:[%s3007 + $0x4] sm:$0xf]
    %v3010 = vld [vmem:[%s3007 + $0x8] sm:$0xf]
    %v3011 = vld [vmem:[%s3007 + $0xc] sm:$0xf]
    %v3012 = vld [vmem:[%s3007 + $0x10] sm:$0xf]
    %v3013 = vld [vmem:[%s3007 + $0x14] sm:$0xf]
    %v3014 = vld [vmem:[%s3007 + $0x18] sm:$0xf]
    %v3015 = vld [vmem:[%s3007 + $0x1c] sm:$0xf]
    %v3016 = vld [vmem:[%s3007 + $0x20] sm:$0xf]
    %v3017 = vld [vmem:[%s3007 + $0x24] sm:$0xf]
    %v3018 = vld [vmem:[%s3007 + $0x28] sm:$0xf]
    %v3019 = vld [vmem:[%s3007 + $0x2c] sm:$0xf]
    %v3020 = vld [vmem:[%s3007 + $0x30] sm:$0xf]
    %v3021 = vld [vmem:[%s3007 + $0x34] sm:$0xf]
    %v3022 = vld [vmem:[%s3007 + $0x38] sm:$0xf]
    %v3023 = vld [vmem:[%s3007 + $0x3c] sm:$0xf]
    %v3024 = vld [vmem:[%s3007 + $0x40] sm:$0xf]
    %v3025 = vld [vmem:[%s3007 + $0x44] sm:$0xf]
    %v3026 = vld [vmem:[%s3007 + $0x48] sm:$0xf]
    %v3027 = vld [vmem:[%s3007 + $0x4c] sm:$0xf]
    %v3028 = vld [vmem:[%s3007 + $0x50] sm:$0xf]
    %v3029 = vld [vmem:[%s3007 + $0x54] sm:$0xf]
    %v3030 = vld [vmem:[%s3007 + $0x58] sm:$0xf]
    %v3031 = vld [vmem:[%s3007 + $0x5c] sm:$0xf]
    %v3032 = vld [vmem:[%s3007 + $0x60] sm:$0xf]
    %v3033 = vld [vmem:[%s3007 + $0x64] sm:$0xf]
    %v3034 = vld [vmem:[%s3007 + $0x68] sm:$0xf]
    %v3035 = vld [vmem:[%s3007 + $0x6c] sm:$0xf]
    %v3036 = vld [vmem:[%s3007 + $0x70] sm:$0xf]
    %v3037 = vld [vmem:[%s3007 + $0x74] sm:$0xf]
    %v3038 = vld [vmem:[%s3007 + $0x78] sm:$0xf]
    %v3039 = vld [vmem:[%s3007 + $0x7c] sm:$0xf]
    %v3042 = vunpack.c.l.b16 %v3005
    %v3043 = vunpack.c.h.b16 %v3005
    %v3044 = vunpack.c.l.b16 %v3006
    %v3045 = vunpack.c.h.b16 %v3006
    %v3046 = vpack.c.b16 %v2061, %v3042
    %v3047 = vpack.c.b16 %v2062, %v3043
    %v3048 = vpack.c.b16 %v3044, %v3044
    %v3049 = vpack.c.b16 %v3045, %v3045
    %v3050 = vrot.slane %v3046, 3
    %v3051 = vrot.slane %v3048, 3
    %v3052 = vsel %vm793, %v3050, %v3051
    %v3053 = vrot.slane %v3047, 3
    %v3054 = vrot.slane %v3049, 3
    %v3055 = vsel %vm793, %v3053, %v3054
    %v3090 = vunpack.c.l.b16 %v3008
    %v3091 = vunpack.c.l.b16 %v3009
    %v3092 = vunpack.c.l.b16 %v3010
    %v3093 = vunpack.c.l.b16 %v3011
    %v3094 = vunpack.c.l.b16 %v3012
    %v3095 = vunpack.c.l.b16 %v3013
    %v3096 = vunpack.c.l.b16 %v3014
    %v3097 = vunpack.c.l.b16 %v3015
    %v3098 = vunpack.c.l.b16 %v3016
    %v3099 = vunpack.c.l.b16 %v3017
    %v3100 = vunpack.c.l.b16 %v3018
    %v3101 = vunpack.c.l.b16 %v3019
    %v3102 = vunpack.c.l.b16 %v3020
    %v3103 = vunpack.c.l.b16 %v3021
    %v3104 = vunpack.c.l.b16 %v3022
    %v3105 = vunpack.c.l.b16 %v3023
    %v3106 = vunpack.c.l.b16 %v3024
    %v3107 = vunpack.c.l.b16 %v3025
    %v3108 = vunpack.c.l.b16 %v3026
    %v3109 = vunpack.c.l.b16 %v3027
    %v3110 = vunpack.c.l.b16 %v3028
    %v3111 = vunpack.c.l.b16 %v3029
    %v3112 = vunpack.c.l.b16 %v3030
    %v3113 = vunpack.c.l.b16 %v3031
    %v3114 = vunpack.c.l.b16 %v3032
    %v3115 = vunpack.c.l.b16 %v3033
    %v3116 = vunpack.c.l.b16 %v3034
    %v3117 = vunpack.c.l.b16 %v3035
    %v3118 = vunpack.c.l.b16 %v3036
    %v3119 = vunpack.c.l.b16 %v3037
    %v3120 = vunpack.c.l.b16 %v3038
    %v3121 = vunpack.c.l.b16 %v3039
    %v3122 = vpack.c.b16 %v3091, %v3090
    %v3123 = vpack.c.b16 %v3093, %v3092
    %v3124 = vpack.c.b16 %v3095, %v3094
    %v3125 = vpack.c.b16 %v3097, %v3096
    %v3126 = vpack.c.b16 %v3099, %v3098
    %v3127 = vpack.c.b16 %v3101, %v3100
    %v3128 = vpack.c.b16 %v3103, %v3102
    %v3129 = vpack.c.b16 %v3105, %v3104
    %v3130 = vpack.c.b16 %v3107, %v3106
    %v3131 = vpack.c.b16 %v3109, %v3108
    %v3132 = vpack.c.b16 %v3111, %v3110
    %v3133 = vpack.c.b16 %v3113, %v3112
    %v3134 = vpack.c.b16 %v3115, %v3114
    %v3135 = vpack.c.b16 %v3117, %v3116
    %v3136 = vpack.c.b16 %v3119, %v3118
    %v3137 = vpack.c.b16 %v3121, %v3120
    %3154 = vmatpush.bf16.msra.mxu0 %v3129
    %3155 = vmatpush.bf16.msra.mxu0 %v3128
    %3156 = vmatpush.bf16.msra.mxu0 %v3127
    %3157 = vmatpush.bf16.msra.mxu0 %v3126
    %3158 = vmatpush.bf16.msra.mxu0 %v3125
    %3159 = vmatpush.bf16.msra.mxu0 %v3124
    %3160 = vmatpush.bf16.msra.mxu0 %v3123
    %3161 = vmatpush.bf16.msra.mxu0 %v3122
    %3162 = vmatmul.bf16.gmra.mxu0 %v3052
    %v3163 = vpop.f32.mrf.mxu0
    %v3164 = vadd.f32 0.0, %v3163
    %v3165 = vpop.f32.mrf.mxu0
    %v3166 = vadd.f32 0.0, %v3165
    %3167 = vdwg.mxu0
    %3168 = vmatpush.bf16.msra.mxu0 %v3137
    %3169 = vmatpush.bf16.msra.mxu0 %v3136
    %3170 = vmatpush.bf16.msra.mxu0 %v3135
    %3171 = vmatpush.bf16.msra.mxu0 %v3134
    %3172 = vmatpush.bf16.msra.mxu0 %v3133
    %3173 = vmatpush.bf16.msra.mxu0 %v3132
    %3174 = vmatpush.bf16.msra.mxu0 %v3131
    %3175 = vmatpush.bf16.msra.mxu0 %v3130
    %3176 = vmatmul.bf16.gmra.mxu0 %v3055
    %v3177 = vpop.f32.mrf.mxu0
    %v3178 = vadd.f32 %v3164, %v3177
    %v3179 = vpop.f32.mrf.mxu0
    %v3180 = vadd.f32 %v3166, %v3179
    %3181 = vdwg.mxu0
    %v3182 = vadd.f32 %v2824, %v3178
    %v3183 = vadd.f32 %v2825, %v3180
    %v3184 = vld [vmem:[#allocation4] sm:$0x88]
    %v3185 = vld [vmem:[#allocation4 + $0x10] sm:$0x77]
    %s3186 = scalar_lea.vmem [#allocation14], 896
    %v3187 = vld [vmem:[%s3186] sm:$0xf]
    %v3188 = vld [vmem:[%s3186 + $0x4] sm:$0xf]
    %v3189 = vld [vmem:[%s3186 + $0x8] sm:$0xf]
    %v3190 = vld [vmem:[%s3186 + $0xc] sm:$0xf]
    %v3191 = vld [vmem:[%s3186 + $0x10] sm:$0xf]
    %v3192 = vld [vmem:[%s3186 + $0x14] sm:$0xf]
    %v3193 = vld [vmem:[%s3186 + $0x18] sm:$0xf]
    %v3194 = vld [vmem:[%s3186 + $0x1c] sm:$0xf]
    %v3195 = vld [vmem:[%s3186 + $0x20] sm:$0xf]
    %v3196 = vld [vmem:[%s3186 + $0x24] sm:$0xf]
    %v3197 = vld [vmem:[%s3186 + $0x28] sm:$0xf]
    %v3198 = vld [vmem:[%s3186 + $0x2c] sm:$0xf]
    %v3199 = vld [vmem:[%s3186 + $0x30] sm:$0xf]
    %v3200 = vld [vmem:[%s3186 + $0x34] sm:$0xf]
    %v3201 = vld [vmem:[%s3186 + $0x38] sm:$0xf]
    %v3202 = vld [vmem:[%s3186 + $0x3c] sm:$0xf]
    %v3203 = vld [vmem:[%s3186 + $0x40] sm:$0xf]
    %v3204 = vld [vmem:[%s3186 + $0x44] sm:$0xf]
    %v3205 = vld [vmem:[%s3186 + $0x48] sm:$0xf]
    %v3206 = vld [vmem:[%s3186 + $0x4c] sm:$0xf]
    %v3207 = vld [vmem:[%s3186 + $0x50] sm:$0xf]
    %v3208 = vld [vmem:[%s3186 + $0x54] sm:$0xf]
    %v3209 = vld [vmem:[%s3186 + $0x58] sm:$0xf]
    %v3210 = vld [vmem:[%s3186 + $0x5c] sm:$0xf]
    %v3211 = vld [vmem:[%s3186 + $0x60] sm:$0xf]
    %v3212 = vld [vmem:[%s3186 + $0x64] sm:$0xf]
    %v3213 = vld [vmem:[%s3186 + $0x68] sm:$0xf]
    %v3214 = vld [vmem:[%s3186 + $0x6c] sm:$0xf]
    %v3215 = vld [vmem:[%s3186 + $0x70] sm:$0xf]
    %v3216 = vld [vmem:[%s3186 + $0x74] sm:$0xf]
    %v3217 = vld [vmem:[%s3186 + $0x78] sm:$0xf]
    %v3218 = vld [vmem:[%s3186 + $0x7c] sm:$0xf]
    %v3221 = vunpack.c.l.b16 %v3184
    %v3222 = vunpack.c.h.b16 %v3184
    %v3223 = vunpack.c.l.b16 %v3185
    %v3224 = vunpack.c.h.b16 %v3185
    %v3225 = vpack.c.b16 %v2373, %v3221
    %v3226 = vpack.c.b16 %v2374, %v3222
    %v3227 = vpack.c.b16 %v3223, %v3223
    %v3228 = vpack.c.b16 %v3224, %v3224
    %v3229 = vrot.slane %v3225, 3
    %v3230 = vrot.slane %v3227, 3
    %v3231 = vsel %vm793, %v3229, %v3230
    %v3232 = vrot.slane %v3226, 3
    %v3233 = vrot.slane %v3228, 3
    %v3234 = vsel %vm793, %v3232, %v3233
    %v3269 = vunpack.c.l.b16 %v3187
    %v3270 = vunpack.c.l.b16 %v3188
    %v3271 = vunpack.c.l.b16 %v3189
    %v3272 = vunpack.c.l.b16 %v3190
    %v3273 = vunpack.c.l.b16 %v3191
    %v3274 = vunpack.c.l.b16 %v3192
    %v3275 = vunpack.c.l.b16 %v3193
    %v3276 = vunpack.c.l.b16 %v3194
    %v3277 = vunpack.c.l.b16 %v3195
    %v3278 = vunpack.c.l.b16 %v3196
    %v3279 = vunpack.c.l.b16 %v3197
    %v3280 = vunpack.c.l.b16 %v3198
    %v3281 = vunpack.c.l.b16 %v3199
    %v3282 = vunpack.c.l.b16 %v3200
    %v3283 = vunpack.c.l.b16 %v3201
    %v3284 = vunpack.c.l.b16 %v3202
    %v3285 = vunpack.c.l.b16 %v3203
    %v3286 = vunpack.c.l.b16 %v3204
    %v3287 = vunpack.c.l.b16 %v3205
    %v3288 = vunpack.c.l.b16 %v3206
    %v3289 = vunpack.c.l.b16 %v3207
    %v3290 = vunpack.c.l.b16 %v3208
    %v3291 = vunpack.c.l.b16 %v3209
    %v3292 = vunpack.c.l.b16 %v3210
    %v3293 = vunpack.c.l.b16 %v3211
    %v3294 = vunpack.c.l.b16 %v3212
    %v3295 = vunpack.c.l.b16 %v3213
    %v3296 = vunpack.c.l.b16 %v3214
    %v3297 = vunpack.c.l.b16 %v3215
    %v3298 = vunpack.c.l.b16 %v3216
    %v3299 = vunpack.c.l.b16 %v3217
    %v3300 = vunpack.c.l.b16 %v3218
    %v3301 = vpack.c.b16 %v3270, %v3269
    %v3302 = vpack.c.b16 %v3272, %v3271
    %v3303 = vpack.c.b16 %v3274, %v3273
    %v3304 = vpack.c.b16 %v3276, %v3275
    %v3305 = vpack.c.b16 %v3278, %v3277
    %v3306 = vpack.c.b16 %v3280, %v3279
    %v3307 = vpack.c.b16 %v3282, %v3281
    %v3308 = vpack.c.b16 %v3284, %v3283
    %v3309 = vpack.c.b16 %v3286, %v3285
    %v3310 = vpack.c.b16 %v3288, %v3287
    %v3311 = vpack.c.b16 %v3290, %v3289
    %v3312 = vpack.c.b16 %v3292, %v3291
    %v3313 = vpack.c.b16 %v3294, %v3293
    %v3314 = vpack.c.b16 %v3296, %v3295
    %v3315 = vpack.c.b16 %v3298, %v3297
    %v3316 = vpack.c.b16 %v3300, %v3299
    %3333 = vmatpush.bf16.msra.mxu0 %v3308
    %3334 = vmatpush.bf16.msra.mxu0 %v3307
    %3335 = vmatpush.bf16.msra.mxu0 %v3306
    %3336 = vmatpush.bf16.msra.mxu0 %v3305
    %3337 = vmatpush.bf16.msra.mxu0 %v3304
    %3338 = vmatpush.bf16.msra.mxu0 %v3303
    %3339 = vmatpush.bf16.msra.mxu0 %v3302
    %3340 = vmatpush.bf16.msra.mxu0 %v3301
    %3341 = vmatmul.bf16.gmra.mxu0 %v3231
    %v3342 = vpop.f32.mrf.mxu0
    %v3343 = vadd.f32 0.0, %v3342
    %v3344 = vpop.f32.mrf.mxu0
    %v3345 = vadd.f32 0.0, %v3344
    %3346 = vdwg.mxu0
    %3347 = vmatpush.bf16.msra.mxu0 %v3316
    %3348 = vmatpush.bf16.msra.mxu0 %v3315
    %3349 = vmatpush.bf16.msra.mxu0 %v3314
    %3350 = vmatpush.bf16.msra.mxu0 %v3313
    %3351 = vmatpush.bf16.msra.mxu0 %v3312
    %3352 = vmatpush.bf16.msra.mxu0 %v3311
    %3353 = vmatpush.bf16.msra.mxu0 %v3310
    %3354 = vmatpush.bf16.msra.mxu0 %v3309
    %3355 = vmatmul.bf16.gmra.mxu0 %v3234
    %v3356 = vpop.f32.mrf.mxu0
    %v3357 = vadd.f32 %v3343, %v3356
    %v3358 = vpop.f32.mrf.mxu0
    %v3359 = vadd.f32 %v3345, %v3358
    %3360 = vdwg.mxu0
    %v3361 = vadd.f32 %v3003, %v3357
    %v3362 = vadd.f32 %v3004, %v3359
    %v3363 = vadd.f32 %v3182, %v3361
    %v3364 = vadd.f32 %v3183, %v3362
    %v3365 = vld [vmem:[%s10] sm:$0x1]
    %v3367 = vperm.slane %v3365, 0
    %v3369 = vadd.f32 %v3363, %v3367
    %v3370 = vadd.f32 %v3364, %v3367
    %v3371 = vld [vmem:[#allocation15] sm:$0xff]
    %v3372 = vld [vmem:[#allocation15 + $0x8] sm:$0xff]
    %v3373 = vadd.f32 %v3371, %v3369
    %v3374 = vadd.f32 %v3372, %v3370
    %3375 = vst [vmem:[#allocation15] sm:$0xff] %v3373
    %3376 = vst [vmem:[#allocation15 + $0x8] sm:$0xff] %v3374
    // Predicated region
    $region66: #{tpu_custom_call.1} parent=1 // pred_check
      _
    $region67: #{tpu_custom_call.1} parent=1 // pred_check_branch
      %3378 = sbr.rel (0) target = $region69
    $region68: #{tpu_custom_call.1} parent=1 // pred_region
      %3380 = vsyncadd [#allocation8], 0
      %s3381 = sshll.u32 [#allocation15], 4
      %s3382 = int_to_ptr.vmem [resolvable:$true] %s3381
      %s3383 = sshll.u32 %s11, 4
      %s3384 = int_to_ptr.hbm [resolvable:$true] %s3383
      %3389 = dma.vmem_to_hbm [thread:$0]  %s3382, 256, %s3384, [#allocation8], 128, 128, 8
    $region69: #{tpu_custom_call.1} parent=1 // pred_fallthru
      _
    // Predicated region
    $region70: #{tpu_custom_call.1} parent=1 // pred_check
      _
    $region71: #{tpu_custom_call.1} parent=1 // pred_check_branch
      %3391 = sbr.rel (0) target = $region73
    $region72: #{tpu_custom_call.1} parent=1 // pred_region
      %3393 = dma.done [#allocation8], 256
    $region73: #{tpu_custom_call.1} parent=1 // pred_fallthru
      _
    %3394 = vsyncpa [#allocation7], 1
    %3395 = vsyncpa [#allocation10], 1
    %3396 = vsyncpa [#allocation13], 1
    %3397 = vsyncpa [#allocation8], 1

</llo_original>
